<compile_context>
chip_gen: v7x
topology: tpu7x:2x2x1
jax: 0.10.0
libtpu: 0.0.40
codegen_flags: <defaults>
</compile_context>

<pallas_src>
import functools

import jax
import jax.numpy as jnp
from jax.experimental import pallas as pl
from jax.experimental.pallas import tpu as pltpu


MAX_TILE_B = 32          # images per grid step (must stay a multiple of 8)


# ---------------------------------------------------------------------------
# Fused Pallas kernel: one batch tile per grid step
# ---------------------------------------------------------------------------

def _fused_cnn_kernel(tile_b, x_ref, w1_ref, b1_ref, w2_ref, b2_ref, wf_ref, bf_ref, o_ref):
    # x_ref: (28, tile_b, 28) f32 laid out as [image_row i, batch b, image_col j].
    x = x_ref[...]

    # ---- conv1 + ReLU: one f32 MXU matmul (row-band formulation) ----------------
    # lhs rows = (out_row ih, b); lanes = (di, j); K = 5*28 = 140.
    lhs1 = jnp.concatenate([x[di:di + 24] for di in range(5)], axis=-1)   # (24, tile_b, 140)
    lhs1 = lhs1.reshape(24 * tile_b, 140)
    h1 = jnp.dot(lhs1, w1_ref[...], preferred_element_type=jnp.float32)  # (24*tile_b, 384)
    h1 = jnp.maximum(h1 + b1_ref[...], 0.0)          # lanes = jw*16 + c_out (lane-dense)

    # ---- maxpool1 (2x2) ----------------------------------------------------------
    h1 = h1.reshape(12, 2, tile_b, 384)              # rows -> (oh, row-parity, b): free split
    hp = jnp.maximum(h1[:, 0], h1[:, 1])             # (12, tile_b, 384)
    sh = jnp.concatenate([hp[:, :, 16:], hp[:, :, :16]], axis=-1)   # lanes shifted by one jw
    hm = jnp.maximum(hp, sh)                         # valid pooled values at even-jw lanes

    # ---- conv2 + ReLU: one big-K bf16 MXU matmul ---------------------------------
    # lhs rows = (out_row oi, b); lanes = (di, jw, c_in); K = 5*384 = 1920.
    lhs2 = jnp.concatenate([hm[di:di + 8] for di in range(5)], axis=-1)  # (8, tile_b, 1920)
    lhs2 = lhs2.reshape(8 * tile_b, 1920).astype(jnp.bfloat16)
    h2 = jnp.dot(lhs2, w2_ref[...], preferred_element_type=jnp.float32)  # (8*tile_b, 256)
    h2 = jnp.maximum(h2 + b2_ref[...], 0.0)          # lanes = oj*32 + c_out

    # ---- maxpool2 (2x2) ----------------------------------------------------------
    h2 = h2.reshape(4, 2, tile_b, 256)
    hq = jnp.maximum(h2[:, 0], h2[:, 1])             # (4, tile_b, 256)
    sh2 = jnp.concatenate([hq[:, :, 32:], hq[:, :, :32]], axis=-1)
    hr = jnp.maximum(hq, sh2)                        # valid pooled values at even-oj lanes

    # ---- fc1: one (tile_b, 1024) @ (1024, 128) bf16 matmul, lane-dense output ----
    lhs3 = jnp.concatenate([hr[pi] for pi in range(4)], axis=-1)         # (tile_b, 1024)
    lhs3 = lhs3.astype(jnp.bfloat16)
    out = jnp.dot(lhs3, wf_ref[...], preferred_element_type=jnp.float32) + bf_ref[...]
    o_ref[...] = out.astype(o_ref.dtype)             # (tile_b, 128) unmasked store


# ---------------------------------------------------------------------------
# Parameter preprocessing (done ONCE, outside the jitted forward)
# ---------------------------------------------------------------------------

def prepare_params(params):
    """PyTorch-layout params -> banded, pooling-aware kernel weights."""
    w1, b1 = params["w1"], params["b1"]          # (16,1,5,5), (16,)
    w2, b2 = params["w2"], params["b2"]          # (32,16,5,5), (32,)
    wf, bf = params["wf"], params["bf"]          # (10,512), (10,)

    # conv1 row-band weight: W1b[di*28 + j, jw*16 + c] = w1[c,0,di,j-jw] for 0<=j-jw<5.
    dj = jnp.arange(28)[:, None] - jnp.arange(24)[None, :]              # (28,24)
    valid = (dj >= 0) & (dj < 5)
    w1g = w1.reshape(16, 5, 5)[:, :, jnp.clip(dj, 0, 4)]                # (16,5,28,24)
    w1g = jnp.where(valid[None, None], w1g, 0.0)
    w1b = w1g.transpose(1, 2, 3, 0).reshape(140, 384).astype(jnp.float32)
    b1b = jnp.tile(b1, 24).reshape(1, 384).astype(jnp.float32)

    # conv2 big-K weight over the (un-compacted) pooled conv1 lanes:
    # W2b[di*384 + jw*16 + ci, oj*32 + co] = w2[co,ci,di,jw//2-oj] for even jw, 0<=jw//2-oj<5.
    jw = jnp.arange(24)
    dj2 = (jw // 2)[:, None] - jnp.arange(8)[None, :]                   # (24,8)
    valid2 = ((jw % 2) == 0)[:, None] & (dj2 >= 0) & (dj2 < 5)
    w2g = w2[:, :, :, jnp.clip(dj2, 0, 4)]                              # (32,16,5,24,8)
    w2g = jnp.where(valid2[None, None, None], w2g, 0.0)
    w2b = w2g.transpose(2, 3, 1, 4, 0).reshape(1920, 256).astype(jnp.bfloat16)
    b2b = jnp.tile(b2, 8).reshape(1, 256).astype(jnp.float32)

    # fc weight over the (un-compacted) pooled conv2 lanes; PyTorch flatten order is
    # f = co*16 + pi*4 + pj:  Wfb[pi*256 + oj*32 + co, n] = wf[n, co*16 + pi*4 + oj//2]
    # for even oj, zero otherwise; logits padded 10 -> 128 lanes.
    oj = jnp.arange(8)
    valid3 = (oj % 2) == 0
    wfg = wf.reshape(10, 32, 4, 4)[:, :, :, oj // 2]                    # (10,32,4,8)
    wfg = jnp.where(valid3[None, None, None], wfg, 0.0)
    wfb = wfg.transpose(2, 3, 1, 0).reshape(1024, 10)
    wfb = jnp.pad(wfb, ((0, 0), (0, 118))).astype(jnp.bfloat16)         # (1024, 128)
    bfb = jnp.pad(bf, (0, 118)).reshape(1, 128).astype(jnp.float32)

    return dict(w1b=w1b, b1b=b1b, w2b=w2b, b2b=b2b, wfb=wfb, bfb=bfb)


# ---------------------------------------------------------------------------
# Forward pass (single fused pallas_call, 1-D grid over batch tiles)
# ---------------------------------------------------------------------------

def _pick_tile_b(batch):
    """Biggest tile <= MAX_TILE_B that (when possible) still yields >= 2 grid steps."""
    tb = MAX_TILE_B
    while tb > 8 and pl.cdiv(batch, tb) < 2:
        tb //= 2
    return tb


@jax.jit
def cnn_model_forward(kparams, x):
    """x: (B, 1, 28, 28) f32 -> logits (B, 10) f32."""
    B = x.shape[0]
    assert x.shape[1:] == (1, 28, 28), x.shape

    tile_b = _pick_tile_b(B)
    n_tiles = pl.cdiv(B, tile_b)
    b_pad = n_tiles * tile_b

    xs = x[:, 0]                                                  # (B, 28, 28)
    if b_pad != B:
        xs = jnp.pad(xs, ((0, b_pad - B), (0, 0), (0, 0)))
    x_t = jnp.transpose(xs, (1, 0, 2))                            # (28, b_pad, 28) = [i, b, j]

    out = pl.pallas_call(
        functools.partial(_fused_cnn_kernel, tile_b),
        out_shape=jax.ShapeDtypeStruct((b_pad, 128), jnp.float32),
        grid_spec=pltpu.PrefetchScalarGridSpec(
            num_scalar_prefetch=0,
            grid=(n_tiles,),
            in_specs=[
                pl.BlockSpec((28, tile_b, 28), lambda i: (0, i, 0)),   # raw input tile
                pl.BlockSpec((140, 384), lambda i: (0, 0)),            # w1 (band), f32
                pl.BlockSpec((1, 384), lambda i: (0, 0)),              # b1 (tiled)
                pl.BlockSpec((1920, 256), lambda i: (0, 0)),           # w2 (band), bf16
                pl.BlockSpec((1, 256), lambda i: (0, 0)),              # b2 (tiled)
                pl.BlockSpec((1024, 128), lambda i: (0, 0)),           # fc weight, bf16
                pl.BlockSpec((1, 128), lambda i: (0, 0)),              # fc bias (padded)
            ],
            out_specs=pl.BlockSpec((tile_b, 128), lambda i: (i, 0)),
        ),
        compiler_params=pltpu.CompilerParams(
            dimension_semantics=("parallel",),
            vmem_limit_bytes=32 * 1024 * 1024,
        ),
    )(x_t, kparams["w1b"], kparams["b1b"], kparams["w2b"], kparams["b2b"],
      kparams["wfb"], kparams["bfb"])

    return out[:B, :10]


# ---------------------------------------------------------------------------
# Deterministic parameter init (PyTorch-default-style uniform(-1/sqrt(fan_in), ...))
# ---------------------------------------------------------------------------

def init_params(key):
    k1, k2, k3, k4, k5, k6 = jax.random.split(key, 6)

    def u(k, shape, fan_in):
        bound = 1.0 / jnp.sqrt(fan_in)
        return jax.random.uniform(k, shape, jnp.float32, -bound, bound)

    return {
        "w1": u(k1, (16, 1, 5, 5), 1 * 5 * 5),
        "b1": u(k2, (16,), 1 * 5 * 5),
        "w2": u(k3, (32, 16, 5, 5), 16 * 5 * 5),
        "b2": u(k4, (32,), 16 * 5 * 5),
        "wf": u(k5, (10, 32 * 4 * 4), 32 * 4 * 4),   # PyTorch Linear weight: (out, in)
        "bf": u(k6, (10,), 32 * 4 * 4),
    }


# ---------------------------------------------------------------------------
# Pure-JAX f32 reference (for sanity check) using lax.conv
# ---------------------------------------------------------------------------

def _reference_forward(params, x):
    dn = jax.lax.conv_dimension_numbers(x.shape, params["w1"].shape,
                                        ("NCHW", "OIHW", "NCHW"))
    out = jax.lax.conv_general_dilated(x, params["w1"], (1, 1), "VALID",
                                       dimension_numbers=dn)
    out = jnp.maximum(out + params["b1"][None, :, None, None], 0.0)
    out = jax.lax.reduce_window(out, -jnp.inf, jax.lax.max,
                                (1, 1, 2, 2), (1, 1, 2, 2), "VALID")
    dn2 = jax.lax.conv_dimension_numbers(out.shape, params["w2"].shape,
                                         ("NCHW", "OIHW", "NCHW"))
    out = jax.lax.conv_general_dilated(out, params["w2"], (1, 1), "VALID",
                                       dimension_numbers=dn2)
    out = jnp.maximum(out + params["b2"][None, :, None, None], 0.0)
    out = jax.lax.reduce_window(out, -jnp.inf, jax.lax.max,
                                (1, 1, 2, 2), (1, 1, 2, 2), "VALID")
    out = out.reshape(out.shape[0], -1)
    return out @ params["wf"].T + params["bf"]


if __name__ == "__main__":
    key = jax.random.PRNGKey(0)
    pkey, xkey = jax.random.split(key)
    params = init_params(pkey)
    kparams = prepare_params(params)     # one-time banded-weight relayout / bf16 cast

    # Input must be 28x28 single-channel so the flattened feature is 32*4*4 = 512.
    x = jax.random.normal(xkey, (2, 1, 28, 28), dtype=jnp.float32)

    out = cnn_model_forward(kparams, x)
    out = jax.block_until_ready(out)
    assert out.shape == (2, 10), out.shape

    ref = _reference_forward(params, x)
    # conv1 runs in f32; conv2/fc use bf16 MXU inputs with f32 accumulate.
    max_diff = jnp.max(jnp.abs(out - ref))
    assert jnp.allclose(out, ref, atol=2.5e-2, rtol=2.5e-2), f"max abs diff {max_diff}"

    print("KERNEL_OK")
</pallas_src>

<mosaic_0001>
module attributes {stable_mosaic.version = 11 : i64} {
  func.func @_fused_cnn_kernel(%arg0: i32, %arg1: memref<28x8x28xf32, #tpu.memory_space<vmem>>, %arg2: memref<140x384xf32, #tpu.memory_space<vmem>>, %arg3: memref<1x384xf32, #tpu.memory_space<vmem>>, %arg4: memref<1920x256xbf16, #tpu.memory_space<vmem>>, %arg5: memref<1x256xf32, #tpu.memory_space<vmem>>, %arg6: memref<1024x128xbf16, #tpu.memory_space<vmem>>, %arg7: memref<1x128xf32, #tpu.memory_space<vmem>>, %arg8: memref<8x128xf32, #tpu.memory_space<vmem>>) attributes {dimension_semantics = [#tpu.dimension_semantics<parallel>], iteration_bounds = array<i64: 1>, scalar_prefetch = 0 : i64, scratch_operands = 0 : i64, tpu.core_type = #tpu.core_type<tc>, window_params = [{transform_indices = @transform_0, window_bounds = array<i64: 28, 8, 28>}, {pipeline_mode = #tpu.pipeline_mode<synchronous>, transform_indices = @transform_1, window_bounds = array<i64: 140, 384>}, {pipeline_mode = #tpu.pipeline_mode<synchronous>, transform_indices = @transform_2, window_bounds = array<i64: 1, 384>}, {pipeline_mode = #tpu.pipeline_mode<synchronous>, transform_indices = @transform_3, window_bounds = array<i64: 1920, 256>}, {pipeline_mode = #tpu.pipeline_mode<synchronous>, transform_indices = @transform_4, window_bounds = array<i64: 1, 256>}, {pipeline_mode = #tpu.pipeline_mode<synchronous>, transform_indices = @transform_5, window_bounds = array<i64: 1024, 128>}, {pipeline_mode = #tpu.pipeline_mode<synchronous>, transform_indices = @transform_6, window_bounds = array<i64: 1, 128>}, {transform_indices = @transform_7, window_bounds = array<i64: 8, 128>}]} {
    %c0 = arith.constant 0 : index
    %c0_0 = arith.constant 0 : index
    %c0_1 = arith.constant 0 : index
    %0 = vector.load %arg1[%c0, %c0_0, %c0_1] : memref<28x8x28xf32, #tpu.memory_space<vmem>>, vector<28x8x28xf32>
    %1 = vector.extract_strided_slice %0 {offsets = [0, 0, 0], sizes = [24, 8, 28], strides = [1, 1, 1]} : vector<28x8x28xf32> to vector<24x8x28xf32>
    %2 = vector.extract_strided_slice %0 {offsets = [1, 0, 0], sizes = [24, 8, 28], strides = [1, 1, 1]} : vector<28x8x28xf32> to vector<24x8x28xf32>
    %3 = vector.extract_strided_slice %0 {offsets = [2, 0, 0], sizes = [24, 8, 28], strides = [1, 1, 1]} : vector<28x8x28xf32> to vector<24x8x28xf32>
    %4 = vector.extract_strided_slice %0 {offsets = [3, 0, 0], sizes = [24, 8, 28], strides = [1, 1, 1]} : vector<28x8x28xf32> to vector<24x8x28xf32>
    %5 = vector.extract_strided_slice %0 {offsets = [4, 0, 0], sizes = [24, 8, 28], strides = [1, 1, 1]} : vector<28x8x28xf32> to vector<24x8x28xf32>
    %6 = tpu.concatenate %1, %2, %3, %4, %5 in 2 : vector<24x8x28xf32>, vector<24x8x28xf32>, vector<24x8x28xf32>, vector<24x8x28xf32>, vector<24x8x28xf32> -> vector<24x8x140xf32>
    %7 = vector.shape_cast %6 : vector<24x8x140xf32> to vector<192x140xf32>
    %c0_2 = arith.constant 0 : index
    %c0_3 = arith.constant 0 : index
    %8 = vector.load %arg2[%c0_2, %c0_3] : memref<140x384xf32, #tpu.memory_space<vmem>>, vector<140x384xf32>
    %cst = arith.constant dense<0.000000e+00> : vector<192x384xf32>
    %9 = tpu.matmul %7, %8, %cst {dimension_numbers = #tpu.dot_dimension_numbers<[1], [0], [0], [1], [0, 0, 1, 1], [], []>} : vector<192x140xf32>, vector<140x384xf32>, vector<192x384xf32> -> vector<192x384xf32>
    %c0_4 = arith.constant 0 : index
    %c0_5 = arith.constant 0 : index
    %10 = vector.load %arg3[%c0_4, %c0_5] : memref<1x384xf32, #tpu.memory_space<vmem>>, vector<1x384xf32>
    %11 = vector.broadcast %10 : vector<1x384xf32> to vector<192x384xf32>
    %12 = arith.addf %9, %11 : vector<192x384xf32>
    %cst_6 = arith.constant 0.000000e+00 : f32
    %13 = vector.broadcast %cst_6 : f32 to vector<192x384xf32>
    %14 = arith.maximumf %12, %13 : vector<192x384xf32>
    %15 = vector.shape_cast %14 : vector<192x384xf32> to vector<12x2x8x384xf32>
    %16 = vector.extract_strided_slice %15 {offsets = [0, 0, 0, 0], sizes = [12, 1, 8, 384], strides = [1, 1, 1, 1]} : vector<12x2x8x384xf32> to vector<12x1x8x384xf32>
    %17 = vector.shape_cast %16 : vector<12x1x8x384xf32> to vector<12x8x384xf32>
    %18 = vector.extract_strided_slice %15 {offsets = [0, 1, 0, 0], sizes = [12, 1, 8, 384], strides = [1, 1, 1, 1]} : vector<12x2x8x384xf32> to vector<12x1x8x384xf32>
    %19 = vector.shape_cast %18 : vector<12x1x8x384xf32> to vector<12x8x384xf32>
    %20 = arith.maximumf %17, %19 : vector<12x8x384xf32>
    %21 = vector.extract_strided_slice %20 {offsets = [0, 0, 16], sizes = [12, 8, 368], strides = [1, 1, 1]} : vector<12x8x384xf32> to vector<12x8x368xf32>
    %22 = vector.extract_strided_slice %20 {offsets = [0, 0, 0], sizes = [12, 8, 16], strides = [1, 1, 1]} : vector<12x8x384xf32> to vector<12x8x16xf32>
    %23 = tpu.concatenate %21, %22 in 2 : vector<12x8x368xf32>, vector<12x8x16xf32> -> vector<12x8x384xf32>
    %24 = arith.maximumf %20, %23 : vector<12x8x384xf32>
    %25 = vector.extract_strided_slice %24 {offsets = [0, 0, 0], sizes = [8, 8, 384], strides = [1, 1, 1]} : vector<12x8x384xf32> to vector<8x8x384xf32>
    %26 = vector.extract_strided_slice %24 {offsets = [1, 0, 0], sizes = [8, 8, 384], strides = [1, 1, 1]} : vector<12x8x384xf32> to vector<8x8x384xf32>
    %27 = vector.extract_strided_slice %24 {offsets = [2, 0, 0], sizes = [8, 8, 384], strides = [1, 1, 1]} : vector<12x8x384xf32> to vector<8x8x384xf32>
    %28 = vector.extract_strided_slice %24 {offsets = [3, 0, 0], sizes = [8, 8, 384], strides = [1, 1, 1]} : vector<12x8x384xf32> to vector<8x8x384xf32>
    %29 = vector.extract_strided_slice %24 {offsets = [4, 0, 0], sizes = [8, 8, 384], strides = [1, 1, 1]} : vector<12x8x384xf32> to vector<8x8x384xf32>
    %30 = tpu.concatenate %25, %26, %27, %28, %29 in 2 : vector<8x8x384xf32>, vector<8x8x384xf32>, vector<8x8x384xf32>, vector<8x8x384xf32>, vector<8x8x384xf32> -> vector<8x8x1920xf32>
    %31 = vector.shape_cast %30 : vector<8x8x1920xf32> to vector<64x1920xf32>
    %32 = arith.truncf %31 : vector<64x1920xf32> to vector<64x1920xbf16>
    %c0_7 = arith.constant 0 : index
    %c0_8 = arith.constant 0 : index
    %33 = vector.load %arg4[%c0_7, %c0_8] : memref<1920x256xbf16, #tpu.memory_space<vmem>>, vector<1920x256xbf16>
    %cst_9 = arith.constant dense<0.000000e+00> : vector<64x256xf32>
    %34 = tpu.matmul %32, %33, %cst_9 {dimension_numbers = #tpu.dot_dimension_numbers<[1], [0], [0], [1], [0, 0, 1, 1], [], []>} : vector<64x1920xbf16>, vector<1920x256xbf16>, vector<64x256xf32> -> vector<64x256xf32>
    %c0_10 = arith.constant 0 : index
    %c0_11 = arith.constant 0 : index
    %35 = vector.load %arg5[%c0_10, %c0_11] : memref<1x256xf32, #tpu.memory_space<vmem>>, vector<1x256xf32>
    %36 = vector.broadcast %35 : vector<1x256xf32> to vector<64x256xf32>
    %37 = arith.addf %34, %36 : vector<64x256xf32>
    %cst_12 = arith.constant 0.000000e+00 : f32
    %38 = vector.broadcast %cst_12 : f32 to vector<64x256xf32>
    %39 = arith.maximumf %37, %38 : vector<64x256xf32>
    %40 = vector.shape_cast %39 : vector<64x256xf32> to vector<4x2x8x256xf32>
    %41 = vector.extract_strided_slice %40 {offsets = [0, 0, 0, 0], sizes = [4, 1, 8, 256], strides = [1, 1, 1, 1]} : vector<4x2x8x256xf32> to vector<4x1x8x256xf32>
    %42 = vector.shape_cast %41 : vector<4x1x8x256xf32> to vector<4x8x256xf32>
    %43 = vector.extract_strided_slice %40 {offsets = [0, 1, 0, 0], sizes = [4, 1, 8, 256], strides = [1, 1, 1, 1]} : vector<4x2x8x256xf32> to vector<4x1x8x256xf32>
    %44 = vector.shape_cast %43 : vector<4x1x8x256xf32> to vector<4x8x256xf32>
    %45 = arith.maximumf %42, %44 : vector<4x8x256xf32>
    %46 = vector.extract_strided_slice %45 {offsets = [0, 0, 32], sizes = [4, 8, 224], strides = [1, 1, 1]} : vector<4x8x256xf32> to vector<4x8x224xf32>
    %47 = vector.extract_strided_slice %45 {offsets = [0, 0, 0], sizes = [4, 8, 32], strides = [1, 1, 1]} : vector<4x8x256xf32> to vector<4x8x32xf32>
    %48 = tpu.concatenate %46, %47 in 2 : vector<4x8x224xf32>, vector<4x8x32xf32> -> vector<4x8x256xf32>
    %49 = arith.maximumf %45, %48 : vector<4x8x256xf32>
    %50 = vector.extract_strided_slice %49 {offsets = [0, 0, 0], sizes = [1, 8, 256], strides = [1, 1, 1]} : vector<4x8x256xf32> to vector<1x8x256xf32>
    %51 = vector.shape_cast %50 : vector<1x8x256xf32> to vector<8x256xf32>
    %52 = vector.extract_strided_slice %49 {offsets = [1, 0, 0], sizes = [1, 8, 256], strides = [1, 1, 1]} : vector<4x8x256xf32> to vector<1x8x256xf32>
    %53 = vector.shape_cast %52 : vector<1x8x256xf32> to vector<8x256xf32>
    %54 = vector.extract_strided_slice %49 {offsets = [2, 0, 0], sizes = [1, 8, 256], strides = [1, 1, 1]} : vector<4x8x256xf32> to vector<1x8x256xf32>
    %55 = vector.shape_cast %54 : vector<1x8x256xf32> to vector<8x256xf32>
    %56 = vector.extract_strided_slice %49 {offsets = [3, 0, 0], sizes = [1, 8, 256], strides = [1, 1, 1]} : vector<4x8x256xf32> to vector<1x8x256xf32>
    %57 = vector.shape_cast %56 : vector<1x8x256xf32> to vector<8x256xf32>
    %58 = tpu.concatenate %51, %53, %55, %57 in 1 : vector<8x256xf32>, vector<8x256xf32>, vector<8x256xf32>, vector<8x256xf32> -> vector<8x1024xf32>
    %59 = arith.truncf %58 : vector<8x1024xf32> to vector<8x1024xbf16>
    %c0_13 = arith.constant 0 : index
    %c0_14 = arith.constant 0 : index
    %60 = vector.load %arg6[%c0_13, %c0_14] : memref<1024x128xbf16, #tpu.memory_space<vmem>>, vector<1024x128xbf16>
    %cst_15 = arith.constant dense<0.000000e+00> : vector<8x128xf32>
    %61 = tpu.matmul %59, %60, %cst_15 {dimension_numbers = #tpu.dot_dimension_numbers<[1], [0], [0], [1], [0, 0, 1, 1], [], []>} : vector<8x1024xbf16>, vector<1024x128xbf16>, vector<8x128xf32> -> vector<8x128xf32>
    %c0_16 = arith.constant 0 : index
    %c0_17 = arith.constant 0 : index
    %62 = vector.load %arg7[%c0_16, %c0_17] : memref<1x128xf32, #tpu.memory_space<vmem>>, vector<1x128xf32>
    %63 = vector.broadcast %62 : vector<1x128xf32> to vector<8x128xf32>
    %64 = arith.addf %61, %63 : vector<8x128xf32>
    %c0_18 = arith.constant 0 : index
    %c0_19 = arith.constant 0 : index
    %65 = vector.load %arg8[%c0_18, %c0_19] : memref<8x128xf32, #tpu.memory_space<vmem>>, vector<8x128xf32>
    tpu.vector_store %arg8[%c0_18, %c0_19], %64 {strides = array<i32>} : memref<8x128xf32, #tpu.memory_space<vmem>>, vector<8x128xf32>,
    return
  }
  func.func @transform_0(%arg0: i32) -> (i32, i32, i32) {
    %c0_i32 = arith.constant 0 : i32
    %c0_i32_0 = arith.constant 0 : i32
    %c0_i32_1 = arith.constant 0 : i32
    return %c0_i32, %arg0, %c0_i32_0 : i32, i32, i32
  }
  func.func @transform_1(%arg0: i32) -> (i32, i32) {
    %c0_i32 = arith.constant 0 : i32
    %c0_i32_0 = arith.constant 0 : i32
    %c0_i32_1 = arith.constant 0 : i32
    return %c0_i32, %c0_i32_0 : i32, i32
  }
  func.func @transform_2(%arg0: i32) -> (i32, i32) {
    %c0_i32 = arith.constant 0 : i32
    %c0_i32_0 = arith.constant 0 : i32
    %c0_i32_1 = arith.constant 0 : i32
    return %c0_i32, %c0_i32_0 : i32, i32
  }
  func.func @transform_3(%arg0: i32) -> (i32, i32) {
    %c0_i32 = arith.constant 0 : i32
    %c0_i32_0 = arith.constant 0 : i32
    %c0_i32_1 = arith.constant 0 : i32
    return %c0_i32, %c0_i32_0 : i32, i32
  }
  func.func @transform_4(%arg0: i32) -> (i32, i32) {
    %c0_i32 = arith.constant 0 : i32
    %c0_i32_0 = arith.constant 0 : i32
    %c0_i32_1 = arith.constant 0 : i32
    return %c0_i32, %c0_i32_0 : i32, i32
  }
  func.func @transform_5(%arg0: i32) -> (i32, i32) {
    %c0_i32 = arith.constant 0 : i32
    %c0_i32_0 = arith.constant 0 : i32
    %c0_i32_1 = arith.constant 0 : i32
    return %c0_i32, %c0_i32_0 : i32, i32
  }
  func.func @transform_6(%arg0: i32) -> (i32, i32) {
    %c0_i32 = arith.constant 0 : i32
    %c0_i32_0 = arith.constant 0 : i32
    %c0_i32_1 = arith.constant 0 : i32
    return %c0_i32, %c0_i32_0 : i32, i32
  }
  func.func @transform_7(%arg0: i32) -> (i32, i32) {
    %c0_i32 = arith.constant 0 : i32
    %c0_i32_0 = arith.constant 0 : i32
    return %arg0, %c0_i32 : i32, i32
  }
}

</mosaic_0001>

<llo_original>
// kernel: cnn_model_forward.1
$region0: #{cnn_model_forward.1}
  #allocation0 [shape = 'u32[]', space=smem, size = 0x4, offset = 0x4, fixed_abs, tag = 'smem constant byte address 0x4 - core index']
  #allocation1 [shape = 'u32[144,128]{1,0:T(1,128)}', space=vmem, size = 0x12000, scoped, tag = 'internal scratch']
  %s0 = inlined_call_operand.vmem [shape: f32[28,8,28], index: 0, kind: input, shape index: {}]
  %s1 = inlined_call_operand.hbm [shape: f32[140,384], index: 1, kind: input, shape index: {}]
  %s2 = inlined_call_operand.vmem [shape: f32[1,384], index: 2, kind: input, shape index: {}]
  %s3 = inlined_call_operand.hbm [shape: bf16[1920,256], index: 3, kind: input, shape index: {}]
  %s4 = inlined_call_operand.vmem [shape: f32[1,256], index: 4, kind: input, shape index: {}]
  %s5 = inlined_call_operand.hbm [shape: bf16[1024,128], index: 5, kind: input, shape index: {}]
  %s6 = inlined_call_operand.vmem [shape: f32[1,128], index: 6, kind: input, shape index: {}]
  %s7 = inlined_call_operand.vmem [shape: f32[8,128], index: 7, kind: output, shape index: {}]
  %s8 = sld [smem:[#allocation0]]
  $region50: #{cnn_model_forward.1} parent=0
    _
  %s10 = ssub.s32 1, %s8
  %s11 = scalar_select 0, %s10, %s8
  $region1: #{cnn_model_forward.1} parent=0
    #allocation2 [shape = 'u8[221184]{0}', space=vmem, size = 0x36000, scoped, tag = 'input window, operand 1, single buffered']
    #allocation3 [shape = 's32[1]{0}', space=sflag, size = 0x4, scoped, tag = 'scoped memory for cnn_model_forward.1']
    #allocation4 [shape = 'u8[983040]{0}', space=vmem, size = 0xf0000, scoped, tag = 'input window, operand 3, single buffered']
    #allocation5 [shape = 's32[1]{0}', space=sflag, size = 0x4, scoped, tag = 'scoped memory for cnn_model_forward.1']
    #allocation6 [shape = 'u8[262144]{0}', space=vmem, size = 0x40000, scoped, tag = 'input window, operand 5, single buffered']
    %12 = vsyncpa [#allocation3], 0
    %13 = vsyncpa [#allocation5], 0
    // Predicated region
    $region2: #{cnn_model_forward.1} parent=1 // pred_check
      _
    $region3: #{cnn_model_forward.1} parent=1 // pred_check_branch
      %15 = sbr.rel (0) target = $region5
    $region4: #{cnn_model_forward.1} parent=1 // pred_region
      _
    $region5: #{cnn_model_forward.1} parent=1 // pred_fallthru
      _
    // Predicated region
    $region6: #{cnn_model_forward.1} parent=1 // pred_check
      _
    $region7: #{cnn_model_forward.1} parent=1 // pred_check_branch
      %17 = sbr.rel (0) target = $region9
    $region8: #{cnn_model_forward.1} parent=1 // pred_region
      %s19 = ssub.s32 6912, 6912
      %20 = vsyncadd [#allocation3], %s19
      %s21 = sshll.u32 [#allocation2], 4
      %s22 = int_to_ptr.vmem [resolvable:$true] %s21
      %27 = dma.hbm_to_vmem [thread:$0]  %s1, 6912, %s22, [#allocation3], 384, 384, 24
    $region9: #{cnn_model_forward.1} parent=1 // pred_fallthru
      _
    // Predicated region
    $region10: #{cnn_model_forward.1} parent=1 // pred_check
      _
    $region11: #{cnn_model_forward.1} parent=1 // pred_check_branch
      %29 = sbr.rel (0) target = $region13
    $region12: #{cnn_model_forward.1} parent=1 // pred_region
      _
    $region13: #{cnn_model_forward.1} parent=1 // pred_fallthru
      _
    // Predicated region
    $region14: #{cnn_model_forward.1} parent=1 // pred_check
      _
    $region15: #{cnn_model_forward.1} parent=1 // pred_check_branch
      %31 = sbr.rel (0) target = $region17
    $region16: #{cnn_model_forward.1} parent=1 // pred_region
      %s33 = ssub.s32 30720, 30720
      %34 = vsyncadd [#allocation5], %s33
      %s35 = sshll.u32 [#allocation4], 4
      %s36 = int_to_ptr.vmem [resolvable:$true] %s35
      %41 = dma.hbm_to_vmem [thread:$0]  %s3, 30720, %s36, [#allocation5], 128, 128, 8
    $region17: #{cnn_model_forward.1} parent=1 // pred_fallthru
      _
    // Predicated region
    $region18: #{cnn_model_forward.1} parent=1 // pred_check
      _
    $region19: #{cnn_model_forward.1} parent=1 // pred_check_branch
      %43 = sbr.rel (0) target = $region21
    $region20: #{cnn_model_forward.1} parent=1 // pred_region
      _
    $region21: #{cnn_model_forward.1} parent=1 // pred_fallthru
      _
    // Predicated region
    $region22: #{cnn_model_forward.1} parent=1 // pred_check
      _
    $region23: #{cnn_model_forward.1} parent=1 // pred_check_branch
      %45 = sbr.rel (0) target = $region25
    $region24: #{cnn_model_forward.1} parent=1 // pred_region
      %s47 = ssub.s32 8192, 8192
      %48 = vsyncadd [#allocation5], %s47
      %s49 = sshll.u32 [#allocation6], 4
      %s50 = int_to_ptr.vmem [resolvable:$true] %s49
      %55 = dma.hbm_to_vmem [thread:$0]  %s5, 8192, %s50, [#allocation5], 64, 64, 4
    $region25: #{cnn_model_forward.1} parent=1 // pred_fallthru
      _
    // Predicated region
    $region26: #{cnn_model_forward.1} parent=1 // pred_check
      _
    $region27: #{cnn_model_forward.1} parent=1 // pred_check_branch
      %57 = sbr.rel (0) target = $region29
    $region28: #{cnn_model_forward.1} parent=1 // pred_region
      _
    $region29: #{cnn_model_forward.1} parent=1 // pred_fallthru
      _
    // Predicated region
    $region30: #{cnn_model_forward.1} parent=1 // pred_check
      _
    $region31: #{cnn_model_forward.1} parent=1 // pred_check_branch
      %59 = sbr.rel (0) target = $region33
    $region32: #{cnn_model_forward.1} parent=1 // pred_region
      %60 = dma.done [#allocation3], 6912
    $region33: #{cnn_model_forward.1} parent=1 // pred_fallthru
      _
    // Predicated region
    $region34: #{cnn_model_forward.1} parent=1 // pred_check
      _
    $region35: #{cnn_model_forward.1} parent=1 // pred_check_branch
      %62 = sbr.rel (0) target = $region37
    $region36: #{cnn_model_forward.1} parent=1 // pred_region
      %63 = dma.done [#allocation5], 30720
    $region37: #{cnn_model_forward.1} parent=1 // pred_fallthru
      _
    // Predicated region
    $region38: #{cnn_model_forward.1} parent=1 // pred_check
      _
    $region39: #{cnn_model_forward.1} parent=1 // pred_check_branch
      %65 = sbr.rel (0) target = $region41
    $region40: #{cnn_model_forward.1} parent=1 // pred_region
      %66 = dma.done [#allocation5], 8192
    $region41: #{cnn_model_forward.1} parent=1 // pred_fallthru
      _
    %v68 = vld [vmem:[%s0] sm:$0xff]
    %v69 = vld [vmem:[%s0 + $0x8] sm:$0xff]
    %v70 = vld [vmem:[%s0 + $0x10] sm:$0xff]
    %v71 = vld [vmem:[%s0 + $0x18] sm:$0xff]
    %v72 = vld [vmem:[%s0 + $0x20] sm:$0xff]
    %v73 = vld [vmem:[%s0 + $0x28] sm:$0xff]
    %v74 = vld [vmem:[%s0 + $0x30] sm:$0xff]
    %v75 = vld [vmem:[%s0 + $0x38] sm:$0xff]
    %v76 = vld [vmem:[%s0 + $0x40] sm:$0xff]
    %v77 = vld [vmem:[%s0 + $0x48] sm:$0xff]
    %v78 = vld [vmem:[%s0 + $0x50] sm:$0xff]
    %v79 = vld [vmem:[%s0 + $0x58] sm:$0xff]
    %v80 = vld [vmem:[%s0 + $0x60] sm:$0xff]
    %v81 = vld [vmem:[%s0 + $0x68] sm:$0xff]
    %v82 = vld [vmem:[%s0 + $0x70] sm:$0xff]
    %v83 = vld [vmem:[%s0 + $0x78] sm:$0xff]
    %v84 = vld [vmem:[%s0 + $0x80] sm:$0xff]
    %v85 = vld [vmem:[%s0 + $0x88] sm:$0xff]
    %v86 = vld [vmem:[%s0 + $0x90] sm:$0xff]
    %v87 = vld [vmem:[%s0 + $0x98] sm:$0xff]
    %v88 = vld [vmem:[%s0 + $0xa0] sm:$0xff]
    %v89 = vld [vmem:[%s0 + $0xa8] sm:$0xff]
    %v90 = vld [vmem:[%s0 + $0xb0] sm:$0xff]
    %v91 = vld [vmem:[%s0 + $0xb8] sm:$0xff]
    %v92 = vld [vmem:[%s0 + $0xc0] sm:$0xff]
    %v93 = vld [vmem:[%s0 + $0xc8] sm:$0xff]
    %v94 = vld [vmem:[%s0 + $0xd0] sm:$0xff]
    %v95 = vld [vmem:[%s0 + $0xd8] sm:$0xff]
    %120 = vrot.lane.b32.xlu0 %v69, 28
    %v121 = vpop.permute.xlu0 %120
    %122 = vrot.lane.b32.xlu0 %v70, 28
    %v123 = vpop.permute.xlu0 %122
    %124 = vrot.lane.b32.xlu0 %v71, 28
    %v125 = vpop.permute.xlu0 %124
    %126 = vrot.lane.b32.xlu0 %v72, 28
    %v127 = vpop.permute.xlu0 %126
    %128 = vrot.lane.b32.xlu0 %v73, 28
    %v129 = vpop.permute.xlu0 %128
    %130 = vrot.lane.b32.xlu0 %v74, 28
    %v131 = vpop.permute.xlu0 %130
    %132 = vrot.lane.b32.xlu0 %v75, 28
    %v133 = vpop.permute.xlu0 %132
    %134 = vrot.lane.b32.xlu0 %v76, 28
    %v135 = vpop.permute.xlu0 %134
    %136 = vrot.lane.b32.xlu0 %v77, 28
    %v137 = vpop.permute.xlu0 %136
    %138 = vrot.lane.b32.xlu0 %v78, 28
    %v139 = vpop.permute.xlu0 %138
    %140 = vrot.lane.b32.xlu0 %v79, 28
    %v141 = vpop.permute.xlu0 %140
    %142 = vrot.lane.b32.xlu0 %v80, 28
    %v143 = vpop.permute.xlu0 %142
    %144 = vrot.lane.b32.xlu0 %v81, 28
    %v145 = vpop.permute.xlu0 %144
    %146 = vrot.lane.b32.xlu0 %v82, 28
    %v147 = vpop.permute.xlu0 %146
    %148 = vrot.lane.b32.xlu0 %v83, 28
    %v149 = vpop.permute.xlu0 %148
    %150 = vrot.lane.b32.xlu0 %v84, 28
    %v151 = vpop.permute.xlu0 %150
    %152 = vrot.lane.b32.xlu0 %v85, 28
    %v153 = vpop.permute.xlu0 %152
    %154 = vrot.lane.b32.xlu0 %v86, 28
    %v155 = vpop.permute.xlu0 %154
    %156 = vrot.lane.b32.xlu0 %v87, 28
    %v157 = vpop.permute.xlu0 %156
    %158 = vrot.lane.b32.xlu0 %v88, 28
    %v159 = vpop.permute.xlu0 %158
    %160 = vrot.lane.b32.xlu0 %v89, 28
    %v161 = vpop.permute.xlu0 %160
    %162 = vrot.lane.b32.xlu0 %v90, 28
    %v163 = vpop.permute.xlu0 %162
    %164 = vrot.lane.b32.xlu0 %v91, 28
    %v165 = vpop.permute.xlu0 %164
    %166 = vrot.lane.b32.xlu0 %v92, 28
    %v167 = vpop.permute.xlu0 %166
    %193 = vrot.lane.b32.xlu0 %v70, 56
    %v194 = vpop.permute.xlu0 %193
    %195 = vrot.lane.b32.xlu0 %v71, 56
    %v196 = vpop.permute.xlu0 %195
    %197 = vrot.lane.b32.xlu0 %v72, 56
    %v198 = vpop.permute.xlu0 %197
    %199 = vrot.lane.b32.xlu0 %v73, 56
    %v200 = vpop.permute.xlu0 %199
    %201 = vrot.lane.b32.xlu0 %v74, 56
    %v202 = vpop.permute.xlu0 %201
    %203 = vrot.lane.b32.xlu0 %v75, 56
    %v204 = vpop.permute.xlu0 %203
    %205 = vrot.lane.b32.xlu0 %v76, 56
    %v206 = vpop.permute.xlu0 %205
    %207 = vrot.lane.b32.xlu0 %v77, 56
    %v208 = vpop.permute.xlu0 %207
    %209 = vrot.lane.b32.xlu0 %v78, 56
    %v210 = vpop.permute.xlu0 %209
    %211 = vrot.lane.b32.xlu0 %v79, 56
    %v212 = vpop.permute.xlu0 %211
    %213 = vrot.lane.b32.xlu0 %v80, 56
    %v214 = vpop.permute.xlu0 %213
    %215 = vrot.lane.b32.xlu0 %v81, 56
    %v216 = vpop.permute.xlu0 %215
    %217 = vrot.lane.b32.xlu0 %v82, 56
    %v218 = vpop.permute.xlu0 %217
    %219 = vrot.lane.b32.xlu0 %v83, 56
    %v220 = vpop.permute.xlu0 %219
    %221 = vrot.lane.b32.xlu0 %v84, 56
    %v222 = vpop.permute.xlu0 %221
    %223 = vrot.lane.b32.xlu0 %v85, 56
    %v224 = vpop.permute.xlu0 %223
    %225 = vrot.lane.b32.xlu0 %v86, 56
    %v226 = vpop.permute.xlu0 %225
    %227 = vrot.lane.b32.xlu0 %v87, 56
    %v228 = vpop.permute.xlu0 %227
    %229 = vrot.lane.b32.xlu0 %v88, 56
    %v230 = vpop.permute.xlu0 %229
    %231 = vrot.lane.b32.xlu0 %v89, 56
    %v232 = vpop.permute.xlu0 %231
    %233 = vrot.lane.b32.xlu0 %v90, 56
    %v234 = vpop.permute.xlu0 %233
    %235 = vrot.lane.b32.xlu0 %v91, 56
    %v236 = vpop.permute.xlu0 %235
    %237 = vrot.lane.b32.xlu0 %v92, 56
    %v238 = vpop.permute.xlu0 %237
    %239 = vrot.lane.b32.xlu0 %v93, 56
    %v240 = vpop.permute.xlu0 %239
    %266 = vrot.lane.b32.xlu0 %v71, 84
    %v267 = vpop.permute.xlu0 %266
    %268 = vrot.lane.b32.xlu0 %v72, 84
    %v269 = vpop.permute.xlu0 %268
    %270 = vrot.lane.b32.xlu0 %v73, 84
    %v271 = vpop.permute.xlu0 %270
    %272 = vrot.lane.b32.xlu0 %v74, 84
    %v273 = vpop.permute.xlu0 %272
    %274 = vrot.lane.b32.xlu0 %v75, 84
    %v275 = vpop.permute.xlu0 %274
    %276 = vrot.lane.b32.xlu0 %v76, 84
    %v277 = vpop.permute.xlu0 %276
    %278 = vrot.lane.b32.xlu0 %v77, 84
    %v279 = vpop.permute.xlu0 %278
    %280 = vrot.lane.b32.xlu0 %v78, 84
    %v281 = vpop.permute.xlu0 %280
    %282 = vrot.lane.b32.xlu0 %v79, 84
    %v283 = vpop.permute.xlu0 %282
    %284 = vrot.lane.b32.xlu0 %v80, 84
    %v285 = vpop.permute.xlu0 %284
    %286 = vrot.lane.b32.xlu0 %v81, 84
    %v287 = vpop.permute.xlu0 %286
    %288 = vrot.lane.b32.xlu0 %v82, 84
    %v289 = vpop.permute.xlu0 %288
    %290 = vrot.lane.b32.xlu0 %v83, 84
    %v291 = vpop.permute.xlu0 %290
    %292 = vrot.lane.b32.xlu0 %v84, 84
    %v293 = vpop.permute.xlu0 %292
    %294 = vrot.lane.b32.xlu0 %v85, 84
    %v295 = vpop.permute.xlu0 %294
    %296 = vrot.lane.b32.xlu0 %v86, 84
    %v297 = vpop.permute.xlu0 %296
    %298 = vrot.lane.b32.xlu0 %v87, 84
    %v299 = vpop.permute.xlu0 %298
    %300 = vrot.lane.b32.xlu0 %v88, 84
    %v301 = vpop.permute.xlu0 %300
    %302 = vrot.lane.b32.xlu0 %v89, 84
    %v303 = vpop.permute.xlu0 %302
    %304 = vrot.lane.b32.xlu0 %v90, 84
    %v305 = vpop.permute.xlu0 %304
    %306 = vrot.lane.b32.xlu0 %v91, 84
    %v307 = vpop.permute.xlu0 %306
    %308 = vrot.lane.b32.xlu0 %v92, 84
    %v309 = vpop.permute.xlu0 %308
    %310 = vrot.lane.b32.xlu0 %v93, 84
    %v311 = vpop.permute.xlu0 %310
    %312 = vrot.lane.b32.xlu0 %v94, 84
    %v313 = vpop.permute.xlu0 %312
    %339 = vrot.lane.b32.xlu0 %v72, 112
    %v340 = vpop.permute.xlu0 %339
    %341 = vrot.lane.b32.xlu0 %v73, 112
    %v342 = vpop.permute.xlu0 %341
    %343 = vrot.lane.b32.xlu0 %v74, 112
    %v344 = vpop.permute.xlu0 %343
    %345 = vrot.lane.b32.xlu0 %v75, 112
    %v346 = vpop.permute.xlu0 %345
    %347 = vrot.lane.b32.xlu0 %v76, 112
    %v348 = vpop.permute.xlu0 %347
    %349 = vrot.lane.b32.xlu0 %v77, 112
    %v350 = vpop.permute.xlu0 %349
    %351 = vrot.lane.b32.xlu0 %v78, 112
    %v352 = vpop.permute.xlu0 %351
    %353 = vrot.lane.b32.xlu0 %v79, 112
    %v354 = vpop.permute.xlu0 %353
    %355 = vrot.lane.b32.xlu0 %v80, 112
    %v356 = vpop.permute.xlu0 %355
    %357 = vrot.lane.b32.xlu0 %v81, 112
    %v358 = vpop.permute.xlu0 %357
    %359 = vrot.lane.b32.xlu0 %v82, 112
    %v360 = vpop.permute.xlu0 %359
    %361 = vrot.lane.b32.xlu0 %v83, 112
    %v362 = vpop.permute.xlu0 %361
    %363 = vrot.lane.b32.xlu0 %v84, 112
    %v364 = vpop.permute.xlu0 %363
    %365 = vrot.lane.b32.xlu0 %v85, 112
    %v366 = vpop.permute.xlu0 %365
    %367 = vrot.lane.b32.xlu0 %v86, 112
    %v368 = vpop.permute.xlu0 %367
    %369 = vrot.lane.b32.xlu0 %v87, 112
    %v370 = vpop.permute.xlu0 %369
    %371 = vrot.lane.b32.xlu0 %v88, 112
    %v372 = vpop.permute.xlu0 %371
    %373 = vrot.lane.b32.xlu0 %v89, 112
    %v374 = vpop.permute.xlu0 %373
    %375 = vrot.lane.b32.xlu0 %v90, 112
    %v376 = vpop.permute.xlu0 %375
    %377 = vrot.lane.b32.xlu0 %v91, 112
    %v378 = vpop.permute.xlu0 %377
    %379 = vrot.lane.b32.xlu0 %v92, 112
    %v380 = vpop.permute.xlu0 %379
    %381 = vrot.lane.b32.xlu0 %v93, 112
    %v382 = vpop.permute.xlu0 %381
    %383 = vrot.lane.b32.xlu0 %v94, 112
    %v384 = vpop.permute.xlu0 %383
    %385 = vrot.lane.b32.xlu0 %v95, 112
    %v386 = vpop.permute.xlu0 %385
    %vm411 = vcmask 228352
    %v412 = vsel %vm411, %v68, %v121
    %v413 = vsel %vm411, %v69, %v123
    %v414 = vsel %vm411, %v70, %v125
    %v415 = vsel %vm411, %v71, %v127
    %v416 = vsel %vm411, %v72, %v129
    %v417 = vsel %vm411, %v73, %v131
    %v418 = vsel %vm411, %v74, %v133
    %v419 = vsel %vm411, %v75, %v135
    %v420 = vsel %vm411, %v76, %v137
    %v421 = vsel %vm411, %v77, %v139
    %v422 = vsel %vm411, %v78, %v141
    %v423 = vsel %vm411, %v79, %v143
    %v424 = vsel %vm411, %v80, %v145
    %v425 = vsel %vm411, %v81, %v147
    %v426 = vsel %vm411, %v82, %v149
    %v427 = vsel %vm411, %v83, %v151
    %v428 = vsel %vm411, %v84, %v153
    %v429 = vsel %vm411, %v85, %v155
    %v430 = vsel %vm411, %v86, %v157
    %v431 = vsel %vm411, %v87, %v159
    %v432 = vsel %vm411, %v88, %v161
    %v433 = vsel %vm411, %v89, %v163
    %v434 = vsel %vm411, %v90, %v165
    %v435 = vsel %vm411, %v91, %v167
    %vm436 = vcmask 457728
    %v437 = vsel %vm436, %v412, %v194
    %v438 = vsel %vm436, %v413, %v196
    %v439 = vsel %vm436, %v414, %v198
    %v440 = vsel %vm436, %v415, %v200
    %v441 = vsel %vm436, %v416, %v202
    %v442 = vsel %vm436, %v417, %v204
    %v443 = vsel %vm436, %v418, %v206
    %v444 = vsel %vm436, %v419, %v208
    %v445 = vsel %vm436, %v420, %v210
    %v446 = vsel %vm436, %v421, %v212
    %v447 = vsel %vm436, %v422, %v214
    %v448 = vsel %vm436, %v423, %v216
    %v449 = vsel %vm436, %v424, %v218
    %v450 = vsel %vm436, %v425, %v220
    %v451 = vsel %vm436, %v426, %v222
    %v452 = vsel %vm436, %v427, %v224
    %v453 = vsel %vm436, %v428, %v226
    %v454 = vsel %vm436, %v429, %v228
    %v455 = vsel %vm436, %v430, %v230
    %v456 = vsel %vm436, %v431, %v232
    %v457 = vsel %vm436, %v432, %v234
    %v458 = vsel %vm436, %v433, %v236
    %v459 = vsel %vm436, %v434, %v238
    %v460 = vsel %vm436, %v435, %v240
    %vm461 = vcmask 687104
    %v462 = vsel %vm461, %v437, %v267
    %v463 = vsel %vm461, %v438, %v269
    %v464 = vsel %vm461, %v439, %v271
    %v465 = vsel %vm461, %v440, %v273
    %v466 = vsel %vm461, %v441, %v275
    %v467 = vsel %vm461, %v442, %v277
    %v468 = vsel %vm461, %v443, %v279
    %v469 = vsel %vm461, %v444, %v281
    %v470 = vsel %vm461, %v445, %v283
    %v471 = vsel %vm461, %v446, %v285
    %v472 = vsel %vm461, %v447, %v287
    %v473 = vsel %vm461, %v448, %v289
    %v474 = vsel %vm461, %v449, %v291
    %v475 = vsel %vm461, %v450, %v293
    %v476 = vsel %vm461, %v451, %v295
    %v477 = vsel %vm461, %v452, %v297
    %v478 = vsel %vm461, %v453, %v299
    %v479 = vsel %vm461, %v454, %v301
    %v480 = vsel %vm461, %v455, %v303
    %v481 = vsel %vm461, %v456, %v305
    %v482 = vsel %vm461, %v457, %v307
    %v483 = vsel %vm461, %v458, %v309
    %v484 = vsel %vm461, %v459, %v311
    %v485 = vsel %vm461, %v460, %v313
    %vm486 = vcmask 916480
    %v487 = vsel %vm486, %v462, %v340
    %v488 = vsel %vm486, %v463, %v342
    %v489 = vsel %vm486, %v464, %v344
    %v490 = vsel %vm486, %v465, %v346
    %v491 = vsel %vm486, %v466, %v348
    %v492 = vsel %vm486, %v467, %v350
    %v493 = vsel %vm486, %v468, %v352
    %v494 = vsel %vm486, %v469, %v354
    %v495 = vsel %vm486, %v470, %v356
    %v496 = vsel %vm486, %v471, %v358
    %v497 = vsel %vm486, %v472, %v360
    %v498 = vsel %vm486, %v473, %v362
    %v499 = vsel %vm486, %v474, %v364
    %v500 = vsel %vm486, %v475, %v366
    %v501 = vsel %vm486, %v476, %v368
    %v502 = vsel %vm486, %v477, %v370
    %v503 = vsel %vm486, %v478, %v372
    %v504 = vsel %vm486, %v479, %v374
    %v505 = vsel %vm486, %v480, %v376
    %v506 = vsel %vm486, %v481, %v378
    %v507 = vsel %vm486, %v482, %v380
    %v508 = vsel %vm486, %v483, %v382
    %v509 = vsel %vm486, %v484, %v384
    %v510 = vsel %vm486, %v485, %v386
    %v511 = vld [vmem:[#allocation2] sm:$0xff]
    %v512 = vld [vmem:[#allocation2 + $0x8] sm:$0xff]
    %v513 = vld [vmem:[#allocation2 + $0x10] sm:$0xff]
    %v514 = vld [vmem:[#allocation2 + $0x18] sm:$0xff]
    %v515 = vld [vmem:[#allocation2 + $0x20] sm:$0xff]
    %v516 = vld [vmem:[#allocation2 + $0x28] sm:$0xff]
    %v517 = vld [vmem:[#allocation2 + $0x30] sm:$0xff]
    %v518 = vld [vmem:[#allocation2 + $0x38] sm:$0xff]
    %v519 = vld [vmem:[#allocation2 + $0x40] sm:$0xff]
    %v520 = vld [vmem:[#allocation2 + $0x48] sm:$0xff]
    %v521 = vld [vmem:[#allocation2 + $0x50] sm:$0xff]
    %v522 = vld [vmem:[#allocation2 + $0x58] sm:$0xff]
    %v523 = vld [vmem:[#allocation2 + $0x60] sm:$0xff]
    %v524 = vld [vmem:[#allocation2 + $0x68] sm:$0xff]
    %v525 = vld [vmem:[#allocation2 + $0x70] sm:$0xff]
    %v526 = vld [vmem:[#allocation2 + $0x78] sm:$0xff]
    %v527 = vld [vmem:[#allocation2 + $0x80] sm:$0xff]
    %v528 = vld [vmem:[#allocation2 + $0x88] sm:$0xff]
    %v529 = vld [vmem:[#allocation2 + $0x90] sm:$0xff]
    %v530 = vld [vmem:[#allocation2 + $0x98] sm:$0xff]
    %v531 = vld [vmem:[#allocation2 + $0xa0] sm:$0xff]
    %v532 = vld [vmem:[#allocation2 + $0xa8] sm:$0xff]
    %v533 = vld [vmem:[#allocation2 + $0xb0] sm:$0xff]
    %v534 = vld [vmem:[#allocation2 + $0xb8] sm:$0xff]
    %v535 = vld [vmem:[#allocation2 + $0xc0] sm:$0xff]
    %v536 = vld [vmem:[#allocation2 + $0xc8] sm:$0xff]
    %v537 = vld [vmem:[#allocation2 + $0xd0] sm:$0xff]
    %v538 = vld [vmem:[#allocation2 + $0xd8] sm:$0xff]
    %v539 = vld [vmem:[#allocation2 + $0xe0] sm:$0xff]
    %v540 = vld [vmem:[#allocation2 + $0xe8] sm:$0xff]
    %v541 = vld [vmem:[#allocation2 + $0xf0] sm:$0xff]
    %v542 = vld [vmem:[#allocation2 + $0xf8] sm:$0xff]
    %v543 = vld [vmem:[#allocation2 + $0x100] sm:$0xff]
    %v544 = vld [vmem:[#allocation2 + $0x108] sm:$0xff]
    %v545 = vld [vmem:[#allocation2 + $0x110] sm:$0xff]
    %v546 = vld [vmem:[#allocation2 + $0x118] sm:$0xff]
    %v547 = vld [vmem:[#allocation2 + $0x120] sm:$0xff]
    %v548 = vld [vmem:[#allocation2 + $0x128] sm:$0xff]
    %v549 = vld [vmem:[#allocation2 + $0x130] sm:$0xff]
    %v550 = vld [vmem:[#allocation2 + $0x138] sm:$0xff]
    %v551 = vld [vmem:[#allocation2 + $0x140] sm:$0xff]
    %v552 = vld [vmem:[#allocation2 + $0x148] sm:$0xff]
    %v553 = vld [vmem:[#allocation2 + $0x150] sm:$0xff]
    %v554 = vld [vmem:[#allocation2 + $0x158] sm:$0xff]
    %v555 = vld [vmem:[#allocation2 + $0x160] sm:$0xff]
    %v556 = vld [vmem:[#allocation2 + $0x168] sm:$0xff]
    %v557 = vld [vmem:[#allocation2 + $0x170] sm:$0xff]
    %v558 = vld [vmem:[#allocation2 + $0x178] sm:$0xff]
    %v559 = vld [vmem:[#allocation2 + $0x180] sm:$0xff]
    %v560 = vld [vmem:[#allocation2 + $0x188] sm:$0xff]
    %v561 = vld [vmem:[#allocation2 + $0x190] sm:$0xff]
    %v562 = vld [vmem:[#allocation2 + $0x198] sm:$0xf]
    %v563 = vld [vmem:[#allocation2 + $0x1a0] sm:$0xf]
    %v564 = vld [vmem:[#allocation2 + $0x1a8] sm:$0xf]
    %v565 = vld [vmem:[%s2] sm:$0x7]
    %v567 = vlaneseq
    %v568 = vshrl.u32 %v567, 7
    %v569 = vsub.s32 0, %v568
    %v570 = vrot.slane %v565, %v569
    %v571 = vlaneseq
    %v572 = vshrl.u32 %v571, 7
    %v573 = vsub.s32 1, %v572
    %v574 = vrot.slane %v565, %v573
    %v575 = vlaneseq
    %v576 = vshrl.u32 %v575, 7
    %v577 = vsub.s32 2, %v576
    %v578 = vrot.slane %v565, %v577
    %vm582 = vcmask 97280
    %v583 = vsel %vm582, %v340, 0
    %v585 = vsel %vm582, %v342, 0
    %v587 = vsel %vm582, %v344, 0
    %v589 = vsel %vm582, %v346, 0
    %v591 = vsel %vm582, %v348, 0
    %v593 = vsel %vm582, %v350, 0
    %v595 = vsel %vm582, %v352, 0
    %v597 = vsel %vm582, %v354, 0
    %v599 = vsel %vm582, %v356, 0
    %v601 = vsel %vm582, %v358, 0
    %v603 = vsel %vm582, %v360, 0
    %v605 = vsel %vm582, %v362, 0
    %v607 = vsel %vm582, %v364, 0
    %v609 = vsel %vm582, %v366, 0
    %v611 = vsel %vm582, %v368, 0
    %v613 = vsel %vm582, %v370, 0
    %v615 = vsel %vm582, %v372, 0
    %v617 = vsel %vm582, %v374, 0
    %v619 = vsel %vm582, %v376, 0
    %v621 = vsel %vm582, %v378, 0
    %v623 = vsel %vm582, %v380, 0
    %v625 = vsel %vm582, %v382, 0
    %v627 = vsel %vm582, %v384, 0
    %v629 = vsel %vm582, %v386, 0
    %vm631 = vcmask 1043456
    %v633 = vsel %vm631, %v562, 0
    %v636 = vsel %vm631, %v563, 0
    %v639 = vsel %vm631, %v564, 0
    %641 = vmatprep.subr.mxu0 %v512
    %642 = vmatpush1.msra.mxu0 %v511
    %643 = vmatprep.subr.mxu0 %v515
    %644 = vmatpush1.msra.mxu0 %v514
    %645 = vmatprep.subr.mxu0 %v518
    %646 = vmatpush1.msra.mxu0 %v517
    %647 = vmatprep.subr.mxu0 %v521
    %648 = vmatpush1.msra.mxu0 %v520
    %649 = vmatprep.subr.mxu0 %v524
    %650 = vmatpush1.msra.mxu0 %v523
    %651 = vmatprep.subr.mxu0 %v527
    %652 = vmatpush1.msra.mxu0 %v526
    %653 = vmatprep.subr.mxu0 %v530
    %654 = vmatpush1.msra.mxu0 %v529
    %655 = vmatprep.subr.mxu0 %v533
    %656 = vmatpush1.msra.mxu0 %v532
    %657 = vmatprep.subr.mxu0 %v536
    %658 = vmatpush1.msra.mxu0 %v535
    %659 = vmatprep.subr.mxu0 %v539
    %660 = vmatpush1.msra.mxu0 %v538
    %661 = vmatprep.subr.mxu0 %v542
    %662 = vmatpush1.msra.mxu0 %v541
    %663 = vmatprep.subr.mxu0 %v545
    %664 = vmatpush1.msra.mxu0 %v544
    %665 = vmatprep.subr.mxu0 %v548
    %666 = vmatpush1.msra.mxu0 %v547
    %667 = vmatprep.subr.mxu0 %v551
    %668 = vmatpush1.msra.mxu0 %v550
    %669 = vmatprep.subr.mxu0 %v554
    %670 = vmatpush1.msra.mxu0 %v553
    %671 = vmatprep.subr.mxu0 %v557
    %672 = vmatpush1.msra.mxu0 %v556
    %673 = vmatprep.subr.mxu0 %v560
    %674 = vmatpush1.msra.mxu0 %v559
    %675 = vmatprep.subr.mxu0 %v636
    %676 = vmatpush1.msra.mxu0 %v633
    %677 = vmatprep.subr.mxu0 0.0
    %678 = vmatpush1.msra.mxu0 0.0
    %679 = vmatprep.subr.mxu0 0.0
    %680 = vmatpush1.msra.mxu0 0.0
    %681 = vmatprep.subr.mxu0 0.0
    %682 = vmatpush1.msra.mxu0 0.0
    %683 = vmatprep.subr.mxu0 0.0
    %684 = vmatpush1.msra.mxu0 0.0
    %685 = vmatprep.subr.mxu0 0.0
    %686 = vmatpush1.msra.mxu0 0.0
    %687 = vmatprep.subr.mxu0 0.0
    %688 = vmatpush1.msra.mxu0 0.0
    %689 = vmatprep.subr.mxu0 0.0
    %690 = vmatpush1.msra.mxu0 0.0
    %691 = vmatprep.subr.mxu0 0.0
    %692 = vmatpush1.msra.mxu0 0.0
    %693 = vmatprep.subr.mxu0 0.0
    %694 = vmatpush1.msra.mxu0 0.0
    %695 = vmatprep.subr.mxu0 0.0
    %696 = vmatpush1.msra.mxu0 0.0
    %697 = vmatprep.subr.mxu0 0.0
    %698 = vmatpush1.msra.mxu0 0.0
    %699 = vmatprep.subr.mxu0 0.0
    %700 = vmatpush1.msra.mxu0 0.0
    %701 = vmatprep.subr.mxu0 0.0
    %702 = vmatpush1.msra.mxu0 0.0
    %703 = vmatprep.subr.mxu0 0.0
    %704 = vmatpush1.msra.mxu0 0.0
    %705 = vmatprep.mubr.f32.mxu0 %v583
    %706 = vmatmul.mubr.f32.gmra.mrb[0].mxu0 %v487
    %v707 = vpop.f32.mrb[0].mxu0
    %v708 = vadd.f32 %v570, %v707
    %v709 = vpop.f32.mrb[0].mxu0
    %v710 = vadd.f32 %v574, %v709
    %711 = vmatprep.mubr.f32.mxu0 %v585
    %712 = vmatmul.mubr.f32.gmra.mrb[0].mxu0 %v488
    %v713 = vpop.f32.mrb[0].mxu0
    %v714 = vadd.f32 %v570, %v713
    %v715 = vpop.f32.mrb[0].mxu0
    %v716 = vadd.f32 %v574, %v715
    %717 = vmatprep.mubr.f32.mxu0 %v587
    %718 = vmatmul.mubr.f32.gmra.mrb[0].mxu0 %v489
    %v719 = vpop.f32.mrb[0].mxu0
    %v720 = vadd.f32 %v570, %v719
    %v721 = vpop.f32.mrb[0].mxu0
    %v722 = vadd.f32 %v574, %v721
    %723 = vmatprep.mubr.f32.mxu0 %v589
    %724 = vmatmul.mubr.f32.gmra.mrb[0].mxu0 %v490
    %v725 = vpop.f32.mrb[0].mxu0
    %v726 = vadd.f32 %v570, %v725
    %v727 = vpop.f32.mrb[0].mxu0
    %v728 = vadd.f32 %v574, %v727
    %729 = vmatprep.mubr.f32.mxu0 %v591
    %730 = vmatmul.mubr.f32.gmra.mrb[0].mxu0 %v491
    %v731 = vpop.f32.mrb[0].mxu0
    %v732 = vadd.f32 %v570, %v731
    %v733 = vpop.f32.mrb[0].mxu0
    %v734 = vadd.f32 %v574, %v733
    %735 = vmatprep.mubr.f32.mxu0 %v593
    %736 = vmatmul.mubr.f32.gmra.mrb[0].mxu0 %v492
    %v737 = vpop.f32.mrb[0].mxu0
    %v738 = vadd.f32 %v570, %v737
    %v739 = vpop.f32.mrb[0].mxu0
    %v740 = vadd.f32 %v574, %v739
    %741 = vmatprep.mubr.f32.mxu0 %v595
    %742 = vmatmul.mubr.f32.gmra.mrb[0].mxu0 %v493
    %v743 = vpop.f32.mrb[0].mxu0
    %v744 = vadd.f32 %v570, %v743
    %v745 = vpop.f32.mrb[0].mxu0
    %v746 = vadd.f32 %v574, %v745
    %747 = vmatprep.mubr.f32.mxu0 %v597
    %748 = vmatmul.mubr.f32.gmra.mrb[0].mxu0 %v494
    %v749 = vpop.f32.mrb[0].mxu0
    %v750 = vadd.f32 %v570, %v749
    %v751 = vpop.f32.mrb[0].mxu0
    %v752 = vadd.f32 %v574, %v751
    %753 = vmatprep.mubr.f32.mxu0 %v599
    %754 = vmatmul.mubr.f32.gmra.mrb[0].mxu0 %v495
    %v755 = vpop.f32.mrb[0].mxu0
    %v756 = vadd.f32 %v570, %v755
    %v757 = vpop.f32.mrb[0].mxu0
    %v758 = vadd.f32 %v574, %v757
    %759 = vmatprep.mubr.f32.mxu0 %v601
    %760 = vmatmul.mubr.f32.gmra.mrb[0].mxu0 %v496
    %v761 = vpop.f32.mrb[0].mxu0
    %v762 = vadd.f32 %v570, %v761
    %v763 = vpop.f32.mrb[0].mxu0
    %v764 = vadd.f32 %v574, %v763
    %765 = vmatprep.mubr.f32.mxu0 %v603
    %766 = vmatmul.mubr.f32.gmra.mrb[0].mxu0 %v497
    %v767 = vpop.f32.mrb[0].mxu0
    %v768 = vadd.f32 %v570, %v767
    %v769 = vpop.f32.mrb[0].mxu0
    %v770 = vadd.f32 %v574, %v769
    %771 = vmatprep.mubr.f32.mxu0 %v605
    %772 = vmatmul.mubr.f32.gmra.mrb[0].mxu0 %v498
    %v773 = vpop.f32.mrb[0].mxu0
    %v774 = vadd.f32 %v570, %v773
    %v775 = vpop.f32.mrb[0].mxu0
    %v776 = vadd.f32 %v574, %v775
    %777 = vmatprep.mubr.f32.mxu0 %v607
    %778 = vmatmul.mubr.f32.gmra.mrb[0].mxu0 %v499
    %v779 = vpop.f32.mrb[0].mxu0
    %v780 = vadd.f32 %v570, %v779
    %v781 = vpop.f32.mrb[0].mxu0
    %v782 = vadd.f32 %v574, %v781
    %783 = vmatprep.mubr.f32.mxu0 %v609
    %784 = vmatmul.mubr.f32.gmra.mrb[0].mxu0 %v500
    %v785 = vpop.f32.mrb[0].mxu0
    %v786 = vadd.f32 %v570, %v785
    %v787 = vpop.f32.mrb[0].mxu0
    %v788 = vadd.f32 %v574, %v787
    %789 = vmatprep.mubr.f32.mxu0 %v611
    %790 = vmatmul.mubr.f32.gmra.mrb[0].mxu0 %v501
    %v791 = vpop.f32.mrb[0].mxu0
    %v792 = vadd.f32 %v570, %v791
    %v793 = vpop.f32.mrb[0].mxu0
    %v794 = vadd.f32 %v574, %v793
    %795 = vmatprep.mubr.f32.mxu0 %v613
    %796 = vmatmul.mubr.f32.gmra.mrb[0].mxu0 %v502
    %v797 = vpop.f32.mrb[0].mxu0
    %v798 = vadd.f32 %v570, %v797
    %v799 = vpop.f32.mrb[0].mxu0
    %v800 = vadd.f32 %v574, %v799
    %801 = vmatprep.mubr.f32.mxu0 %v615
    %802 = vmatmul.mubr.f32.gmra.mrb[0].mxu0 %v503
    %v803 = vpop.f32.mrb[0].mxu0
    %v804 = vadd.f32 %v570, %v803
    %v805 = vpop.f32.mrb[0].mxu0
    %v806 = vadd.f32 %v574, %v805
    %807 = vmatprep.mubr.f32.mxu0 %v617
    %808 = vmatmul.mubr.f32.gmra.mrb[0].mxu0 %v504
    %v809 = vpop.f32.mrb[0].mxu0
    %v810 = vadd.f32 %v570, %v809
    %v811 = vpop.f32.mrb[0].mxu0
    %v812 = vadd.f32 %v574, %v811
    %813 = vmatprep.mubr.f32.mxu0 %v619
    %814 = vmatmul.mubr.f32.gmra.mrb[0].mxu0 %v505
    %v815 = vpop.f32.mrb[0].mxu0
    %v816 = vadd.f32 %v570, %v815
    %v817 = vpop.f32.mrb[0].mxu0
    %v818 = vadd.f32 %v574, %v817
    %819 = vmatprep.mubr.f32.mxu0 %v621
    %820 = vmatmul.mubr.f32.gmra.mrb[0].mxu0 %v506
    %v821 = vpop.f32.mrb[0].mxu0
    %v822 = vadd.f32 %v570, %v821
    %v823 = vpop.f32.mrb[0].mxu0
    %v824 = vadd.f32 %v574, %v823
    %825 = vmatprep.mubr.f32.mxu0 %v623
    %826 = vmatmul.mubr.f32.gmra.mrb[0].mxu0 %v507
    %v827 = vpop.f32.mrb[0].mxu0
    %v828 = vadd.f32 %v570, %v827
    %v829 = vpop.f32.mrb[0].mxu0
    %v830 = vadd.f32 %v574, %v829
    %831 = vmatprep.mubr.f32.mxu0 %v625
    %832 = vmatmul.mubr.f32.gmra.mrb[0].mxu0 %v508
    %v833 = vpop.f32.mrb[0].mxu0
    %v834 = vadd.f32 %v570, %v833
    %v835 = vpop.f32.mrb[0].mxu0
    %v836 = vadd.f32 %v574, %v835
    %837 = vmatprep.mubr.f32.mxu0 %v627
    %838 = vmatmul.mubr.f32.gmra.mrb[0].mxu0 %v509
    %v839 = vpop.f32.mrb[0].mxu0
    %v840 = vadd.f32 %v570, %v839
    %v841 = vpop.f32.mrb[0].mxu0
    %v842 = vadd.f32 %v574, %v841
    %843 = vmatprep.mubr.f32.mxu0 %v629
    %844 = vmatmul.mubr.f32.gmra.mrb[0].mxu0 %v510
    %v845 = vpop.f32.mrb[0].mxu0
    %v846 = vadd.f32 %v570, %v845
    %v847 = vpop.f32.mrb[0].mxu0
    %v848 = vadd.f32 %v574, %v847
    %849 = vdwg.mxu0
    %850 = vmatprep.subr.mxu0 0.0
    %851 = vmatpush1.msra.mxu0 %v513
    %852 = vmatprep.subr.mxu0 0.0
    %853 = vmatpush1.msra.mxu0 %v516
    %854 = vmatprep.subr.mxu0 0.0
    %855 = vmatpush1.msra.mxu0 %v519
    %856 = vmatprep.subr.mxu0 0.0
    %857 = vmatpush1.msra.mxu0 %v522
    %858 = vmatprep.subr.mxu0 0.0
    %859 = vmatpush1.msra.mxu0 %v525
    %860 = vmatprep.subr.mxu0 0.0
    %861 = vmatpush1.msra.mxu0 %v528
    %862 = vmatprep.subr.mxu0 0.0
    %863 = vmatpush1.msra.mxu0 %v531
    %864 = vmatprep.subr.mxu0 0.0
    %865 = vmatpush1.msra.mxu0 %v534
    %866 = vmatprep.subr.mxu0 0.0
    %867 = vmatpush1.msra.mxu0 %v537
    %868 = vmatprep.subr.mxu0 0.0
    %869 = vmatpush1.msra.mxu0 %v540
    %870 = vmatprep.subr.mxu0 0.0
    %871 = vmatpush1.msra.mxu0 %v543
    %872 = vmatprep.subr.mxu0 0.0
    %873 = vmatpush1.msra.mxu0 %v546
    %874 = vmatprep.subr.mxu0 0.0
    %875 = vmatpush1.msra.mxu0 %v549
    %876 = vmatprep.subr.mxu0 0.0
    %877 = vmatpush1.msra.mxu0 %v552
    %878 = vmatprep.subr.mxu0 0.0
    %879 = vmatpush1.msra.mxu0 %v555
    %880 = vmatprep.subr.mxu0 0.0
    %881 = vmatpush1.msra.mxu0 %v558
    %882 = vmatprep.subr.mxu0 0.0
    %883 = vmatpush1.msra.mxu0 %v561
    %884 = vmatprep.subr.mxu0 0.0
    %885 = vmatpush1.msra.mxu0 %v639
    %886 = vmatprep.subr.mxu0 0.0
    %887 = vmatpush1.msra.mxu0 0.0
    %888 = vmatprep.subr.mxu0 0.0
    %889 = vmatpush1.msra.mxu0 0.0
    %890 = vmatprep.subr.mxu0 0.0
    %891 = vmatpush1.msra.mxu0 0.0
    %892 = vmatprep.subr.mxu0 0.0
    %893 = vmatpush1.msra.mxu0 0.0
    %894 = vmatprep.subr.mxu0 0.0
    %895 = vmatpush1.msra.mxu0 0.0
    %896 = vmatprep.subr.mxu0 0.0
    %897 = vmatpush1.msra.mxu0 0.0
    %898 = vmatprep.subr.mxu0 0.0
    %899 = vmatpush1.msra.mxu0 0.0
    %900 = vmatprep.subr.mxu0 0.0
    %901 = vmatpush1.msra.mxu0 0.0
    %902 = vmatprep.subr.mxu0 0.0
    %903 = vmatpush1.msra.mxu0 0.0
    %904 = vmatprep.subr.mxu0 0.0
    %905 = vmatpush1.msra.mxu0 0.0
    %906 = vmatprep.subr.mxu0 0.0
    %907 = vmatpush1.msra.mxu0 0.0
    %908 = vmatprep.subr.mxu0 0.0
    %909 = vmatpush1.msra.mxu0 0.0
    %910 = vmatprep.subr.mxu0 0.0
    %911 = vmatpush1.msra.mxu0 0.0
    %912 = vmatprep.subr.mxu0 0.0
    %913 = vmatpush1.msra.mxu0 0.0
    %914 = vmatprep.mubr.f32.mxu0 %v583
    %915 = vmatmul.mubr.f32.gmra.mrb[0].mxu0 %v487
    %v916 = vpop.f32.mrb[0].mxu0
    %v917 = vadd.f32 %v578, %v916
    %v918 = vpop.f32.mrb[0].mxu0
    %919 = vmatprep.mubr.f32.mxu0 %v585
    %920 = vmatmul.mubr.f32.gmra.mrb[0].mxu0 %v488
    %v921 = vpop.f32.mrb[0].mxu0
    %v922 = vadd.f32 %v578, %v921
    %v923 = vpop.f32.mrb[0].mxu0
    %924 = vmatprep.mubr.f32.mxu0 %v587
    %925 = vmatmul.mubr.f32.gmra.mrb[0].mxu0 %v489
    %v926 = vpop.f32.mrb[0].mxu0
    %v927 = vadd.f32 %v578, %v926
    %v928 = vpop.f32.mrb[0].mxu0
    %929 = vmatprep.mubr.f32.mxu0 %v589
    %930 = vmatmul.mubr.f32.gmra.mrb[0].mxu0 %v490
    %v931 = vpop.f32.mrb[0].mxu0
    %v932 = vadd.f32 %v578, %v931
    %v933 = vpop.f32.mrb[0].mxu0
    %934 = vmatprep.mubr.f32.mxu0 %v591
    %935 = vmatmul.mubr.f32.gmra.mrb[0].mxu0 %v491
    %v936 = vpop.f32.mrb[0].mxu0
    %v937 = vadd.f32 %v578, %v936
    %v938 = vpop.f32.mrb[0].mxu0
    %939 = vmatprep.mubr.f32.mxu0 %v593
    %940 = vmatmul.mubr.f32.gmra.mrb[0].mxu0 %v492
    %v941 = vpop.f32.mrb[0].mxu0
    %v942 = vadd.f32 %v578, %v941
    %v943 = vpop.f32.mrb[0].mxu0
    %944 = vmatprep.mubr.f32.mxu0 %v595
    %945 = vmatmul.mubr.f32.gmra.mrb[0].mxu0 %v493
    %v946 = vpop.f32.mrb[0].mxu0
    %v947 = vadd.f32 %v578, %v946
    %v948 = vpop.f32.mrb[0].mxu0
    %949 = vmatprep.mubr.f32.mxu0 %v597
    %950 = vmatmul.mubr.f32.gmra.mrb[0].mxu0 %v494
    %v951 = vpop.f32.mrb[0].mxu0
    %v952 = vadd.f32 %v578, %v951
    %v953 = vpop.f32.mrb[0].mxu0
    %954 = vmatprep.mubr.f32.mxu0 %v599
    %955 = vmatmul.mubr.f32.gmra.mrb[0].mxu0 %v495
    %v956 = vpop.f32.mrb[0].mxu0
    %v957 = vadd.f32 %v578, %v956
    %v958 = vpop.f32.mrb[0].mxu0
    %959 = vmatprep.mubr.f32.mxu0 %v601
    %960 = vmatmul.mubr.f32.gmra.mrb[0].mxu0 %v496
    %v961 = vpop.f32.mrb[0].mxu0
    %v962 = vadd.f32 %v578, %v961
    %v963 = vpop.f32.mrb[0].mxu0
    %964 = vmatprep.mubr.f32.mxu0 %v603
    %965 = vmatmul.mubr.f32.gmra.mrb[0].mxu0 %v497
    %v966 = vpop.f32.mrb[0].mxu0
    %v967 = vadd.f32 %v578, %v966
    %v968 = vpop.f32.mrb[0].mxu0
    %969 = vmatprep.mubr.f32.mxu0 %v605
    %970 = vmatmul.mubr.f32.gmra.mrb[0].mxu0 %v498
    %v971 = vpop.f32.mrb[0].mxu0
    %v972 = vadd.f32 %v578, %v971
    %v973 = vpop.f32.mrb[0].mxu0
    %974 = vmatprep.mubr.f32.mxu0 %v607
    %975 = vmatmul.mubr.f32.gmra.mrb[0].mxu0 %v499
    %v976 = vpop.f32.mrb[0].mxu0
    %v977 = vadd.f32 %v578, %v976
    %v978 = vpop.f32.mrb[0].mxu0
    %979 = vmatprep.mubr.f32.mxu0 %v609
    %980 = vmatmul.mubr.f32.gmra.mrb[0].mxu0 %v500
    %v981 = vpop.f32.mrb[0].mxu0
    %v982 = vadd.f32 %v578, %v981
    %v983 = vpop.f32.mrb[0].mxu0
    %984 = vmatprep.mubr.f32.mxu0 %v611
    %985 = vmatmul.mubr.f32.gmra.mrb[0].mxu0 %v501
    %v986 = vpop.f32.mrb[0].mxu0
    %v987 = vadd.f32 %v578, %v986
    %v988 = vpop.f32.mrb[0].mxu0
    %989 = vmatprep.mubr.f32.mxu0 %v613
    %990 = vmatmul.mubr.f32.gmra.mrb[0].mxu0 %v502
    %v991 = vpop.f32.mrb[0].mxu0
    %v992 = vadd.f32 %v578, %v991
    %v993 = vpop.f32.mrb[0].mxu0
    %994 = vmatprep.mubr.f32.mxu0 %v615
    %995 = vmatmul.mubr.f32.gmra.mrb[0].mxu0 %v503
    %v996 = vpop.f32.mrb[0].mxu0
    %v997 = vadd.f32 %v578, %v996
    %v998 = vpop.f32.mrb[0].mxu0
    %999 = vmatprep.mubr.f32.mxu0 %v617
    %1000 = vmatmul.mubr.f32.gmra.mrb[0].mxu0 %v504
    %v1001 = vpop.f32.mrb[0].mxu0
    %v1002 = vadd.f32 %v578, %v1001
    %v1003 = vpop.f32.mrb[0].mxu0
    %1004 = vmatprep.mubr.f32.mxu0 %v619
    %1005 = vmatmul.mubr.f32.gmra.mrb[0].mxu0 %v505
    %v1006 = vpop.f32.mrb[0].mxu0
    %v1007 = vadd.f32 %v578, %v1006
    %v1008 = vpop.f32.mrb[0].mxu0
    %1009 = vmatprep.mubr.f32.mxu0 %v621
    %1010 = vmatmul.mubr.f32.gmra.mrb[0].mxu0 %v506
    %v1011 = vpop.f32.mrb[0].mxu0
    %v1012 = vadd.f32 %v578, %v1011
    %v1013 = vpop.f32.mrb[0].mxu0
    %1014 = vmatprep.mubr.f32.mxu0 %v623
    %1015 = vmatmul.mubr.f32.gmra.mrb[0].mxu0 %v507
    %v1016 = vpop.f32.mrb[0].mxu0
    %v1017 = vadd.f32 %v578, %v1016
    %v1018 = vpop.f32.mrb[0].mxu0
    %1019 = vmatprep.mubr.f32.mxu0 %v625
    %1020 = vmatmul.mubr.f32.gmra.mrb[0].mxu0 %v508
    %v1021 = vpop.f32.mrb[0].mxu0
    %v1022 = vadd.f32 %v578, %v1021
    %v1023 = vpop.f32.mrb[0].mxu0
    %1024 = vmatprep.mubr.f32.mxu0 %v627
    %1025 = vmatmul.mubr.f32.gmra.mrb[0].mxu0 %v509
    %v1026 = vpop.f32.mrb[0].mxu0
    %v1027 = vadd.f32 %v578, %v1026
    %v1028 = vpop.f32.mrb[0].mxu0
    %1029 = vmatprep.mubr.f32.mxu0 %v629
    %1030 = vmatmul.mubr.f32.gmra.mrb[0].mxu0 %v510
    %v1031 = vpop.f32.mrb[0].mxu0
    %v1032 = vadd.f32 %v578, %v1031
    %v1033 = vpop.f32.mrb[0].mxu0
    %1034 = vdwg.mxu0
    %v1035 = vmax.f32 %v708, 0.0
    %v1036 = vmax.f32 %v710, 0.0
    %v1037 = vmax.f32 %v917, 0.0
    %v1038 = vmax.f32 %v714, 0.0
    %v1039 = vmax.f32 %v716, 0.0
    %v1040 = vmax.f32 %v922, 0.0
    %v1041 = vmax.f32 %v720, 0.0
    %v1042 = vmax.f32 %v722, 0.0
    %v1043 = vmax.f32 %v927, 0.0
    %v1044 = vmax.f32 %v726, 0.0
    %v1045 = vmax.f32 %v728, 0.0
    %v1046 = vmax.f32 %v932, 0.0
    %v1047 = vmax.f32 %v732, 0.0
    %v1048 = vmax.f32 %v734, 0.0
    %v1049 = vmax.f32 %v937, 0.0
    %v1050 = vmax.f32 %v738, 0.0
    %v1051 = vmax.f32 %v740, 0.0
    %v1052 = vmax.f32 %v942, 0.0
    %v1053 = vmax.f32 %v744, 0.0
    %v1054 = vmax.f32 %v746, 0.0
    %v1055 = vmax.f32 %v947, 0.0
    %v1056 = vmax.f32 %v750, 0.0
    %v1057 = vmax.f32 %v752, 0.0
    %v1058 = vmax.f32 %v952, 0.0
    %v1059 = vmax.f32 %v756, 0.0
    %v1060 = vmax.f32 %v758, 0.0
    %v1061 = vmax.f32 %v957, 0.0
    %v1062 = vmax.f32 %v762, 0.0
    %v1063 = vmax.f32 %v764, 0.0
    %v1064 = vmax.f32 %v962, 0.0
    %v1065 = vmax.f32 %v768, 0.0
    %v1066 = vmax.f32 %v770, 0.0
    %v1067 = vmax.f32 %v967, 0.0
    %v1068 = vmax.f32 %v774, 0.0
    %v1069 = vmax.f32 %v776, 0.0
    %v1070 = vmax.f32 %v972, 0.0
    %v1071 = vmax.f32 %v780, 0.0
    %v1072 = vmax.f32 %v782, 0.0
    %v1073 = vmax.f32 %v977, 0.0
    %v1074 = vmax.f32 %v786, 0.0
    %v1075 = vmax.f32 %v788, 0.0
    %v1076 = vmax.f32 %v982, 0.0
    %v1077 = vmax.f32 %v792, 0.0
    %v1078 = vmax.f32 %v794, 0.0
    %v1079 = vmax.f32 %v987, 0.0
    %v1080 = vmax.f32 %v798, 0.0
    %v1081 = vmax.f32 %v800, 0.0
    %v1082 = vmax.f32 %v992, 0.0
    %v1083 = vmax.f32 %v804, 0.0
    %v1084 = vmax.f32 %v806, 0.0
    %v1085 = vmax.f32 %v997, 0.0
    %v1086 = vmax.f32 %v810, 0.0
    %v1087 = vmax.f32 %v812, 0.0
    %v1088 = vmax.f32 %v1002, 0.0
    %v1089 = vmax.f32 %v816, 0.0
    %v1090 = vmax.f32 %v818, 0.0
    %v1091 = vmax.f32 %v1007, 0.0
    %v1092 = vmax.f32 %v822, 0.0
    %v1093 = vmax.f32 %v824, 0.0
    %v1094 = vmax.f32 %v1012, 0.0
    %v1095 = vmax.f32 %v828, 0.0
    %v1096 = vmax.f32 %v830, 0.0
    %v1097 = vmax.f32 %v1017, 0.0
    %v1098 = vmax.f32 %v834, 0.0
    %v1099 = vmax.f32 %v836, 0.0
    %v1100 = vmax.f32 %v1022, 0.0
    %v1101 = vmax.f32 %v840, 0.0
    %v1102 = vmax.f32 %v842, 0.0
    %v1103 = vmax.f32 %v1027, 0.0
    %v1104 = vmax.f32 %v846, 0.0
    %v1105 = vmax.f32 %v848, 0.0
    %v1106 = vmax.f32 %v1032, 0.0
    %v1107 = vmax.f32 %v1035, %v1038
    %v1108 = vmax.f32 %v1036, %v1039
    %v1109 = vmax.f32 %v1037, %v1040
    %v1110 = vmax.f32 %v1041, %v1044
    %v1111 = vmax.f32 %v1042, %v1045
    %v1112 = vmax.f32 %v1043, %v1046
    %v1113 = vmax.f32 %v1047, %v1050
    %v1114 = vmax.f32 %v1048, %v1051
    %v1115 = vmax.f32 %v1049, %v1052
    %v1116 = vmax.f32 %v1053, %v1056
    %v1117 = vmax.f32 %v1054, %v1057
    %v1118 = vmax.f32 %v1055, %v1058
    %v1119 = vmax.f32 %v1059, %v1062
    %v1120 = vmax.f32 %v1060, %v1063
    %v1121 = vmax.f32 %v1061, %v1064
    %v1122 = vmax.f32 %v1065, %v1068
    %v1123 = vmax.f32 %v1066, %v1069
    %v1124 = vmax.f32 %v1067, %v1070
    %v1125 = vmax.f32 %v1071, %v1074
    %v1126 = vmax.f32 %v1072, %v1075
    %v1127 = vmax.f32 %v1073, %v1076
    %v1128 = vmax.f32 %v1077, %v1080
    %v1129 = vmax.f32 %v1078, %v1081
    %v1130 = vmax.f32 %v1079, %v1082
    %v1131 = vmax.f32 %v1083, %v1086
    %v1132 = vmax.f32 %v1084, %v1087
    %v1133 = vmax.f32 %v1085, %v1088
    %v1134 = vmax.f32 %v1089, %v1092
    %v1135 = vmax.f32 %v1090, %v1093
    %v1136 = vmax.f32 %v1091, %v1094
    %v1137 = vmax.f32 %v1095, %v1098
    %v1138 = vmax.f32 %v1096, %v1099
    %v1139 = vmax.f32 %v1097, %v1100
    %v1140 = vmax.f32 %v1101, %v1104
    %v1141 = vmax.f32 %v1102, %v1105
    %v1142 = vmax.f32 %v1103, %v1106
    %1179 = vrot.lane.b32.xlu0 %v1107, 112
    %v1180 = vpop.permute.xlu0 %1179
    %1181 = vrot.lane.b32.xlu0 %v1108, 112
    %v1182 = vpop.permute.xlu0 %1181
    %1183 = vrot.lane.b32.xlu0 %v1109, 112
    %v1184 = vpop.permute.xlu0 %1183
    %1185 = vrot.lane.b32.xlu0 %v1110, 112
    %v1186 = vpop.permute.xlu0 %1185
    %1187 = vrot.lane.b32.xlu0 %v1111, 112
    %v1188 = vpop.permute.xlu0 %1187
    %1189 = vrot.lane.b32.xlu0 %v1112, 112
    %v1190 = vpop.permute.xlu0 %1189
    %1191 = vrot.lane.b32.xlu0 %v1113, 112
    %v1192 = vpop.permute.xlu0 %1191
    %1193 = vrot.lane.b32.xlu0 %v1114, 112
    %v1194 = vpop.permute.xlu0 %1193
    %1195 = vrot.lane.b32.xlu0 %v1115, 112
    %v1196 = vpop.permute.xlu0 %1195
    %1197 = vrot.lane.b32.xlu0 %v1116, 112
    %v1198 = vpop.permute.xlu0 %1197
    %1199 = vrot.lane.b32.xlu0 %v1117, 112
    %v1200 = vpop.permute.xlu0 %1199
    %1201 = vrot.lane.b32.xlu0 %v1118, 112
    %v1202 = vpop.permute.xlu0 %1201
    %1203 = vrot.lane.b32.xlu0 %v1119, 112
    %v1204 = vpop.permute.xlu0 %1203
    %1205 = vrot.lane.b32.xlu0 %v1120, 112
    %v1206 = vpop.permute.xlu0 %1205
    %1207 = vrot.lane.b32.xlu0 %v1121, 112
    %v1208 = vpop.permute.xlu0 %1207
    %1209 = vrot.lane.b32.xlu0 %v1122, 112
    %v1210 = vpop.permute.xlu0 %1209
    %1211 = vrot.lane.b32.xlu0 %v1123, 112
    %v1212 = vpop.permute.xlu0 %1211
    %1213 = vrot.lane.b32.xlu0 %v1124, 112
    %v1214 = vpop.permute.xlu0 %1213
    %1215 = vrot.lane.b32.xlu0 %v1125, 112
    %v1216 = vpop.permute.xlu0 %1215
    %1217 = vrot.lane.b32.xlu0 %v1126, 112
    %v1218 = vpop.permute.xlu0 %1217
    %1219 = vrot.lane.b32.xlu0 %v1127, 112
    %v1220 = vpop.permute.xlu0 %1219
    %1221 = vrot.lane.b32.xlu0 %v1128, 112
    %v1222 = vpop.permute.xlu0 %1221
    %1223 = vrot.lane.b32.xlu0 %v1129, 112
    %v1224 = vpop.permute.xlu0 %1223
    %1225 = vrot.lane.b32.xlu0 %v1130, 112
    %v1226 = vpop.permute.xlu0 %1225
    %1227 = vrot.lane.b32.xlu0 %v1131, 112
    %v1228 = vpop.permute.xlu0 %1227
    %1229 = vrot.lane.b32.xlu0 %v1132, 112
    %v1230 = vpop.permute.xlu0 %1229
    %1231 = vrot.lane.b32.xlu0 %v1133, 112
    %v1232 = vpop.permute.xlu0 %1231
    %1233 = vrot.lane.b32.xlu0 %v1134, 112
    %v1234 = vpop.permute.xlu0 %1233
    %1235 = vrot.lane.b32.xlu0 %v1135, 112
    %v1236 = vpop.permute.xlu0 %1235
    %1237 = vrot.lane.b32.xlu0 %v1136, 112
    %v1238 = vpop.permute.xlu0 %1237
    %1239 = vrot.lane.b32.xlu0 %v1137, 112
    %v1240 = vpop.permute.xlu0 %1239
    %1241 = vrot.lane.b32.xlu0 %v1138, 112
    %v1242 = vpop.permute.xlu0 %1241
    %1243 = vrot.lane.b32.xlu0 %v1139, 112
    %v1244 = vpop.permute.xlu0 %1243
    %1245 = vrot.lane.b32.xlu0 %v1140, 112
    %v1246 = vpop.permute.xlu0 %1245
    %1247 = vrot.lane.b32.xlu0 %v1141, 112
    %v1248 = vpop.permute.xlu0 %1247
    %1249 = vrot.lane.b32.xlu0 %v1142, 112
    %v1250 = vpop.permute.xlu0 %1249
    %v1251 = vsel %vm486, %v1180, %v1182
    %v1252 = vsel %vm486, %v1182, %v1184
    %v1253 = vsel %vm486, %v1186, %v1188
    %v1254 = vsel %vm486, %v1188, %v1190
    %v1255 = vsel %vm486, %v1192, %v1194
    %v1256 = vsel %vm486, %v1194, %v1196
    %v1257 = vsel %vm486, %v1198, %v1200
    %v1258 = vsel %vm486, %v1200, %v1202
    %v1259 = vsel %vm486, %v1204, %v1206
    %v1260 = vsel %vm486, %v1206, %v1208
    %v1261 = vsel %vm486, %v1210, %v1212
    %v1262 = vsel %vm486, %v1212, %v1214
    %v1263 = vsel %vm486, %v1216, %v1218
    %v1264 = vsel %vm486, %v1218, %v1220
    %v1265 = vsel %vm486, %v1222, %v1224
    %v1266 = vsel %vm486, %v1224, %v1226
    %v1267 = vsel %vm486, %v1228, %v1230
    %v1268 = vsel %vm486, %v1230, %v1232
    %v1269 = vsel %vm486, %v1234, %v1236
    %v1270 = vsel %vm486, %v1236, %v1238
    %v1271 = vsel %vm486, %v1240, %v1242
    %v1272 = vsel %vm486, %v1242, %v1244
    %v1273 = vsel %vm486, %v1246, %v1248
    %v1274 = vsel %vm486, %v1248, %v1250
    %v1323 = vsel %vm486, %v1184, %v1180
    %v1324 = vsel %vm486, %v1190, %v1186
    %v1325 = vsel %vm486, %v1196, %v1192
    %v1326 = vsel %vm486, %v1202, %v1198
    %v1327 = vsel %vm486, %v1208, %v1204
    %v1328 = vsel %vm486, %v1214, %v1210
    %v1329 = vsel %vm486, %v1220, %v1216
    %v1330 = vsel %vm486, %v1226, %v1222
    %v1331 = vsel %vm486, %v1232, %v1228
    %v1332 = vsel %vm486, %v1238, %v1234
    %v1333 = vsel %vm486, %v1244, %v1240
    %v1334 = vsel %vm486, %v1250, %v1246
    %v1335 = vmax.f32 %v1107, %v1251
    %v1336 = vmax.f32 %v1108, %v1252
    %v1337 = vmax.f32 %v1109, %v1323
    %v1338 = vmax.f32 %v1110, %v1253
    %v1339 = vmax.f32 %v1111, %v1254
    %v1340 = vmax.f32 %v1112, %v1324
    %v1341 = vmax.f32 %v1113, %v1255
    %v1342 = vmax.f32 %v1114, %v1256
    %v1343 = vmax.f32 %v1115, %v1325
    %v1344 = vmax.f32 %v1116, %v1257
    %v1345 = vmax.f32 %v1117, %v1258
    %v1346 = vmax.f32 %v1118, %v1326
    %v1347 = vmax.f32 %v1119, %v1259
    %v1348 = vmax.f32 %v1120, %v1260
    %v1349 = vmax.f32 %v1121, %v1327
    %v1350 = vmax.f32 %v1122, %v1261
    %v1351 = vmax.f32 %v1123, %v1262
    %v1352 = vmax.f32 %v1124, %v1328
    %v1353 = vmax.f32 %v1125, %v1263
    %v1354 = vmax.f32 %v1126, %v1264
    %v1355 = vmax.f32 %v1127, %v1329
    %v1356 = vmax.f32 %v1128, %v1265
    %v1357 = vmax.f32 %v1129, %v1266
    %v1358 = vmax.f32 %v1130, %v1330
    %v1359 = vmax.f32 %v1131, %v1267
    %v1360 = vmax.f32 %v1132, %v1268
    %v1361 = vmax.f32 %v1133, %v1331
    %v1362 = vmax.f32 %v1134, %v1269
    %v1363 = vmax.f32 %v1135, %v1270
    %v1364 = vmax.f32 %v1136, %v1332
    %v1365 = vmax.f32 %v1137, %v1271
    %v1366 = vmax.f32 %v1138, %v1272
    %v1367 = vmax.f32 %v1139, %v1333
    %v1368 = vmax.f32 %v1140, %v1273
    %v1369 = vmax.f32 %v1141, %v1274
    %v1370 = vmax.f32 %v1142, %v1334
    %v1371 = vpack.c.bf16 %v1338, %v1335
    %v1372 = vpack.c.bf16 %v1339, %v1336
    %v1373 = vpack.c.bf16 %v1340, %v1337
    %v1374 = vpack.c.bf16 %v1341, %v1338
    %v1375 = vpack.c.bf16 %v1342, %v1339
    %v1376 = vpack.c.bf16 %v1343, %v1340
    %v1377 = vpack.c.bf16 %v1344, %v1341
    %v1378 = vpack.c.bf16 %v1345, %v1342
    %v1379 = vpack.c.bf16 %v1346, %v1343
    %v1380 = vpack.c.bf16 %v1347, %v1344
    %v1381 = vpack.c.bf16 %v1348, %v1345
    %v1382 = vpack.c.bf16 %v1349, %v1346
    %v1383 = vpack.c.bf16 %v1350, %v1347
    %v1384 = vpack.c.bf16 %v1351, %v1348
    %v1385 = vpack.c.bf16 %v1352, %v1349
    %v1386 = vpack.c.bf16 %v1353, %v1350
    %v1387 = vpack.c.bf16 %v1354, %v1351
    %v1388 = vpack.c.bf16 %v1355, %v1352
    %v1389 = vpack.c.bf16 %v1356, %v1353
    %v1390 = vpack.c.bf16 %v1357, %v1354
    %v1391 = vpack.c.bf16 %v1358, %v1355
    %v1392 = vpack.c.bf16 %v1359, %v1356
    %v1393 = vpack.c.bf16 %v1360, %v1357
    %v1394 = vpack.c.bf16 %v1361, %v1358
    %v1395 = vpack.c.bf16 %v1362, %v1359
    %v1396 = vpack.c.bf16 %v1363, %v1360
    %v1397 = vpack.c.bf16 %v1364, %v1361
    %v1398 = vpack.c.bf16 %v1365, %v1362
    %v1399 = vpack.c.bf16 %v1366, %v1363
    %v1400 = vpack.c.bf16 %v1367, %v1364
    %v1401 = vpack.c.bf16 %v1368, %v1365
    %v1402 = vpack.c.bf16 %v1369, %v1366
    %v1403 = vpack.c.bf16 %v1370, %v1367
    %v1404 = vld [vmem:[#allocation4] sm:$0xff]
    %v1405 = vld [vmem:[#allocation4 + $0x8] sm:$0xff]
    %v1406 = vld [vmem:[#allocation4 + $0x10] sm:$0xff]
    %v1407 = vld [vmem:[#allocation4 + $0x18] sm:$0xff]
    %v1408 = vld [vmem:[#allocation4 + $0x20] sm:$0xff]
    %v1409 = vld [vmem:[#allocation4 + $0x28] sm:$0xff]
    %v1410 = vld [vmem:[#allocation4 + $0x30] sm:$0xff]
    %v1411 = vld [vmem:[#allocation4 + $0x38] sm:$0xff]
    %v1412 = vld [vmem:[#allocation4 + $0x40] sm:$0xff]
    %v1413 = vld [vmem:[#allocation4 + $0x48] sm:$0xff]
    %v1414 = vld [vmem:[#allocation4 + $0x50] sm:$0xff]
    %v1415 = vld [vmem:[#allocation4 + $0x58] sm:$0xff]
    %v1416 = vld [vmem:[#allocation4 + $0x60] sm:$0xff]
    %v1417 = vld [vmem:[#allocation4 + $0x68] sm:$0xff]
    %v1418 = vld [vmem:[#allocation4 + $0x70] sm:$0xff]
    %v1419 = vld [vmem:[#allocation4 + $0x78] sm:$0xff]
    %v1420 = vld [vmem:[#allocation4 + $0x80] sm:$0xff]
    %v1421 = vld [vmem:[#allocation4 + $0x88] sm:$0xff]
    %v1422 = vld [vmem:[#allocation4 + $0x90] sm:$0xff]
    %v1423 = vld [vmem:[#allocation4 + $0x98] sm:$0xff]
    %v1424 = vld [vmem:[#allocation4 + $0xa0] sm:$0xff]
    %v1425 = vld [vmem:[#allocation4 + $0xa8] sm:$0xff]
    %v1426 = vld [vmem:[#allocation4 + $0xb0] sm:$0xff]
    %v1427 = vld [vmem:[#allocation4 + $0xb8] sm:$0xff]
    %v1428 = vld [vmem:[#allocation4 + $0xc0] sm:$0xff]
    %v1429 = vld [vmem:[#allocation4 + $0xc8] sm:$0xff]
    %v1430 = vld [vmem:[#allocation4 + $0xd0] sm:$0xff]
    %v1431 = vld [vmem:[#allocation4 + $0xd8] sm:$0xff]
    %v1432 = vld [vmem:[#allocation4 + $0xe0] sm:$0xff]
    %v1433 = vld [vmem:[#allocation4 + $0xe8] sm:$0xff]
    %v1434 = vld [vmem:[#allocation4 + $0xf0] sm:$0xff]
    %v1435 = vld [vmem:[#allocation4 + $0xf8] sm:$0xff]
    %v1436 = vld [vmem:[#allocation4 + $0x100] sm:$0xff]
    %v1437 = vld [vmem:[#allocation4 + $0x108] sm:$0xff]
    %v1438 = vld [vmem:[#allocation4 + $0x110] sm:$0xff]
    %v1439 = vld [vmem:[#allocation4 + $0x118] sm:$0xff]
    %v1440 = vld [vmem:[#allocation4 + $0x120] sm:$0xff]
    %v1441 = vld [vmem:[#allocation4 + $0x128] sm:$0xff]
    %v1442 = vld [vmem:[#allocation4 + $0x130] sm:$0xff]
    %v1443 = vld [vmem:[#allocation4 + $0x138] sm:$0xff]
    %v1444 = vld [vmem:[#allocation4 + $0x140] sm:$0xff]
    %v1445 = vld [vmem:[#allocation4 + $0x148] sm:$0xff]
    %v1446 = vld [vmem:[#allocation4 + $0x150] sm:$0xff]
    %v1447 = vld [vmem:[#allocation4 + $0x158] sm:$0xff]
    %v1448 = vld [vmem:[#allocation4 + $0x160] sm:$0xff]
    %v1449 = vld [vmem:[#allocation4 + $0x168] sm:$0xff]
    %v1450 = vld [vmem:[#allocation4 + $0x170] sm:$0xff]
    %v1451 = vld [vmem:[#allocation4 + $0x178] sm:$0xff]
    %v1452 = vld [vmem:[#allocation4 + $0x180] sm:$0xff]
    %v1453 = vld [vmem:[#allocation4 + $0x188] sm:$0xff]
    %v1454 = vld [vmem:[#allocation4 + $0x190] sm:$0xff]
    %v1455 = vld [vmem:[#allocation4 + $0x198] sm:$0xff]
    %v1456 = vld [vmem:[#allocation4 + $0x1a0] sm:$0xff]
    %v1457 = vld [vmem:[#allocation4 + $0x1a8] sm:$0xff]
    %v1458 = vld [vmem:[#allocation4 + $0x1b0] sm:$0xff]
    %v1459 = vld [vmem:[#allocation4 + $0x1b8] sm:$0xff]
    %v1460 = vld [vmem:[#allocation4 + $0x1c0] sm:$0xff]
    %v1461 = vld [vmem:[#allocation4 + $0x1c8] sm:$0xff]
    %v1462 = vld [vmem:[#allocation4 + $0x1d0] sm:$0xff]
    %v1463 = vld [vmem:[#allocation4 + $0x1d8] sm:$0xff]
    %v1464 = vld [vmem:[#allocation4 + $0x1e0] sm:$0xff]
    %v1465 = vld [vmem:[#allocation4 + $0x1e8] sm:$0xff]
    %v1466 = vld [vmem:[#allocation4 + $0x1f0] sm:$0xff]
    %v1467 = vld [vmem:[#allocation4 + $0x1f8] sm:$0xff]
    %v1468 = vld [vmem:[#allocation4 + $0x200] sm:$0xff]
    %v1469 = vld [vmem:[#allocation4 + $0x208] sm:$0xff]
    %v1470 = vld [vmem:[#allocation4 + $0x210] sm:$0xff]
    %v1471 = vld [vmem:[#allocation4 + $0x218] sm:$0xff]
    %v1472 = vld [vmem:[#allocation4 + $0x220] sm:$0xff]
    %v1473 = vld [vmem:[#allocation4 + $0x228] sm:$0xff]
    %v1474 = vld [vmem:[#allocation4 + $0x230] sm:$0xff]
    %v1475 = vld [vmem:[#allocation4 + $0x238] sm:$0xff]
    %v1476 = vld [vmem:[#allocation4 + $0x240] sm:$0xff]
    %v1477 = vld [vmem:[#allocation4 + $0x248] sm:$0xff]
    %v1478 = vld [vmem:[#allocation4 + $0x250] sm:$0xff]
    %v1479 = vld [vmem:[#allocation4 + $0x258] sm:$0xff]
    %v1480 = vld [vmem:[#allocation4 + $0x260] sm:$0xff]
    %v1481 = vld [vmem:[#allocation4 + $0x268] sm:$0xff]
    %v1482 = vld [vmem:[#allocation4 + $0x270] sm:$0xff]
    %v1483 = vld [vmem:[#allocation4 + $0x278] sm:$0xff]
    %v1484 = vld [vmem:[#allocation4 + $0x280] sm:$0xff]
    %v1485 = vld [vmem:[#allocation4 + $0x288] sm:$0xff]
    %v1486 = vld [vmem:[#allocation4 + $0x290] sm:$0xff]
    %v1487 = vld [vmem:[#allocation4 + $0x298] sm:$0xff]
    %v1488 = vld [vmem:[#allocation4 + $0x2a0] sm:$0xff]
    %v1489 = vld [vmem:[#allocation4 + $0x2a8] sm:$0xff]
    %v1490 = vld [vmem:[#allocation4 + $0x2b0] sm:$0xff]
    %v1491 = vld [vmem:[#allocation4 + $0x2b8] sm:$0xff]
    %v1492 = vld [vmem:[#allocation4 + $0x2c0] sm:$0xff]
    %v1493 = vld [vmem:[#allocation4 + $0x2c8] sm:$0xff]
    %v1494 = vld [vmem:[#allocation4 + $0x2d0] sm:$0xff]
    %v1495 = vld [vmem:[#allocation4 + $0x2d8] sm:$0xff]
    %v1496 = vld [vmem:[#allocation4 + $0x2e0] sm:$0xff]
    %v1497 = vld [vmem:[#allocation4 + $0x2e8] sm:$0xff]
    %v1498 = vld [vmem:[#allocation4 + $0x2f0] sm:$0xff]
    %v1499 = vld [vmem:[#allocation4 + $0x2f8] sm:$0xff]
    %v1500 = vld [vmem:[#allocation4 + $0x300] sm:$0xff]
    %v1501 = vld [vmem:[#allocation4 + $0x308] sm:$0xff]
    %v1502 = vld [vmem:[#allocation4 + $0x310] sm:$0xff]
    %v1503 = vld [vmem:[#allocation4 + $0x318] sm:$0xff]
    %v1504 = vld [vmem:[#allocation4 + $0x320] sm:$0xff]
    %v1505 = vld [vmem:[#allocation4 + $0x328] sm:$0xff]
    %v1506 = vld [vmem:[#allocation4 + $0x330] sm:$0xff]
    %v1507 = vld [vmem:[#allocation4 + $0x338] sm:$0xff]
    %v1508 = vld [vmem:[#allocation4 + $0x340] sm:$0xff]
    %v1509 = vld [vmem:[#allocation4 + $0x348] sm:$0xff]
    %v1510 = vld [vmem:[#allocation4 + $0x350] sm:$0xff]
    %v1511 = vld [vmem:[#allocation4 + $0x358] sm:$0xff]
    %v1512 = vld [vmem:[#allocation4 + $0x360] sm:$0xff]
    %v1513 = vld [vmem:[#allocation4 + $0x368] sm:$0xff]
    %v1514 = vld [vmem:[#allocation4 + $0x370] sm:$0xff]
    %v1515 = vld [vmem:[#allocation4 + $0x378] sm:$0xff]
    %v1516 = vld [vmem:[#allocation4 + $0x380] sm:$0xff]
    %v1517 = vld [vmem:[#allocation4 + $0x388] sm:$0xff]
    %v1518 = vld [vmem:[#allocation4 + $0x390] sm:$0xff]
    %v1519 = vld [vmem:[#allocation4 + $0x398] sm:$0xff]
    %v1520 = vld [vmem:[#allocation4 + $0x3a0] sm:$0xff]
    %v1521 = vld [vmem:[#allocation4 + $0x3a8] sm:$0xff]
    %v1522 = vld [vmem:[#allocation4 + $0x3b0] sm:$0xff]
    %v1523 = vld [vmem:[#allocation4 + $0x3b8] sm:$0xff]
    %v1524 = vld [vmem:[#allocation4 + $0x3c0] sm:$0xff]
    %v1525 = vld [vmem:[#allocation4 + $0x3c8] sm:$0xff]
    %v1526 = vld [vmem:[#allocation4 + $0x3d0] sm:$0xff]
    %v1527 = vld [vmem:[#allocation4 + $0x3d8] sm:$0xff]
    %v1528 = vld [vmem:[#allocation4 + $0x3e0] sm:$0xff]
    %v1529 = vld [vmem:[#allocation4 + $0x3e8] sm:$0xff]
    %v1530 = vld [vmem:[#allocation4 + $0x3f0] sm:$0xff]
    %v1531 = vld [vmem:[#allocation4 + $0x3f8] sm:$0xff]
    %v1532 = vld [vmem:[#allocation4 + $0x400] sm:$0xff]
    %v1533 = vld [vmem:[#allocation4 + $0x408] sm:$0xff]
    %v1534 = vld [vmem:[#allocation4 + $0x410] sm:$0xff]
    %v1535 = vld [vmem:[#allocation4 + $0x418] sm:$0xff]
    %v1536 = vld [vmem:[#allocation4 + $0x420] sm:$0xff]
    %v1537 = vld [vmem:[#allocation4 + $0x428] sm:$0xff]
    %v1538 = vld [vmem:[#allocation4 + $0x430] sm:$0xff]
    %v1539 = vld [vmem:[#allocation4 + $0x438] sm:$0xff]
    %v1540 = vld [vmem:[#allocation4 + $0x440] sm:$0xff]
    %v1541 = vld [vmem:[#allocation4 + $0x448] sm:$0xff]
    %v1542 = vld [vmem:[#allocation4 + $0x450] sm:$0xff]
    %v1543 = vld [vmem:[#allocation4 + $0x458] sm:$0xff]
    %v1544 = vld [vmem:[#allocation4 + $0x460] sm:$0xff]
    %v1545 = vld [vmem:[#allocation4 + $0x468] sm:$0xff]
    %v1546 = vld [vmem:[#allocation4 + $0x470] sm:$0xff]
    %v1547 = vld [vmem:[#allocation4 + $0x478] sm:$0xff]
    %v1548 = vld [vmem:[#allocation4 + $0x480] sm:$0xff]
    %v1549 = vld [vmem:[#allocation4 + $0x488] sm:$0xff]
    %v1550 = vld [vmem:[#allocation4 + $0x490] sm:$0xff]
    %v1551 = vld [vmem:[#allocation4 + $0x498] sm:$0xff]
    %v1552 = vld [vmem:[#allocation4 + $0x4a0] sm:$0xff]
    %v1553 = vld [vmem:[#allocation4 + $0x4a8] sm:$0xff]
    %v1554 = vld [vmem:[#allocation4 + $0x4b0] sm:$0xff]
    %v1555 = vld [vmem:[#allocation4 + $0x4b8] sm:$0xff]
    %v1556 = vld [vmem:[#allocation4 + $0x4c0] sm:$0xff]
    %v1557 = vld [vmem:[#allocation4 + $0x4c8] sm:$0xff]
    %v1558 = vld [vmem:[#allocation4 + $0x4d0] sm:$0xff]
    %v1559 = vld [vmem:[#allocation4 + $0x4d8] sm:$0xff]
    %v1560 = vld [vmem:[#allocation4 + $0x4e0] sm:$0xff]
    %v1561 = vld [vmem:[#allocation4 + $0x4e8] sm:$0xff]
    %v1562 = vld [vmem:[#allocation4 + $0x4f0] sm:$0xff]
    %v1563 = vld [vmem:[#allocation4 + $0x4f8] sm:$0xff]
    %v1564 = vld [vmem:[#allocation4 + $0x500] sm:$0xff]
    %v1565 = vld [vmem:[#allocation4 + $0x508] sm:$0xff]
    %v1566 = vld [vmem:[#allocation4 + $0x510] sm:$0xff]
    %v1567 = vld [vmem:[#allocation4 + $0x518] sm:$0xff]
    %v1568 = vld [vmem:[#allocation4 + $0x520] sm:$0xff]
    %v1569 = vld [vmem:[#allocation4 + $0x528] sm:$0xff]
    %v1570 = vld [vmem:[#allocation4 + $0x530] sm:$0xff]
    %v1571 = vld [vmem:[#allocation4 + $0x538] sm:$0xff]
    %v1572 = vld [vmem:[#allocation4 + $0x540] sm:$0xff]
    %v1573 = vld [vmem:[#allocation4 + $0x548] sm:$0xff]
    %v1574 = vld [vmem:[#allocation4 + $0x550] sm:$0xff]
    %v1575 = vld [vmem:[#allocation4 + $0x558] sm:$0xff]
    %v1576 = vld [vmem:[#allocation4 + $0x560] sm:$0xff]
    %v1577 = vld [vmem:[#allocation4 + $0x568] sm:$0xff]
    %v1578 = vld [vmem:[#allocation4 + $0x570] sm:$0xff]
    %v1579 = vld [vmem:[#allocation4 + $0x578] sm:$0xff]
    %v1580 = vld [vmem:[#allocation4 + $0x580] sm:$0xff]
    %v1581 = vld [vmem:[#allocation4 + $0x588] sm:$0xff]
    %v1582 = vld [vmem:[#allocation4 + $0x590] sm:$0xff]
    %v1583 = vld [vmem:[#allocation4 + $0x598] sm:$0xff]
    %v1584 = vld [vmem:[#allocation4 + $0x5a0] sm:$0xff]
    %v1585 = vld [vmem:[#allocation4 + $0x5a8] sm:$0xff]
    %v1586 = vld [vmem:[#allocation4 + $0x5b0] sm:$0xff]
    %v1587 = vld [vmem:[#allocation4 + $0x5b8] sm:$0xff]
    %v1588 = vld [vmem:[#allocation4 + $0x5c0] sm:$0xff]
    %v1589 = vld [vmem:[#allocation4 + $0x5c8] sm:$0xff]
    %v1590 = vld [vmem:[#allocation4 + $0x5d0] sm:$0xff]
    %v1591 = vld [vmem:[#allocation4 + $0x5d8] sm:$0xff]
    %v1592 = vld [vmem:[#allocation4 + $0x5e0] sm:$0xff]
    %v1593 = vld [vmem:[#allocation4 + $0x5e8] sm:$0xff]
    %v1594 = vld [vmem:[#allocation4 + $0x5f0] sm:$0xff]
    %v1595 = vld [vmem:[#allocation4 + $0x5f8] sm:$0xff]
    %v1596 = vld [vmem:[#allocation4 + $0x600] sm:$0xff]
    %v1597 = vld [vmem:[#allocation4 + $0x608] sm:$0xff]
    %v1598 = vld [vmem:[#allocation4 + $0x610] sm:$0xff]
    %v1599 = vld [vmem:[#allocation4 + $0x618] sm:$0xff]
    %v1600 = vld [vmem:[#allocation4 + $0x620] sm:$0xff]
    %v1601 = vld [vmem:[#allocation4 + $0x628] sm:$0xff]
    %v1602 = vld [vmem:[#allocation4 + $0x630] sm:$0xff]
    %v1603 = vld [vmem:[#allocation4 + $0x638] sm:$0xff]
    %v1604 = vld [vmem:[#allocation4 + $0x640] sm:$0xff]
    %v1605 = vld [vmem:[#allocation4 + $0x648] sm:$0xff]
    %v1606 = vld [vmem:[#allocation4 + $0x650] sm:$0xff]
    %v1607 = vld [vmem:[#allocation4 + $0x658] sm:$0xff]
    %v1608 = vld [vmem:[#allocation4 + $0x660] sm:$0xff]
    %v1609 = vld [vmem:[#allocation4 + $0x668] sm:$0xff]
    %v1610 = vld [vmem:[#allocation4 + $0x670] sm:$0xff]
    %v1611 = vld [vmem:[#allocation4 + $0x678] sm:$0xff]
    %v1612 = vld [vmem:[#allocation4 + $0x680] sm:$0xff]
    %v1613 = vld [vmem:[#allocation4 + $0x688] sm:$0xff]
    %v1614 = vld [vmem:[#allocation4 + $0x690] sm:$0xff]
    %v1615 = vld [vmem:[#allocation4 + $0x698] sm:$0xff]
    %v1616 = vld [vmem:[#allocation4 + $0x6a0] sm:$0xff]
    %v1617 = vld [vmem:[#allocation4 + $0x6a8] sm:$0xff]
    %v1618 = vld [vmem:[#allocation4 + $0x6b0] sm:$0xff]
    %v1619 = vld [vmem:[#allocation4 + $0x6b8] sm:$0xff]
    %v1620 = vld [vmem:[#allocation4 + $0x6c0] sm:$0xff]
    %v1621 = vld [vmem:[#allocation4 + $0x6c8] sm:$0xff]
    %v1622 = vld [vmem:[#allocation4 + $0x6d0] sm:$0xff]
    %v1623 = vld [vmem:[#allocation4 + $0x6d8] sm:$0xff]
    %v1624 = vld [vmem:[#allocation4 + $0x6e0] sm:$0xff]
    %v1625 = vld [vmem:[#allocation4 + $0x6e8] sm:$0xff]
    %v1626 = vld [vmem:[#allocation4 + $0x6f0] sm:$0xff]
    %v1627 = vld [vmem:[#allocation4 + $0x6f8] sm:$0xff]
    %v1628 = vld [vmem:[#allocation4 + $0x700] sm:$0xff]
    %v1629 = vld [vmem:[#allocation4 + $0x708] sm:$0xff]
    %v1630 = vld [vmem:[#allocation4 + $0x710] sm:$0xff]
    %v1631 = vld [vmem:[#allocation4 + $0x718] sm:$0xff]
    %v1632 = vld [vmem:[#allocation4 + $0x720] sm:$0xff]
    %v1633 = vld [vmem:[#allocation4 + $0x728] sm:$0xff]
    %v1634 = vld [vmem:[#allocation4 + $0x730] sm:$0xff]
    %v1635 = vld [vmem:[#allocation4 + $0x738] sm:$0xff]
    %v1636 = vld [vmem:[#allocation4 + $0x740] sm:$0xff]
    %v1637 = vld [vmem:[#allocation4 + $0x748] sm:$0xff]
    %v1638 = vld [vmem:[#allocation4 + $0x750] sm:$0xff]
    %v1639 = vld [vmem:[#allocation4 + $0x758] sm:$0xff]
    %v1640 = vld [vmem:[#allocation4 + $0x760] sm:$0xff]
    %v1641 = vld [vmem:[#allocation4 + $0x768] sm:$0xff]
    %v1642 = vld [vmem:[#allocation4 + $0x770] sm:$0xff]
    %v1643 = vld [vmem:[#allocation4 + $0x778] sm:$0xff]
    %v1644 = vld [vmem:[%s4] sm:$0x3]
    %v1646 = vlaneseq
    %v1647 = vshrl.u32 %v1646, 7
    %v1648 = vsub.s32 0, %v1647
    %v1649 = vrot.slane %v1644, %v1648
    %v1650 = vlaneseq
    %v1651 = vshrl.u32 %v1650, 7
    %v1652 = vsub.s32 1, %v1651
    %v1653 = vrot.slane %v1644, %v1652
    %v1896 = vunpack.c.l.b16 %v1404
    %v1897 = vunpack.c.h.b16 %v1404
    %v1898 = vunpack.c.l.b16 %v1405
    %v1899 = vunpack.c.h.b16 %v1405
    %v1900 = vunpack.c.l.b16 %v1406
    %v1901 = vunpack.c.h.b16 %v1406
    %v1902 = vunpack.c.l.b16 %v1407
    %v1903 = vunpack.c.h.b16 %v1407
    %v1904 = vunpack.c.l.b16 %v1408
    %v1905 = vunpack.c.h.b16 %v1408
    %v1906 = vunpack.c.l.b16 %v1409
    %v1907 = vunpack.c.h.b16 %v1409
    %v1908 = vunpack.c.l.b16 %v1410
    %v1909 = vunpack.c.h.b16 %v1410
    %v1910 = vunpack.c.l.b16 %v1411
    %v1911 = vunpack.c.h.b16 %v1411
    %v1912 = vunpack.c.l.b16 %v1412
    %v1913 = vunpack.c.h.b16 %v1412
    %v1914 = vunpack.c.l.b16 %v1413
    %v1915 = vunpack.c.h.b16 %v1413
    %v1916 = vunpack.c.l.b16 %v1414
    %v1917 = vunpack.c.h.b16 %v1414
    %v1918 = vunpack.c.l.b16 %v1415
    %v1919 = vunpack.c.h.b16 %v1415
    %v1920 = vunpack.c.l.b16 %v1416
    %v1921 = vunpack.c.h.b16 %v1416
    %v1922 = vunpack.c.l.b16 %v1417
    %v1923 = vunpack.c.h.b16 %v1417
    %v1924 = vunpack.c.l.b16 %v1418
    %v1925 = vunpack.c.h.b16 %v1418
    %v1926 = vunpack.c.l.b16 %v1419
    %v1927 = vunpack.c.h.b16 %v1419
    %v1928 = vunpack.c.l.b16 %v1420
    %v1929 = vunpack.c.h.b16 %v1420
    %v1930 = vunpack.c.l.b16 %v1421
    %v1931 = vunpack.c.h.b16 %v1421
    %v1932 = vunpack.c.l.b16 %v1422
    %v1933 = vunpack.c.h.b16 %v1422
    %v1934 = vunpack.c.l.b16 %v1423
    %v1935 = vunpack.c.h.b16 %v1423
    %v1936 = vunpack.c.l.b16 %v1424
    %v1937 = vunpack.c.h.b16 %v1424
    %v1938 = vunpack.c.l.b16 %v1425
    %v1939 = vunpack.c.h.b16 %v1425
    %v1940 = vunpack.c.l.b16 %v1426
    %v1941 = vunpack.c.h.b16 %v1426
    %v1942 = vunpack.c.l.b16 %v1427
    %v1943 = vunpack.c.h.b16 %v1427
    %v1944 = vunpack.c.l.b16 %v1428
    %v1945 = vunpack.c.h.b16 %v1428
    %v1946 = vunpack.c.l.b16 %v1429
    %v1947 = vunpack.c.h.b16 %v1429
    %v1948 = vunpack.c.l.b16 %v1430
    %v1949 = vunpack.c.h.b16 %v1430
    %v1950 = vunpack.c.l.b16 %v1431
    %v1951 = vunpack.c.h.b16 %v1431
    %v1952 = vunpack.c.l.b16 %v1432
    %v1953 = vunpack.c.h.b16 %v1432
    %v1954 = vunpack.c.l.b16 %v1433
    %v1955 = vunpack.c.h.b16 %v1433
    %v1956 = vunpack.c.l.b16 %v1434
    %v1957 = vunpack.c.h.b16 %v1434
    %v1958 = vunpack.c.l.b16 %v1435
    %v1959 = vunpack.c.h.b16 %v1435
    %v1960 = vunpack.c.l.b16 %v1436
    %v1961 = vunpack.c.h.b16 %v1436
    %v1962 = vunpack.c.l.b16 %v1437
    %v1963 = vunpack.c.h.b16 %v1437
    %v1964 = vunpack.c.l.b16 %v1438
    %v1965 = vunpack.c.h.b16 %v1438
    %v1966 = vunpack.c.l.b16 %v1439
    %v1967 = vunpack.c.h.b16 %v1439
    %v1968 = vunpack.c.l.b16 %v1440
    %v1969 = vunpack.c.h.b16 %v1440
    %v1970 = vunpack.c.l.b16 %v1441
    %v1971 = vunpack.c.h.b16 %v1441
    %v1972 = vunpack.c.l.b16 %v1442
    %v1973 = vunpack.c.h.b16 %v1442
    %v1974 = vunpack.c.l.b16 %v1443
    %v1975 = vunpack.c.h.b16 %v1443
    %v1976 = vunpack.c.l.b16 %v1444
    %v1977 = vunpack.c.h.b16 %v1444
    %v1978 = vunpack.c.l.b16 %v1445
    %v1979 = vunpack.c.h.b16 %v1445
    %v1980 = vunpack.c.l.b16 %v1446
    %v1981 = vunpack.c.h.b16 %v1446
    %v1982 = vunpack.c.l.b16 %v1447
    %v1983 = vunpack.c.h.b16 %v1447
    %v1984 = vunpack.c.l.b16 %v1448
    %v1985 = vunpack.c.h.b16 %v1448
    %v1986 = vunpack.c.l.b16 %v1449
    %v1987 = vunpack.c.h.b16 %v1449
    %v1988 = vunpack.c.l.b16 %v1450
    %v1989 = vunpack.c.h.b16 %v1450
    %v1990 = vunpack.c.l.b16 %v1451
    %v1991 = vunpack.c.h.b16 %v1451
    %v1992 = vunpack.c.l.b16 %v1452
    %v1993 = vunpack.c.h.b16 %v1452
    %v1994 = vunpack.c.l.b16 %v1453
    %v1995 = vunpack.c.h.b16 %v1453
    %v1996 = vunpack.c.l.b16 %v1454
    %v1997 = vunpack.c.h.b16 %v1454
    %v1998 = vunpack.c.l.b16 %v1455
    %v1999 = vunpack.c.h.b16 %v1455
    %v2000 = vunpack.c.l.b16 %v1456
    %v2001 = vunpack.c.h.b16 %v1456
    %v2002 = vunpack.c.l.b16 %v1457
    %v2003 = vunpack.c.h.b16 %v1457
    %v2004 = vunpack.c.l.b16 %v1458
    %v2005 = vunpack.c.h.b16 %v1458
    %v2006 = vunpack.c.l.b16 %v1459
    %v2007 = vunpack.c.h.b16 %v1459
    %v2008 = vunpack.c.l.b16 %v1460
    %v2009 = vunpack.c.h.b16 %v1460
    %v2010 = vunpack.c.l.b16 %v1461
    %v2011 = vunpack.c.h.b16 %v1461
    %v2012 = vunpack.c.l.b16 %v1462
    %v2013 = vunpack.c.h.b16 %v1462
    %v2014 = vunpack.c.l.b16 %v1463
    %v2015 = vunpack.c.h.b16 %v1463
    %v2016 = vunpack.c.l.b16 %v1464
    %v2017 = vunpack.c.h.b16 %v1464
    %v2018 = vunpack.c.l.b16 %v1465
    %v2019 = vunpack.c.h.b16 %v1465
    %v2020 = vunpack.c.l.b16 %v1466
    %v2021 = vunpack.c.h.b16 %v1466
    %v2022 = vunpack.c.l.b16 %v1467
    %v2023 = vunpack.c.h.b16 %v1467
    %v2024 = vunpack.c.l.b16 %v1468
    %v2025 = vunpack.c.h.b16 %v1468
    %v2026 = vunpack.c.l.b16 %v1469
    %v2027 = vunpack.c.h.b16 %v1469
    %v2028 = vunpack.c.l.b16 %v1470
    %v2029 = vunpack.c.h.b16 %v1470
    %v2030 = vunpack.c.l.b16 %v1471
    %v2031 = vunpack.c.h.b16 %v1471
    %v2032 = vunpack.c.l.b16 %v1472
    %v2033 = vunpack.c.h.b16 %v1472
    %v2034 = vunpack.c.l.b16 %v1473
    %v2035 = vunpack.c.h.b16 %v1473
    %v2036 = vunpack.c.l.b16 %v1474
    %v2037 = vunpack.c.h.b16 %v1474
    %v2038 = vunpack.c.l.b16 %v1475
    %v2039 = vunpack.c.h.b16 %v1475
    %v2040 = vunpack.c.l.b16 %v1476
    %v2041 = vunpack.c.h.b16 %v1476
    %v2042 = vunpack.c.l.b16 %v1477
    %v2043 = vunpack.c.h.b16 %v1477
    %v2044 = vunpack.c.l.b16 %v1478
    %v2045 = vunpack.c.h.b16 %v1478
    %v2046 = vunpack.c.l.b16 %v1479
    %v2047 = vunpack.c.h.b16 %v1479
    %v2048 = vunpack.c.l.b16 %v1480
    %v2049 = vunpack.c.h.b16 %v1480
    %v2050 = vunpack.c.l.b16 %v1481
    %v2051 = vunpack.c.h.b16 %v1481
    %v2052 = vunpack.c.l.b16 %v1482
    %v2053 = vunpack.c.h.b16 %v1482
    %v2054 = vunpack.c.l.b16 %v1483
    %v2055 = vunpack.c.h.b16 %v1483
    %v2056 = vunpack.c.l.b16 %v1484
    %v2057 = vunpack.c.h.b16 %v1484
    %v2058 = vunpack.c.l.b16 %v1485
    %v2059 = vunpack.c.h.b16 %v1485
    %v2060 = vunpack.c.l.b16 %v1486
    %v2061 = vunpack.c.h.b16 %v1486
    %v2062 = vunpack.c.l.b16 %v1487
    %v2063 = vunpack.c.h.b16 %v1487
    %v2064 = vunpack.c.l.b16 %v1488
    %v2065 = vunpack.c.h.b16 %v1488
    %v2066 = vunpack.c.l.b16 %v1489
    %v2067 = vunpack.c.h.b16 %v1489
    %v2068 = vunpack.c.l.b16 %v1490
    %v2069 = vunpack.c.h.b16 %v1490
    %v2070 = vunpack.c.l.b16 %v1491
    %v2071 = vunpack.c.h.b16 %v1491
    %v2072 = vunpack.c.l.b16 %v1492
    %v2073 = vunpack.c.h.b16 %v1492
    %v2074 = vunpack.c.l.b16 %v1493
    %v2075 = vunpack.c.h.b16 %v1493
    %v2076 = vunpack.c.l.b16 %v1494
    %v2077 = vunpack.c.h.b16 %v1494
    %v2078 = vunpack.c.l.b16 %v1495
    %v2079 = vunpack.c.h.b16 %v1495
    %v2080 = vunpack.c.l.b16 %v1496
    %v2081 = vunpack.c.h.b16 %v1496
    %v2082 = vunpack.c.l.b16 %v1497
    %v2083 = vunpack.c.h.b16 %v1497
    %v2084 = vunpack.c.l.b16 %v1498
    %v2085 = vunpack.c.h.b16 %v1498
    %v2086 = vunpack.c.l.b16 %v1499
    %v2087 = vunpack.c.h.b16 %v1499
    %v2088 = vunpack.c.l.b16 %v1500
    %v2089 = vunpack.c.h.b16 %v1500
    %v2090 = vunpack.c.l.b16 %v1501
    %v2091 = vunpack.c.h.b16 %v1501
    %v2092 = vunpack.c.l.b16 %v1502
    %v2093 = vunpack.c.h.b16 %v1502
    %v2094 = vunpack.c.l.b16 %v1503
    %v2095 = vunpack.c.h.b16 %v1503
    %v2096 = vunpack.c.l.b16 %v1504
    %v2097 = vunpack.c.h.b16 %v1504
    %v2098 = vunpack.c.l.b16 %v1505
    %v2099 = vunpack.c.h.b16 %v1505
    %v2100 = vunpack.c.l.b16 %v1506
    %v2101 = vunpack.c.h.b16 %v1506
    %v2102 = vunpack.c.l.b16 %v1507
    %v2103 = vunpack.c.h.b16 %v1507
    %v2104 = vunpack.c.l.b16 %v1508
    %v2105 = vunpack.c.h.b16 %v1508
    %v2106 = vunpack.c.l.b16 %v1509
    %v2107 = vunpack.c.h.b16 %v1509
    %v2108 = vunpack.c.l.b16 %v1510
    %v2109 = vunpack.c.h.b16 %v1510
    %v2110 = vunpack.c.l.b16 %v1511
    %v2111 = vunpack.c.h.b16 %v1511
    %v2112 = vunpack.c.l.b16 %v1512
    %v2113 = vunpack.c.h.b16 %v1512
    %v2114 = vunpack.c.l.b16 %v1513
    %v2115 = vunpack.c.h.b16 %v1513
    %v2116 = vunpack.c.l.b16 %v1514
    %v2117 = vunpack.c.h.b16 %v1514
    %v2118 = vunpack.c.l.b16 %v1515
    %v2119 = vunpack.c.h.b16 %v1515
    %v2120 = vunpack.c.l.b16 %v1516
    %v2121 = vunpack.c.h.b16 %v1516
    %v2122 = vunpack.c.l.b16 %v1517
    %v2123 = vunpack.c.h.b16 %v1517
    %v2124 = vunpack.c.l.b16 %v1518
    %v2125 = vunpack.c.h.b16 %v1518
    %v2126 = vunpack.c.l.b16 %v1519
    %v2127 = vunpack.c.h.b16 %v1519
    %v2128 = vunpack.c.l.b16 %v1520
    %v2129 = vunpack.c.h.b16 %v1520
    %v2130 = vunpack.c.l.b16 %v1521
    %v2131 = vunpack.c.h.b16 %v1521
    %v2132 = vunpack.c.l.b16 %v1522
    %v2133 = vunpack.c.h.b16 %v1522
    %v2134 = vunpack.c.l.b16 %v1523
    %v2135 = vunpack.c.h.b16 %v1523
    %v2136 = vunpack.c.l.b16 %v1524
    %v2137 = vunpack.c.h.b16 %v1524
    %v2138 = vunpack.c.l.b16 %v1525
    %v2139 = vunpack.c.h.b16 %v1525
    %v2140 = vunpack.c.l.b16 %v1526
    %v2141 = vunpack.c.h.b16 %v1526
    %v2142 = vunpack.c.l.b16 %v1527
    %v2143 = vunpack.c.h.b16 %v1527
    %v2144 = vunpack.c.l.b16 %v1528
    %v2145 = vunpack.c.h.b16 %v1528
    %v2146 = vunpack.c.l.b16 %v1529
    %v2147 = vunpack.c.h.b16 %v1529
    %v2148 = vunpack.c.l.b16 %v1530
    %v2149 = vunpack.c.h.b16 %v1530
    %v2150 = vunpack.c.l.b16 %v1531
    %v2151 = vunpack.c.h.b16 %v1531
    %v2152 = vunpack.c.l.b16 %v1532
    %v2153 = vunpack.c.h.b16 %v1532
    %v2154 = vunpack.c.l.b16 %v1533
    %v2155 = vunpack.c.h.b16 %v1533
    %v2156 = vunpack.c.l.b16 %v1534
    %v2157 = vunpack.c.h.b16 %v1534
    %v2158 = vunpack.c.l.b16 %v1535
    %v2159 = vunpack.c.h.b16 %v1535
    %v2160 = vunpack.c.l.b16 %v1536
    %v2161 = vunpack.c.h.b16 %v1536
    %v2162 = vunpack.c.l.b16 %v1537
    %v2163 = vunpack.c.h.b16 %v1537
    %v2164 = vunpack.c.l.b16 %v1538
    %v2165 = vunpack.c.h.b16 %v1538
    %v2166 = vunpack.c.l.b16 %v1539
    %v2167 = vunpack.c.h.b16 %v1539
    %v2168 = vunpack.c.l.b16 %v1540
    %v2169 = vunpack.c.h.b16 %v1540
    %v2170 = vunpack.c.l.b16 %v1541
    %v2171 = vunpack.c.h.b16 %v1541
    %v2172 = vunpack.c.l.b16 %v1542
    %v2173 = vunpack.c.h.b16 %v1542
    %v2174 = vunpack.c.l.b16 %v1543
    %v2175 = vunpack.c.h.b16 %v1543
    %v2176 = vunpack.c.l.b16 %v1544
    %v2177 = vunpack.c.h.b16 %v1544
    %v2178 = vunpack.c.l.b16 %v1545
    %v2179 = vunpack.c.h.b16 %v1545
    %v2180 = vunpack.c.l.b16 %v1546
    %v2181 = vunpack.c.h.b16 %v1546
    %v2182 = vunpack.c.l.b16 %v1547
    %v2183 = vunpack.c.h.b16 %v1547
    %v2184 = vunpack.c.l.b16 %v1548
    %v2185 = vunpack.c.h.b16 %v1548
    %v2186 = vunpack.c.l.b16 %v1549
    %v2187 = vunpack.c.h.b16 %v1549
    %v2188 = vunpack.c.l.b16 %v1550
    %v2189 = vunpack.c.h.b16 %v1550
    %v2190 = vunpack.c.l.b16 %v1551
    %v2191 = vunpack.c.h.b16 %v1551
    %v2192 = vunpack.c.l.b16 %v1552
    %v2193 = vunpack.c.h.b16 %v1552
    %v2194 = vunpack.c.l.b16 %v1553
    %v2195 = vunpack.c.h.b16 %v1553
    %v2196 = vunpack.c.l.b16 %v1554
    %v2197 = vunpack.c.h.b16 %v1554
    %v2198 = vunpack.c.l.b16 %v1555
    %v2199 = vunpack.c.h.b16 %v1555
    %v2200 = vunpack.c.l.b16 %v1556
    %v2201 = vunpack.c.h.b16 %v1556
    %v2202 = vunpack.c.l.b16 %v1557
    %v2203 = vunpack.c.h.b16 %v1557
    %v2204 = vunpack.c.l.b16 %v1558
    %v2205 = vunpack.c.h.b16 %v1558
    %v2206 = vunpack.c.l.b16 %v1559
    %v2207 = vunpack.c.h.b16 %v1559
    %v2208 = vunpack.c.l.b16 %v1560
    %v2209 = vunpack.c.h.b16 %v1560
    %v2210 = vunpack.c.l.b16 %v1561
    %v2211 = vunpack.c.h.b16 %v1561
    %v2212 = vunpack.c.l.b16 %v1562
    %v2213 = vunpack.c.h.b16 %v1562
    %v2214 = vunpack.c.l.b16 %v1563
    %v2215 = vunpack.c.h.b16 %v1563
    %v2216 = vunpack.c.l.b16 %v1564
    %v2217 = vunpack.c.h.b16 %v1564
    %v2218 = vunpack.c.l.b16 %v1565
    %v2219 = vunpack.c.h.b16 %v1565
    %v2220 = vunpack.c.l.b16 %v1566
    %v2221 = vunpack.c.h.b16 %v1566
    %v2222 = vunpack.c.l.b16 %v1567
    %v2223 = vunpack.c.h.b16 %v1567
    %v2224 = vunpack.c.l.b16 %v1568
    %v2225 = vunpack.c.h.b16 %v1568
    %v2226 = vunpack.c.l.b16 %v1569
    %v2227 = vunpack.c.h.b16 %v1569
    %v2228 = vunpack.c.l.b16 %v1570
    %v2229 = vunpack.c.h.b16 %v1570
    %v2230 = vunpack.c.l.b16 %v1571
    %v2231 = vunpack.c.h.b16 %v1571
    %v2232 = vunpack.c.l.b16 %v1572
    %v2233 = vunpack.c.h.b16 %v1572
    %v2234 = vunpack.c.l.b16 %v1573
    %v2235 = vunpack.c.h.b16 %v1573
    %v2236 = vunpack.c.l.b16 %v1574
    %v2237 = vunpack.c.h.b16 %v1574
    %v2238 = vunpack.c.l.b16 %v1575
    %v2239 = vunpack.c.h.b16 %v1575
    %v2240 = vunpack.c.l.b16 %v1576
    %v2241 = vunpack.c.h.b16 %v1576
    %v2242 = vunpack.c.l.b16 %v1577
    %v2243 = vunpack.c.h.b16 %v1577
    %v2244 = vunpack.c.l.b16 %v1578
    %v2245 = vunpack.c.h.b16 %v1578
    %v2246 = vunpack.c.l.b16 %v1579
    %v2247 = vunpack.c.h.b16 %v1579
    %v2248 = vunpack.c.l.b16 %v1580
    %v2249 = vunpack.c.h.b16 %v1580
    %v2250 = vunpack.c.l.b16 %v1581
    %v2251 = vunpack.c.h.b16 %v1581
    %v2252 = vunpack.c.l.b16 %v1582
    %v2253 = vunpack.c.h.b16 %v1582
    %v2254 = vunpack.c.l.b16 %v1583
    %v2255 = vunpack.c.h.b16 %v1583
    %v2256 = vunpack.c.l.b16 %v1584
    %v2257 = vunpack.c.h.b16 %v1584
    %v2258 = vunpack.c.l.b16 %v1585
    %v2259 = vunpack.c.h.b16 %v1585
    %v2260 = vunpack.c.l.b16 %v1586
    %v2261 = vunpack.c.h.b16 %v1586
    %v2262 = vunpack.c.l.b16 %v1587
    %v2263 = vunpack.c.h.b16 %v1587
    %v2264 = vunpack.c.l.b16 %v1588
    %v2265 = vunpack.c.h.b16 %v1588
    %v2266 = vunpack.c.l.b16 %v1589
    %v2267 = vunpack.c.h.b16 %v1589
    %v2268 = vunpack.c.l.b16 %v1590
    %v2269 = vunpack.c.h.b16 %v1590
    %v2270 = vunpack.c.l.b16 %v1591
    %v2271 = vunpack.c.h.b16 %v1591
    %v2272 = vunpack.c.l.b16 %v1592
    %v2273 = vunpack.c.h.b16 %v1592
    %v2274 = vunpack.c.l.b16 %v1593
    %v2275 = vunpack.c.h.b16 %v1593
    %v2276 = vunpack.c.l.b16 %v1594
    %v2277 = vunpack.c.h.b16 %v1594
    %v2278 = vunpack.c.l.b16 %v1595
    %v2279 = vunpack.c.h.b16 %v1595
    %v2280 = vunpack.c.l.b16 %v1596
    %v2281 = vunpack.c.h.b16 %v1596
    %v2282 = vunpack.c.l.b16 %v1597
    %v2283 = vunpack.c.h.b16 %v1597
    %v2284 = vunpack.c.l.b16 %v1598
    %v2285 = vunpack.c.h.b16 %v1598
    %v2286 = vunpack.c.l.b16 %v1599
    %v2287 = vunpack.c.h.b16 %v1599
    %v2288 = vunpack.c.l.b16 %v1600
    %v2289 = vunpack.c.h.b16 %v1600
    %v2290 = vunpack.c.l.b16 %v1601
    %v2291 = vunpack.c.h.b16 %v1601
    %v2292 = vunpack.c.l.b16 %v1602
    %v2293 = vunpack.c.h.b16 %v1602
    %v2294 = vunpack.c.l.b16 %v1603
    %v2295 = vunpack.c.h.b16 %v1603
    %v2296 = vunpack.c.l.b16 %v1604
    %v2297 = vunpack.c.h.b16 %v1604
    %v2298 = vunpack.c.l.b16 %v1605
    %v2299 = vunpack.c.h.b16 %v1605
    %v2300 = vunpack.c.l.b16 %v1606
    %v2301 = vunpack.c.h.b16 %v1606
    %v2302 = vunpack.c.l.b16 %v1607
    %v2303 = vunpack.c.h.b16 %v1607
    %v2304 = vunpack.c.l.b16 %v1608
    %v2305 = vunpack.c.h.b16 %v1608
    %v2306 = vunpack.c.l.b16 %v1609
    %v2307 = vunpack.c.h.b16 %v1609
    %v2308 = vunpack.c.l.b16 %v1610
    %v2309 = vunpack.c.h.b16 %v1610
    %v2310 = vunpack.c.l.b16 %v1611
    %v2311 = vunpack.c.h.b16 %v1611
    %v2312 = vunpack.c.l.b16 %v1612
    %v2313 = vunpack.c.h.b16 %v1612
    %v2314 = vunpack.c.l.b16 %v1613
    %v2315 = vunpack.c.h.b16 %v1613
    %v2316 = vunpack.c.l.b16 %v1614
    %v2317 = vunpack.c.h.b16 %v1614
    %v2318 = vunpack.c.l.b16 %v1615
    %v2319 = vunpack.c.h.b16 %v1615
    %v2320 = vunpack.c.l.b16 %v1616
    %v2321 = vunpack.c.h.b16 %v1616
    %v2322 = vunpack.c.l.b16 %v1617
    %v2323 = vunpack.c.h.b16 %v1617
    %v2324 = vunpack.c.l.b16 %v1618
    %v2325 = vunpack.c.h.b16 %v1618
    %v2326 = vunpack.c.l.b16 %v1619
    %v2327 = vunpack.c.h.b16 %v1619
    %v2328 = vunpack.c.l.b16 %v1620
    %v2329 = vunpack.c.h.b16 %v1620
    %v2330 = vunpack.c.l.b16 %v1621
    %v2331 = vunpack.c.h.b16 %v1621
    %v2332 = vunpack.c.l.b16 %v1622
    %v2333 = vunpack.c.h.b16 %v1622
    %v2334 = vunpack.c.l.b16 %v1623
    %v2335 = vunpack.c.h.b16 %v1623
    %v2336 = vunpack.c.l.b16 %v1624
    %v2337 = vunpack.c.h.b16 %v1624
    %v2338 = vunpack.c.l.b16 %v1625
    %v2339 = vunpack.c.h.b16 %v1625
    %v2340 = vunpack.c.l.b16 %v1626
    %v2341 = vunpack.c.h.b16 %v1626
    %v2342 = vunpack.c.l.b16 %v1627
    %v2343 = vunpack.c.h.b16 %v1627
    %v2344 = vunpack.c.l.b16 %v1628
    %v2345 = vunpack.c.h.b16 %v1628
    %v2346 = vunpack.c.l.b16 %v1629
    %v2347 = vunpack.c.h.b16 %v1629
    %v2348 = vunpack.c.l.b16 %v1630
    %v2349 = vunpack.c.h.b16 %v1630
    %v2350 = vunpack.c.l.b16 %v1631
    %v2351 = vunpack.c.h.b16 %v1631
    %v2352 = vunpack.c.l.b16 %v1632
    %v2353 = vunpack.c.h.b16 %v1632
    %v2354 = vunpack.c.l.b16 %v1633
    %v2355 = vunpack.c.h.b16 %v1633
    %v2356 = vunpack.c.l.b16 %v1634
    %v2357 = vunpack.c.h.b16 %v1634
    %v2358 = vunpack.c.l.b16 %v1635
    %v2359 = vunpack.c.h.b16 %v1635
    %v2360 = vunpack.c.l.b16 %v1636
    %v2361 = vunpack.c.h.b16 %v1636
    %v2362 = vunpack.c.l.b16 %v1637
    %v2363 = vunpack.c.h.b16 %v1637
    %v2364 = vunpack.c.l.b16 %v1638
    %v2365 = vunpack.c.h.b16 %v1638
    %v2366 = vunpack.c.l.b16 %v1639
    %v2367 = vunpack.c.h.b16 %v1639
    %v2368 = vunpack.c.l.b16 %v1640
    %v2369 = vunpack.c.h.b16 %v1640
    %v2370 = vunpack.c.l.b16 %v1641
    %v2371 = vunpack.c.h.b16 %v1641
    %v2372 = vunpack.c.l.b16 %v1642
    %v2373 = vunpack.c.h.b16 %v1642
    %v2374 = vunpack.c.l.b16 %v1643
    %v2375 = vunpack.c.h.b16 %v1643
    %v2376 = vpack.c.b16 %v1898, %v1896
    %v2377 = vpack.c.b16 %v1899, %v1897
    %v2378 = vpack.c.b16 %v1902, %v1900
    %v2379 = vpack.c.b16 %v1903, %v1901
    %v2380 = vpack.c.b16 %v1906, %v1904
    %v2381 = vpack.c.b16 %v1907, %v1905
    %v2382 = vpack.c.b16 %v1910, %v1908
    %v2383 = vpack.c.b16 %v1911, %v1909
    %v2384 = vpack.c.b16 %v1914, %v1912
    %v2385 = vpack.c.b16 %v1915, %v1913
    %v2386 = vpack.c.b16 %v1918, %v1916
    %v2387 = vpack.c.b16 %v1919, %v1917
    %v2388 = vpack.c.b16 %v1922, %v1920
    %v2389 = vpack.c.b16 %v1923, %v1921
    %v2390 = vpack.c.b16 %v1926, %v1924
    %v2391 = vpack.c.b16 %v1927, %v1925
    %v2392 = vpack.c.b16 %v1930, %v1928
    %v2393 = vpack.c.b16 %v1931, %v1929
    %v2394 = vpack.c.b16 %v1934, %v1932
    %v2395 = vpack.c.b16 %v1935, %v1933
    %v2396 = vpack.c.b16 %v1938, %v1936
    %v2397 = vpack.c.b16 %v1939, %v1937
    %v2398 = vpack.c.b16 %v1942, %v1940
    %v2399 = vpack.c.b16 %v1943, %v1941
    %v2400 = vpack.c.b16 %v1946, %v1944
    %v2401 = vpack.c.b16 %v1947, %v1945
    %v2402 = vpack.c.b16 %v1950, %v1948
    %v2403 = vpack.c.b16 %v1951, %v1949
    %v2404 = vpack.c.b16 %v1954, %v1952
    %v2405 = vpack.c.b16 %v1955, %v1953
    %v2406 = vpack.c.b16 %v1958, %v1956
    %v2407 = vpack.c.b16 %v1959, %v1957
    %v2408 = vpack.c.b16 %v1962, %v1960
    %v2409 = vpack.c.b16 %v1963, %v1961
    %v2410 = vpack.c.b16 %v1966, %v1964
    %v2411 = vpack.c.b16 %v1967, %v1965
    %v2412 = vpack.c.b16 %v1970, %v1968
    %v2413 = vpack.c.b16 %v1971, %v1969
    %v2414 = vpack.c.b16 %v1974, %v1972
    %v2415 = vpack.c.b16 %v1975, %v1973
    %v2416 = vpack.c.b16 %v1978, %v1976
    %v2417 = vpack.c.b16 %v1979, %v1977
    %v2418 = vpack.c.b16 %v1982, %v1980
    %v2419 = vpack.c.b16 %v1983, %v1981
    %v2420 = vpack.c.b16 %v1986, %v1984
    %v2421 = vpack.c.b16 %v1987, %v1985
    %v2422 = vpack.c.b16 %v1990, %v1988
    %v2423 = vpack.c.b16 %v1991, %v1989
    %v2424 = vpack.c.b16 %v1994, %v1992
    %v2425 = vpack.c.b16 %v1995, %v1993
    %v2426 = vpack.c.b16 %v1998, %v1996
    %v2427 = vpack.c.b16 %v1999, %v1997
    %v2428 = vpack.c.b16 %v2002, %v2000
    %v2429 = vpack.c.b16 %v2003, %v2001
    %v2430 = vpack.c.b16 %v2006, %v2004
    %v2431 = vpack.c.b16 %v2007, %v2005
    %v2432 = vpack.c.b16 %v2010, %v2008
    %v2433 = vpack.c.b16 %v2011, %v2009
    %v2434 = vpack.c.b16 %v2014, %v2012
    %v2435 = vpack.c.b16 %v2015, %v2013
    %v2436 = vpack.c.b16 %v2018, %v2016
    %v2437 = vpack.c.b16 %v2019, %v2017
    %v2438 = vpack.c.b16 %v2022, %v2020
    %v2439 = vpack.c.b16 %v2023, %v2021
    %v2440 = vpack.c.b16 %v2026, %v2024
    %v2441 = vpack.c.b16 %v2027, %v2025
    %v2442 = vpack.c.b16 %v2030, %v2028
    %v2443 = vpack.c.b16 %v2031, %v2029
    %v2444 = vpack.c.b16 %v2034, %v2032
    %v2445 = vpack.c.b16 %v2035, %v2033
    %v2446 = vpack.c.b16 %v2038, %v2036
    %v2447 = vpack.c.b16 %v2039, %v2037
    %v2448 = vpack.c.b16 %v2042, %v2040
    %v2449 = vpack.c.b16 %v2043, %v2041
    %v2450 = vpack.c.b16 %v2046, %v2044
    %v2451 = vpack.c.b16 %v2047, %v2045
    %v2452 = vpack.c.b16 %v2050, %v2048
    %v2453 = vpack.c.b16 %v2051, %v2049
    %v2454 = vpack.c.b16 %v2054, %v2052
    %v2455 = vpack.c.b16 %v2055, %v2053
    %v2456 = vpack.c.b16 %v2058, %v2056
    %v2457 = vpack.c.b16 %v2059, %v2057
    %v2458 = vpack.c.b16 %v2062, %v2060
    %v2459 = vpack.c.b16 %v2063, %v2061
    %v2460 = vpack.c.b16 %v2066, %v2064
    %v2461 = vpack.c.b16 %v2067, %v2065
    %v2462 = vpack.c.b16 %v2070, %v2068
    %v2463 = vpack.c.b16 %v2071, %v2069
    %v2464 = vpack.c.b16 %v2074, %v2072
    %v2465 = vpack.c.b16 %v2075, %v2073
    %v2466 = vpack.c.b16 %v2078, %v2076
    %v2467 = vpack.c.b16 %v2079, %v2077
    %v2468 = vpack.c.b16 %v2082, %v2080
    %v2469 = vpack.c.b16 %v2083, %v2081
    %v2470 = vpack.c.b16 %v2086, %v2084
    %v2471 = vpack.c.b16 %v2087, %v2085
    %v2472 = vpack.c.b16 %v2090, %v2088
    %v2473 = vpack.c.b16 %v2091, %v2089
    %v2474 = vpack.c.b16 %v2094, %v2092
    %v2475 = vpack.c.b16 %v2095, %v2093
    %v2476 = vpack.c.b16 %v2098, %v2096
    %v2477 = vpack.c.b16 %v2099, %v2097
    %v2478 = vpack.c.b16 %v2102, %v2100
    %v2479 = vpack.c.b16 %v2103, %v2101
    %v2480 = vpack.c.b16 %v2106, %v2104
    %v2481 = vpack.c.b16 %v2107, %v2105
    %v2482 = vpack.c.b16 %v2110, %v2108
    %v2483 = vpack.c.b16 %v2111, %v2109
    %v2484 = vpack.c.b16 %v2114, %v2112
    %v2485 = vpack.c.b16 %v2115, %v2113
    %v2486 = vpack.c.b16 %v2118, %v2116
    %v2487 = vpack.c.b16 %v2119, %v2117
    %v2488 = vpack.c.b16 %v2122, %v2120
    %v2489 = vpack.c.b16 %v2123, %v2121
    %v2490 = vpack.c.b16 %v2126, %v2124
    %v2491 = vpack.c.b16 %v2127, %v2125
    %v2492 = vpack.c.b16 %v2130, %v2128
    %v2493 = vpack.c.b16 %v2131, %v2129
    %v2494 = vpack.c.b16 %v2134, %v2132
    %v2495 = vpack.c.b16 %v2135, %v2133
    %v2496 = vpack.c.b16 %v2138, %v2136
    %v2497 = vpack.c.b16 %v2139, %v2137
    %v2498 = vpack.c.b16 %v2142, %v2140
    %v2499 = vpack.c.b16 %v2143, %v2141
    %v2500 = vpack.c.b16 %v2146, %v2144
    %v2501 = vpack.c.b16 %v2147, %v2145
    %v2502 = vpack.c.b16 %v2150, %v2148
    %v2503 = vpack.c.b16 %v2151, %v2149
    %v2504 = vpack.c.b16 %v2154, %v2152
    %v2505 = vpack.c.b16 %v2155, %v2153
    %v2506 = vpack.c.b16 %v2158, %v2156
    %v2507 = vpack.c.b16 %v2159, %v2157
    %v2508 = vpack.c.b16 %v2162, %v2160
    %v2509 = vpack.c.b16 %v2163, %v2161
    %v2510 = vpack.c.b16 %v2166, %v2164
    %v2511 = vpack.c.b16 %v2167, %v2165
    %v2512 = vpack.c.b16 %v2170, %v2168
    %v2513 = vpack.c.b16 %v2171, %v2169
    %v2514 = vpack.c.b16 %v2174, %v2172
    %v2515 = vpack.c.b16 %v2175, %v2173
    %v2516 = vpack.c.b16 %v2178, %v2176
    %v2517 = vpack.c.b16 %v2179, %v2177
    %v2518 = vpack.c.b16 %v2182, %v2180
    %v2519 = vpack.c.b16 %v2183, %v2181
    %v2520 = vpack.c.b16 %v2186, %v2184
    %v2521 = vpack.c.b16 %v2187, %v2185
    %v2522 = vpack.c.b16 %v2190, %v2188
    %v2523 = vpack.c.b16 %v2191, %v2189
    %v2524 = vpack.c.b16 %v2194, %v2192
    %v2525 = vpack.c.b16 %v2195, %v2193
    %v2526 = vpack.c.b16 %v2198, %v2196
    %v2527 = vpack.c.b16 %v2199, %v2197
    %v2528 = vpack.c.b16 %v2202, %v2200
    %v2529 = vpack.c.b16 %v2203, %v2201
    %v2530 = vpack.c.b16 %v2206, %v2204
    %v2531 = vpack.c.b16 %v2207, %v2205
    %v2532 = vpack.c.b16 %v2210, %v2208
    %v2533 = vpack.c.b16 %v2211, %v2209
    %v2534 = vpack.c.b16 %v2214, %v2212
    %v2535 = vpack.c.b16 %v2215, %v2213
    %v2536 = vpack.c.b16 %v2218, %v2216
    %v2537 = vpack.c.b16 %v2219, %v2217
    %v2538 = vpack.c.b16 %v2222, %v2220
    %v2539 = vpack.c.b16 %v2223, %v2221
    %v2540 = vpack.c.b16 %v2226, %v2224
    %v2541 = vpack.c.b16 %v2227, %v2225
    %v2542 = vpack.c.b16 %v2230, %v2228
    %v2543 = vpack.c.b16 %v2231, %v2229
    %v2544 = vpack.c.b16 %v2234, %v2232
    %v2545 = vpack.c.b16 %v2235, %v2233
    %v2546 = vpack.c.b16 %v2238, %v2236
    %v2547 = vpack.c.b16 %v2239, %v2237
    %v2548 = vpack.c.b16 %v2242, %v2240
    %v2549 = vpack.c.b16 %v2243, %v2241
    %v2550 = vpack.c.b16 %v2246, %v2244
    %v2551 = vpack.c.b16 %v2247, %v2245
    %v2552 = vpack.c.b16 %v2250, %v2248
    %v2553 = vpack.c.b16 %v2251, %v2249
    %v2554 = vpack.c.b16 %v2254, %v2252
    %v2555 = vpack.c.b16 %v2255, %v2253
    %v2556 = vpack.c.b16 %v2258, %v2256
    %v2557 = vpack.c.b16 %v2259, %v2257
    %v2558 = vpack.c.b16 %v2262, %v2260
    %v2559 = vpack.c.b16 %v2263, %v2261
    %v2560 = vpack.c.b16 %v2266, %v2264
    %v2561 = vpack.c.b16 %v2267, %v2265
    %v2562 = vpack.c.b16 %v2270, %v2268
    %v2563 = vpack.c.b16 %v2271, %v2269
    %v2564 = vpack.c.b16 %v2274, %v2272
    %v2565 = vpack.c.b16 %v2275, %v2273
    %v2566 = vpack.c.b16 %v2278, %v2276
    %v2567 = vpack.c.b16 %v2279, %v2277
    %v2568 = vpack.c.b16 %v2282, %v2280
    %v2569 = vpack.c.b16 %v2283, %v2281
    %v2570 = vpack.c.b16 %v2286, %v2284
    %v2571 = vpack.c.b16 %v2287, %v2285
    %v2572 = vpack.c.b16 %v2290, %v2288
    %v2573 = vpack.c.b16 %v2291, %v2289
    %v2574 = vpack.c.b16 %v2294, %v2292
    %v2575 = vpack.c.b16 %v2295, %v2293
    %v2576 = vpack.c.b16 %v2298, %v2296
    %v2577 = vpack.c.b16 %v2299, %v2297
    %v2578 = vpack.c.b16 %v2302, %v2300
    %v2579 = vpack.c.b16 %v2303, %v2301
    %v2580 = vpack.c.b16 %v2306, %v2304
    %v2581 = vpack.c.b16 %v2307, %v2305
    %v2582 = vpack.c.b16 %v2310, %v2308
    %v2583 = vpack.c.b16 %v2311, %v2309
    %v2584 = vpack.c.b16 %v2314, %v2312
    %v2585 = vpack.c.b16 %v2315, %v2313
    %v2586 = vpack.c.b16 %v2318, %v2316
    %v2587 = vpack.c.b16 %v2319, %v2317
    %v2588 = vpack.c.b16 %v2322, %v2320
    %v2589 = vpack.c.b16 %v2323, %v2321
    %v2590 = vpack.c.b16 %v2326, %v2324
    %v2591 = vpack.c.b16 %v2327, %v2325
    %v2592 = vpack.c.b16 %v2330, %v2328
    %v2593 = vpack.c.b16 %v2331, %v2329
    %v2594 = vpack.c.b16 %v2334, %v2332
    %v2595 = vpack.c.b16 %v2335, %v2333
    %v2596 = vpack.c.b16 %v2338, %v2336
    %v2597 = vpack.c.b16 %v2339, %v2337
    %v2598 = vpack.c.b16 %v2342, %v2340
    %v2599 = vpack.c.b16 %v2343, %v2341
    %v2600 = vpack.c.b16 %v2346, %v2344
    %v2601 = vpack.c.b16 %v2347, %v2345
    %v2602 = vpack.c.b16 %v2350, %v2348
    %v2603 = vpack.c.b16 %v2351, %v2349
    %v2604 = vpack.c.b16 %v2354, %v2352
    %v2605 = vpack.c.b16 %v2355, %v2353
    %v2606 = vpack.c.b16 %v2358, %v2356
    %v2607 = vpack.c.b16 %v2359, %v2357
    %v2608 = vpack.c.b16 %v2362, %v2360
    %v2609 = vpack.c.b16 %v2363, %v2361
    %v2610 = vpack.c.b16 %v2366, %v2364
    %v2611 = vpack.c.b16 %v2367, %v2365
    %v2612 = vpack.c.b16 %v2370, %v2368
    %v2613 = vpack.c.b16 %v2371, %v2369
    %v2614 = vpack.c.b16 %v2374, %v2372
    %v2615 = vpack.c.b16 %v2375, %v2373
    %2856 = vmatprep.subr.bf16.mxu0 %v2377
    %2857 = vmatpush1.bf16.msra.mxu0 %v2376
    %2858 = vmatprep.subr.bf16.mxu0 %v2379
    %2859 = vmatpush1.bf16.msra.mxu0 %v2378
    %2860 = vmatprep.subr.bf16.mxu0 %v2381
    %2861 = vmatpush1.bf16.msra.mxu0 %v2380
    %2862 = vmatprep.subr.bf16.mxu0 %v2383
    %2863 = vmatpush1.bf16.msra.mxu0 %v2382
    %2864 = vmatprep.subr.bf16.mxu0 %v2385
    %2865 = vmatpush1.bf16.msra.mxu0 %v2384
    %2866 = vmatprep.subr.bf16.mxu0 %v2387
    %2867 = vmatpush1.bf16.msra.mxu0 %v2386
    %2868 = vmatprep.subr.bf16.mxu0 %v2389
    %2869 = vmatpush1.bf16.msra.mxu0 %v2388
    %2870 = vmatprep.subr.bf16.mxu0 %v2391
    %2871 = vmatpush1.bf16.msra.mxu0 %v2390
    %2872 = vmatprep.subr.bf16.mxu0 %v2393
    %2873 = vmatpush1.bf16.msra.mxu0 %v2392
    %2874 = vmatprep.subr.bf16.mxu0 %v2395
    %2875 = vmatpush1.bf16.msra.mxu0 %v2394
    %2876 = vmatprep.subr.bf16.mxu0 %v2397
    %2877 = vmatpush1.bf16.msra.mxu0 %v2396
    %2878 = vmatprep.subr.bf16.mxu0 %v2399
    %2879 = vmatpush1.bf16.msra.mxu0 %v2398
    %2880 = vmatprep.subr.bf16.mxu0 %v2401
    %2881 = vmatpush1.bf16.msra.mxu0 %v2400
    %2882 = vmatprep.subr.bf16.mxu0 %v2403
    %2883 = vmatpush1.bf16.msra.mxu0 %v2402
    %2884 = vmatprep.subr.bf16.mxu0 %v2405
    %2885 = vmatpush1.bf16.msra.mxu0 %v2404
    %2886 = vmatprep.subr.bf16.mxu0 %v2407
    %2887 = vmatpush1.bf16.msra.mxu0 %v2406
    %2888 = vmatprep.mubr.bf16.mxu0 %v1372
    %2889 = vmatmul.mubr.bf16.gmra.mrb[0].mxu0 %v1371
    %v2890 = vpop.f32.mrb[0].mxu0
    %v2891 = vadd.f32 %v1649, %v2890
    %v2892 = vpop.f32.mrb[0].mxu0
    %v2893 = vadd.f32 %v1653, %v2892
    %v2894 = vpop.f32.mrb[0].mxu0
    %v2895 = vadd.f32 %v1649, %v2894
    %v2896 = vpop.f32.mrb[0].mxu0
    %v2897 = vadd.f32 %v1653, %v2896
    %2898 = vmatprep.mubr.bf16.mxu0 %v1378
    %2899 = vmatmul.mubr.bf16.gmra.mrb[0].mxu0 %v1377
    %v2900 = vpop.f32.mrb[0].mxu0
    %v2901 = vadd.f32 %v1649, %v2900
    %v2902 = vpop.f32.mrb[0].mxu0
    %v2903 = vadd.f32 %v1653, %v2902
    %v2904 = vpop.f32.mrb[0].mxu0
    %v2905 = vadd.f32 %v1649, %v2904
    %v2906 = vpop.f32.mrb[0].mxu0
    %v2907 = vadd.f32 %v1653, %v2906
    %2908 = vmatprep.mubr.bf16.mxu0 %v1384
    %2909 = vmatmul.mubr.bf16.gmra.mrb[0].mxu0 %v1383
    %v2910 = vpop.f32.mrb[0].mxu0
    %v2911 = vadd.f32 %v1649, %v2910
    %v2912 = vpop.f32.mrb[0].mxu0
    %v2913 = vadd.f32 %v1653, %v2912
    %v2914 = vpop.f32.mrb[0].mxu0
    %v2915 = vadd.f32 %v1649, %v2914
    %v2916 = vpop.f32.mrb[0].mxu0
    %v2917 = vadd.f32 %v1653, %v2916
    %2918 = vmatprep.mubr.bf16.mxu0 %v1390
    %2919 = vmatmul.mubr.bf16.gmra.mrb[0].mxu0 %v1389
    %v2920 = vpop.f32.mrb[0].mxu0
    %v2921 = vadd.f32 %v1649, %v2920
    %v2922 = vpop.f32.mrb[0].mxu0
    %v2923 = vadd.f32 %v1653, %v2922
    %v2924 = vpop.f32.mrb[0].mxu0
    %v2925 = vadd.f32 %v1649, %v2924
    %v2926 = vpop.f32.mrb[0].mxu0
    %v2927 = vadd.f32 %v1653, %v2926
    %2928 = vdwg.mxu0
    %2929 = vmatprep.subr.bf16.mxu0 %v2409
    %2930 = vmatpush1.bf16.msra.mxu0 %v2408
    %2931 = vmatprep.subr.bf16.mxu0 %v2411
    %2932 = vmatpush1.bf16.msra.mxu0 %v2410
    %2933 = vmatprep.subr.bf16.mxu0 %v2413
    %2934 = vmatpush1.bf16.msra.mxu0 %v2412
    %2935 = vmatprep.subr.bf16.mxu0 %v2415
    %2936 = vmatpush1.bf16.msra.mxu0 %v2414
    %2937 = vmatprep.subr.bf16.mxu0 %v2417
    %2938 = vmatpush1.bf16.msra.mxu0 %v2416
    %2939 = vmatprep.subr.bf16.mxu0 %v2419
    %2940 = vmatpush1.bf16.msra.mxu0 %v2418
    %2941 = vmatprep.subr.bf16.mxu0 %v2421
    %2942 = vmatpush1.bf16.msra.mxu0 %v2420
    %2943 = vmatprep.subr.bf16.mxu0 %v2423
    %2944 = vmatpush1.bf16.msra.mxu0 %v2422
    %2945 = vmatprep.subr.bf16.mxu0 %v2425
    %2946 = vmatpush1.bf16.msra.mxu0 %v2424
    %2947 = vmatprep.subr.bf16.mxu0 %v2427
    %2948 = vmatpush1.bf16.msra.mxu0 %v2426
    %2949 = vmatprep.subr.bf16.mxu0 %v2429
    %2950 = vmatpush1.bf16.msra.mxu0 %v2428
    %2951 = vmatprep.subr.bf16.mxu0 %v2431
    %2952 = vmatpush1.bf16.msra.mxu0 %v2430
    %2953 = vmatprep.subr.bf16.mxu0 %v2433
    %2954 = vmatpush1.bf16.msra.mxu0 %v2432
    %2955 = vmatprep.subr.bf16.mxu0 %v2435
    %2956 = vmatpush1.bf16.msra.mxu0 %v2434
    %2957 = vmatprep.subr.bf16.mxu0 %v2437
    %2958 = vmatpush1.bf16.msra.mxu0 %v2436
    %2959 = vmatprep.subr.bf16.mxu0 %v2439
    %2960 = vmatpush1.bf16.msra.mxu0 %v2438
    %2961 = vmatprep.mubr.bf16.mxu0 %v1374
    %2962 = vmatmul.mubr.bf16.gmra.mrb[0].mxu0 %v1373
    %v2963 = vpop.f32.mrb[0].mxu0
    %v2964 = vadd.f32 %v2891, %v2963
    %v2965 = vpop.f32.mrb[0].mxu0
    %v2966 = vadd.f32 %v2893, %v2965
    %v2967 = vpop.f32.mrb[0].mxu0
    %v2968 = vadd.f32 %v2895, %v2967
    %v2969 = vpop.f32.mrb[0].mxu0
    %v2970 = vadd.f32 %v2897, %v2969
    %2971 = vmatprep.mubr.bf16.mxu0 %v1380
    %2972 = vmatmul.mubr.bf16.gmra.mrb[0].mxu0 %v1379
    %v2973 = vpop.f32.mrb[0].mxu0
    %v2974 = vadd.f32 %v2901, %v2973
    %v2975 = vpop.f32.mrb[0].mxu0
    %v2976 = vadd.f32 %v2903, %v2975
    %v2977 = vpop.f32.mrb[0].mxu0
    %v2978 = vadd.f32 %v2905, %v2977
    %v2979 = vpop.f32.mrb[0].mxu0
    %v2980 = vadd.f32 %v2907, %v2979
    %2981 = vmatprep.mubr.bf16.mxu0 %v1386
    %2982 = vmatmul.mubr.bf16.gmra.mrb[0].mxu0 %v1385
    %v2983 = vpop.f32.mrb[0].mxu0
    %v2984 = vadd.f32 %v2911, %v2983
    %v2985 = vpop.f32.mrb[0].mxu0
    %v2986 = vadd.f32 %v2913, %v2985
    %v2987 = vpop.f32.mrb[0].mxu0
    %v2988 = vadd.f32 %v2915, %v2987
    %v2989 = vpop.f32.mrb[0].mxu0
    %v2990 = vadd.f32 %v2917, %v2989
    %2991 = vmatprep.mubr.bf16.mxu0 %v1392
    %2992 = vmatmul.mubr.bf16.gmra.mrb[0].mxu0 %v1391
    %v2993 = vpop.f32.mrb[0].mxu0
    %v2994 = vadd.f32 %v2921, %v2993
    %v2995 = vpop.f32.mrb[0].mxu0
    %v2996 = vadd.f32 %v2923, %v2995
    %v2997 = vpop.f32.mrb[0].mxu0
    %v2998 = vadd.f32 %v2925, %v2997
    %v2999 = vpop.f32.mrb[0].mxu0
    %v3000 = vadd.f32 %v2927, %v2999
    %3001 = vdwg.mxu0
    %3002 = vmatprep.subr.bf16.mxu0 %v2441
    %3003 = vmatpush1.bf16.msra.mxu0 %v2440
    %3004 = vmatprep.subr.bf16.mxu0 %v2443
    %3005 = vmatpush1.bf16.msra.mxu0 %v2442
    %3006 = vmatprep.subr.bf16.mxu0 %v2445
    %3007 = vmatpush1.bf16.msra.mxu0 %v2444
    %3008 = vmatprep.subr.bf16.mxu0 %v2447
    %3009 = vmatpush1.bf16.msra.mxu0 %v2446
    %3010 = vmatprep.subr.bf16.mxu0 %v2449
    %3011 = vmatpush1.bf16.msra.mxu0 %v2448
    %3012 = vmatprep.subr.bf16.mxu0 %v2451
    %3013 = vmatpush1.bf16.msra.mxu0 %v2450
    %3014 = vmatprep.subr.bf16.mxu0 %v2453
    %3015 = vmatpush1.bf16.msra.mxu0 %v2452
    %3016 = vmatprep.subr.bf16.mxu0 %v2455
    %3017 = vmatpush1.bf16.msra.mxu0 %v2454
    %3018 = vmatprep.subr.bf16.mxu0 %v2457
    %3019 = vmatpush1.bf16.msra.mxu0 %v2456
    %3020 = vmatprep.subr.bf16.mxu0 %v2459
    %3021 = vmatpush1.bf16.msra.mxu0 %v2458
    %3022 = vmatprep.subr.bf16.mxu0 %v2461
    %3023 = vmatpush1.bf16.msra.mxu0 %v2460
    %3024 = vmatprep.subr.bf16.mxu0 %v2463
    %3025 = vmatpush1.bf16.msra.mxu0 %v2462
    %3026 = vmatprep.subr.bf16.mxu0 %v2465
    %3027 = vmatpush1.bf16.msra.mxu0 %v2464
    %3028 = vmatprep.subr.bf16.mxu0 %v2467
    %3029 = vmatpush1.bf16.msra.mxu0 %v2466
    %3030 = vmatprep.subr.bf16.mxu0 %v2469
    %3031 = vmatpush1.bf16.msra.mxu0 %v2468
    %3032 = vmatprep.subr.bf16.mxu0 %v2471
    %3033 = vmatpush1.bf16.msra.mxu0 %v2470
    %3034 = vmatprep.mubr.bf16.mxu0 %v1376
    %3035 = vmatmul.mubr.bf16.gmra.mrb[0].mxu0 %v1375
    %v3036 = vpop.f32.mrb[0].mxu0
    %v3037 = vadd.f32 %v2964, %v3036
    %v3038 = vpop.f32.mrb[0].mxu0
    %v3039 = vadd.f32 %v2966, %v3038
    %v3040 = vpop.f32.mrb[0].mxu0
    %v3041 = vadd.f32 %v2968, %v3040
    %v3042 = vpop.f32.mrb[0].mxu0
    %v3043 = vadd.f32 %v2970, %v3042
    %3044 = vmatprep.mubr.bf16.mxu0 %v1382
    %3045 = vmatmul.mubr.bf16.gmra.mrb[0].mxu0 %v1381
    %v3046 = vpop.f32.mrb[0].mxu0
    %v3047 = vadd.f32 %v2974, %v3046
    %v3048 = vpop.f32.mrb[0].mxu0
    %v3049 = vadd.f32 %v2976, %v3048
    %v3050 = vpop.f32.mrb[0].mxu0
    %v3051 = vadd.f32 %v2978, %v3050
    %v3052 = vpop.f32.mrb[0].mxu0
    %v3053 = vadd.f32 %v2980, %v3052
    %3054 = vmatprep.mubr.bf16.mxu0 %v1388
    %3055 = vmatmul.mubr.bf16.gmra.mrb[0].mxu0 %v1387
    %v3056 = vpop.f32.mrb[0].mxu0
    %v3057 = vadd.f32 %v2984, %v3056
    %v3058 = vpop.f32.mrb[0].mxu0
    %v3059 = vadd.f32 %v2986, %v3058
    %v3060 = vpop.f32.mrb[0].mxu0
    %v3061 = vadd.f32 %v2988, %v3060
    %v3062 = vpop.f32.mrb[0].mxu0
    %v3063 = vadd.f32 %v2990, %v3062
    %3064 = vmatprep.mubr.bf16.mxu0 %v1394
    %3065 = vmatmul.mubr.bf16.gmra.mrb[0].mxu0 %v1393
    %v3066 = vpop.f32.mrb[0].mxu0
    %v3067 = vadd.f32 %v2994, %v3066
    %v3068 = vpop.f32.mrb[0].mxu0
    %v3069 = vadd.f32 %v2996, %v3068
    %v3070 = vpop.f32.mrb[0].mxu0
    %v3071 = vadd.f32 %v2998, %v3070
    %v3072 = vpop.f32.mrb[0].mxu0
    %v3073 = vadd.f32 %v3000, %v3072
    %3074 = vdwg.mxu0
    %3075 = vmatprep.subr.bf16.mxu0 %v2473
    %3076 = vmatpush1.bf16.msra.mxu0 %v2472
    %3077 = vmatprep.subr.bf16.mxu0 %v2475
    %3078 = vmatpush1.bf16.msra.mxu0 %v2474
    %3079 = vmatprep.subr.bf16.mxu0 %v2477
    %3080 = vmatpush1.bf16.msra.mxu0 %v2476
    %3081 = vmatprep.subr.bf16.mxu0 %v2479
    %3082 = vmatpush1.bf16.msra.mxu0 %v2478
    %3083 = vmatprep.subr.bf16.mxu0 %v2481
    %3084 = vmatpush1.bf16.msra.mxu0 %v2480
    %3085 = vmatprep.subr.bf16.mxu0 %v2483
    %3086 = vmatpush1.bf16.msra.mxu0 %v2482
    %3087 = vmatprep.subr.bf16.mxu0 %v2485
    %3088 = vmatpush1.bf16.msra.mxu0 %v2484
    %3089 = vmatprep.subr.bf16.mxu0 %v2487
    %3090 = vmatpush1.bf16.msra.mxu0 %v2486
    %3091 = vmatprep.subr.bf16.mxu0 %v2489
    %3092 = vmatpush1.bf16.msra.mxu0 %v2488
    %3093 = vmatprep.subr.bf16.mxu0 %v2491
    %3094 = vmatpush1.bf16.msra.mxu0 %v2490
    %3095 = vmatprep.subr.bf16.mxu0 %v2493
    %3096 = vmatpush1.bf16.msra.mxu0 %v2492
    %3097 = vmatprep.subr.bf16.mxu0 %v2495
    %3098 = vmatpush1.bf16.msra.mxu0 %v2494
    %3099 = vmatprep.subr.bf16.mxu0 %v2497
    %3100 = vmatpush1.bf16.msra.mxu0 %v2496
    %3101 = vmatprep.subr.bf16.mxu0 %v2499
    %3102 = vmatpush1.bf16.msra.mxu0 %v2498
    %3103 = vmatprep.subr.bf16.mxu0 %v2501
    %3104 = vmatpush1.bf16.msra.mxu0 %v2500
    %3105 = vmatprep.subr.bf16.mxu0 %v2503
    %3106 = vmatpush1.bf16.msra.mxu0 %v2502
    %3107 = vmatprep.mubr.bf16.mxu0 %v1378
    %3108 = vmatmul.mubr.bf16.gmra.mrb[0].mxu0 %v1377
    %v3109 = vpop.f32.mrb[0].mxu0
    %v3110 = vadd.f32 %v3037, %v3109
    %v3111 = vpop.f32.mrb[0].mxu0
    %v3112 = vadd.f32 %v3039, %v3111
    %v3113 = vpop.f32.mrb[0].mxu0
    %v3114 = vadd.f32 %v3041, %v3113
    %v3115 = vpop.f32.mrb[0].mxu0
    %v3116 = vadd.f32 %v3043, %v3115
    %3117 = vmatprep.mubr.bf16.mxu0 %v1384
    %3118 = vmatmul.mubr.bf16.gmra.mrb[0].mxu0 %v1383
    %v3119 = vpop.f32.mrb[0].mxu0
    %v3120 = vadd.f32 %v3047, %v3119
    %v3121 = vpop.f32.mrb[0].mxu0
    %v3122 = vadd.f32 %v3049, %v3121
    %v3123 = vpop.f32.mrb[0].mxu0
    %v3124 = vadd.f32 %v3051, %v3123
    %v3125 = vpop.f32.mrb[0].mxu0
    %v3126 = vadd.f32 %v3053, %v3125
    %3127 = vmatprep.mubr.bf16.mxu0 %v1390
    %3128 = vmatmul.mubr.bf16.gmra.mrb[0].mxu0 %v1389
    %v3129 = vpop.f32.mrb[0].mxu0
    %v3130 = vadd.f32 %v3057, %v3129
    %v3131 = vpop.f32.mrb[0].mxu0
    %v3132 = vadd.f32 %v3059, %v3131
    %v3133 = vpop.f32.mrb[0].mxu0
    %v3134 = vadd.f32 %v3061, %v3133
    %v3135 = vpop.f32.mrb[0].mxu0
    %v3136 = vadd.f32 %v3063, %v3135
    %3137 = vmatprep.mubr.bf16.mxu0 %v1396
    %3138 = vmatmul.mubr.bf16.gmra.mrb[0].mxu0 %v1395
    %v3139 = vpop.f32.mrb[0].mxu0
    %v3140 = vadd.f32 %v3067, %v3139
    %v3141 = vpop.f32.mrb[0].mxu0
    %v3142 = vadd.f32 %v3069, %v3141
    %v3143 = vpop.f32.mrb[0].mxu0
    %v3144 = vadd.f32 %v3071, %v3143
    %v3145 = vpop.f32.mrb[0].mxu0
    %v3146 = vadd.f32 %v3073, %v3145
    %3147 = vdwg.mxu0
    %3148 = vmatprep.subr.bf16.mxu0 %v2505
    %3149 = vmatpush1.bf16.msra.mxu0 %v2504
    %3150 = vmatprep.subr.bf16.mxu0 %v2507
    %3151 = vmatpush1.bf16.msra.mxu0 %v2506
    %3152 = vmatprep.subr.bf16.mxu0 %v2509
    %3153 = vmatpush1.bf16.msra.mxu0 %v2508
    %3154 = vmatprep.subr.bf16.mxu0 %v2511
    %3155 = vmatpush1.bf16.msra.mxu0 %v2510
    %3156 = vmatprep.subr.bf16.mxu0 %v2513
    %3157 = vmatpush1.bf16.msra.mxu0 %v2512
    %3158 = vmatprep.subr.bf16.mxu0 %v2515
    %3159 = vmatpush1.bf16.msra.mxu0 %v2514
    %3160 = vmatprep.subr.bf16.mxu0 %v2517
    %3161 = vmatpush1.bf16.msra.mxu0 %v2516
    %3162 = vmatprep.subr.bf16.mxu0 %v2519
    %3163 = vmatpush1.bf16.msra.mxu0 %v2518
    %3164 = vmatprep.subr.bf16.mxu0 %v2521
    %3165 = vmatpush1.bf16.msra.mxu0 %v2520
    %3166 = vmatprep.subr.bf16.mxu0 %v2523
    %3167 = vmatpush1.bf16.msra.mxu0 %v2522
    %3168 = vmatprep.subr.bf16.mxu0 %v2525
    %3169 = vmatpush1.bf16.msra.mxu0 %v2524
    %3170 = vmatprep.subr.bf16.mxu0 %v2527
    %3171 = vmatpush1.bf16.msra.mxu0 %v2526
    %3172 = vmatprep.subr.bf16.mxu0 %v2529
    %3173 = vmatpush1.bf16.msra.mxu0 %v2528
    %3174 = vmatprep.subr.bf16.mxu0 %v2531
    %3175 = vmatpush1.bf16.msra.mxu0 %v2530
    %3176 = vmatprep.subr.bf16.mxu0 %v2533
    %3177 = vmatpush1.bf16.msra.mxu0 %v2532
    %3178 = vmatprep.subr.bf16.mxu0 %v2535
    %3179 = vmatpush1.bf16.msra.mxu0 %v2534
    %3180 = vmatprep.mubr.bf16.mxu0 %v1380
    %3181 = vmatmul.mubr.bf16.gmra.mrb[0].mxu0 %v1379
    %v3182 = vpop.f32.mrb[0].mxu0
    %v3183 = vadd.f32 %v3110, %v3182
    %v3184 = vpop.f32.mrb[0].mxu0
    %v3185 = vadd.f32 %v3112, %v3184
    %v3186 = vpop.f32.mrb[0].mxu0
    %v3187 = vadd.f32 %v3114, %v3186
    %v3188 = vpop.f32.mrb[0].mxu0
    %v3189 = vadd.f32 %v3116, %v3188
    %3190 = vmatprep.mubr.bf16.mxu0 %v1386
    %3191 = vmatmul.mubr.bf16.gmra.mrb[0].mxu0 %v1385
    %v3192 = vpop.f32.mrb[0].mxu0
    %v3193 = vadd.f32 %v3120, %v3192
    %v3194 = vpop.f32.mrb[0].mxu0
    %v3195 = vadd.f32 %v3122, %v3194
    %v3196 = vpop.f32.mrb[0].mxu0
    %v3197 = vadd.f32 %v3124, %v3196
    %v3198 = vpop.f32.mrb[0].mxu0
    %v3199 = vadd.f32 %v3126, %v3198
    %3200 = vmatprep.mubr.bf16.mxu0 %v1392
    %3201 = vmatmul.mubr.bf16.gmra.mrb[0].mxu0 %v1391
    %v3202 = vpop.f32.mrb[0].mxu0
    %v3203 = vadd.f32 %v3130, %v3202
    %v3204 = vpop.f32.mrb[0].mxu0
    %v3205 = vadd.f32 %v3132, %v3204
    %v3206 = vpop.f32.mrb[0].mxu0
    %v3207 = vadd.f32 %v3134, %v3206
    %v3208 = vpop.f32.mrb[0].mxu0
    %v3209 = vadd.f32 %v3136, %v3208
    %3210 = vmatprep.mubr.bf16.mxu0 %v1398
    %3211 = vmatmul.mubr.bf16.gmra.mrb[0].mxu0 %v1397
    %v3212 = vpop.f32.mrb[0].mxu0
    %v3213 = vadd.f32 %v3140, %v3212
    %v3214 = vpop.f32.mrb[0].mxu0
    %v3215 = vadd.f32 %v3142, %v3214
    %v3216 = vpop.f32.mrb[0].mxu0
    %v3217 = vadd.f32 %v3144, %v3216
    %v3218 = vpop.f32.mrb[0].mxu0
    %v3219 = vadd.f32 %v3146, %v3218
    %3220 = vdwg.mxu0
    %3221 = vmatprep.subr.bf16.mxu0 %v2537
    %3222 = vmatpush1.bf16.msra.mxu0 %v2536
    %3223 = vmatprep.subr.bf16.mxu0 %v2539
    %3224 = vmatpush1.bf16.msra.mxu0 %v2538
    %3225 = vmatprep.subr.bf16.mxu0 %v2541
    %3226 = vmatpush1.bf16.msra.mxu0 %v2540
    %3227 = vmatprep.subr.bf16.mxu0 %v2543
    %3228 = vmatpush1.bf16.msra.mxu0 %v2542
    %3229 = vmatprep.subr.bf16.mxu0 %v2545
    %3230 = vmatpush1.bf16.msra.mxu0 %v2544
    %3231 = vmatprep.subr.bf16.mxu0 %v2547
    %3232 = vmatpush1.bf16.msra.mxu0 %v2546
    %3233 = vmatprep.subr.bf16.mxu0 %v2549
    %3234 = vmatpush1.bf16.msra.mxu0 %v2548
    %3235 = vmatprep.subr.bf16.mxu0 %v2551
    %3236 = vmatpush1.bf16.msra.mxu0 %v2550
    %3237 = vmatprep.subr.bf16.mxu0 %v2553
    %3238 = vmatpush1.bf16.msra.mxu0 %v2552
    %3239 = vmatprep.subr.bf16.mxu0 %v2555
    %3240 = vmatpush1.bf16.msra.mxu0 %v2554
    %3241 = vmatprep.subr.bf16.mxu0 %v2557
    %3242 = vmatpush1.bf16.msra.mxu0 %v2556
    %3243 = vmatprep.subr.bf16.mxu0 %v2559
    %3244 = vmatpush1.bf16.msra.mxu0 %v2558
    %3245 = vmatprep.subr.bf16.mxu0 %v2561
    %3246 = vmatpush1.bf16.msra.mxu0 %v2560
    %3247 = vmatprep.subr.bf16.mxu0 %v2563
    %3248 = vmatpush1.bf16.msra.mxu0 %v2562
    %3249 = vmatprep.subr.bf16.mxu0 %v2565
    %3250 = vmatpush1.bf16.msra.mxu0 %v2564
    %3251 = vmatprep.subr.bf16.mxu0 %v2567
    %3252 = vmatpush1.bf16.msra.mxu0 %v2566
    %3253 = vmatprep.mubr.bf16.mxu0 %v1382
    %3254 = vmatmul.mubr.bf16.gmra.mrb[0].mxu0 %v1381
    %v3255 = vpop.f32.mrb[0].mxu0
    %v3256 = vadd.f32 %v3183, %v3255
    %v3257 = vpop.f32.mrb[0].mxu0
    %v3258 = vadd.f32 %v3185, %v3257
    %v3259 = vpop.f32.mrb[0].mxu0
    %v3260 = vadd.f32 %v3187, %v3259
    %v3261 = vpop.f32.mrb[0].mxu0
    %v3262 = vadd.f32 %v3189, %v3261
    %3263 = vmatprep.mubr.bf16.mxu0 %v1388
    %3264 = vmatmul.mubr.bf16.gmra.mrb[0].mxu0 %v1387
    %v3265 = vpop.f32.mrb[0].mxu0
    %v3266 = vadd.f32 %v3193, %v3265
    %v3267 = vpop.f32.mrb[0].mxu0
    %v3268 = vadd.f32 %v3195, %v3267
    %v3269 = vpop.f32.mrb[0].mxu0
    %v3270 = vadd.f32 %v3197, %v3269
    %v3271 = vpop.f32.mrb[0].mxu0
    %v3272 = vadd.f32 %v3199, %v3271
    %3273 = vmatprep.mubr.bf16.mxu0 %v1394
    %3274 = vmatmul.mubr.bf16.gmra.mrb[0].mxu0 %v1393
    %v3275 = vpop.f32.mrb[0].mxu0
    %v3276 = vadd.f32 %v3203, %v3275
    %v3277 = vpop.f32.mrb[0].mxu0
    %v3278 = vadd.f32 %v3205, %v3277
    %v3279 = vpop.f32.mrb[0].mxu0
    %v3280 = vadd.f32 %v3207, %v3279
    %v3281 = vpop.f32.mrb[0].mxu0
    %v3282 = vadd.f32 %v3209, %v3281
    %3283 = vmatprep.mubr.bf16.mxu0 %v1400
    %3284 = vmatmul.mubr.bf16.gmra.mrb[0].mxu0 %v1399
    %v3285 = vpop.f32.mrb[0].mxu0
    %v3286 = vadd.f32 %v3213, %v3285
    %v3287 = vpop.f32.mrb[0].mxu0
    %v3288 = vadd.f32 %v3215, %v3287
    %v3289 = vpop.f32.mrb[0].mxu0
    %v3290 = vadd.f32 %v3217, %v3289
    %v3291 = vpop.f32.mrb[0].mxu0
    %v3292 = vadd.f32 %v3219, %v3291
    %3293 = vdwg.mxu0
    %3294 = vmatprep.subr.bf16.mxu0 %v2569
    %3295 = vmatpush1.bf16.msra.mxu0 %v2568
    %3296 = vmatprep.subr.bf16.mxu0 %v2571
    %3297 = vmatpush1.bf16.msra.mxu0 %v2570
    %3298 = vmatprep.subr.bf16.mxu0 %v2573
    %3299 = vmatpush1.bf16.msra.mxu0 %v2572
    %3300 = vmatprep.subr.bf16.mxu0 %v2575
    %3301 = vmatpush1.bf16.msra.mxu0 %v2574
    %3302 = vmatprep.subr.bf16.mxu0 %v2577
    %3303 = vmatpush1.bf16.msra.mxu0 %v2576
    %3304 = vmatprep.subr.bf16.mxu0 %v2579
    %3305 = vmatpush1.bf16.msra.mxu0 %v2578
    %3306 = vmatprep.subr.bf16.mxu0 %v2581
    %3307 = vmatpush1.bf16.msra.mxu0 %v2580
    %3308 = vmatprep.subr.bf16.mxu0 %v2583
    %3309 = vmatpush1.bf16.msra.mxu0 %v2582
    %3310 = vmatprep.subr.bf16.mxu0 %v2585
    %3311 = vmatpush1.bf16.msra.mxu0 %v2584
    %3312 = vmatprep.subr.bf16.mxu0 %v2587
    %3313 = vmatpush1.bf16.msra.mxu0 %v2586
    %3314 = vmatprep.subr.bf16.mxu0 %v2589
    %3315 = vmatpush1.bf16.msra.mxu0 %v2588
    %3316 = vmatprep.subr.bf16.mxu0 %v2591
    %3317 = vmatpush1.bf16.msra.mxu0 %v2590
    %3318 = vmatprep.subr.bf16.mxu0 %v2593
    %3319 = vmatpush1.bf16.msra.mxu0 %v2592
    %3320 = vmatprep.subr.bf16.mxu0 %v2595
    %3321 = vmatpush1.bf16.msra.mxu0 %v2594
    %3322 = vmatprep.subr.bf16.mxu0 %v2597
    %3323 = vmatpush1.bf16.msra.mxu0 %v2596
    %3324 = vmatprep.subr.bf16.mxu0 %v2599
    %3325 = vmatpush1.bf16.msra.mxu0 %v2598
    %3326 = vmatprep.mubr.bf16.mxu0 %v1384
    %3327 = vmatmul.mubr.bf16.gmra.mrb[0].mxu0 %v1383
    %v3328 = vpop.f32.mrb[0].mxu0
    %v3329 = vadd.f32 %v3256, %v3328
    %v3330 = vpop.f32.mrb[0].mxu0
    %v3331 = vadd.f32 %v3258, %v3330
    %v3332 = vpop.f32.mrb[0].mxu0
    %v3333 = vadd.f32 %v3260, %v3332
    %v3334 = vpop.f32.mrb[0].mxu0
    %v3335 = vadd.f32 %v3262, %v3334
    %3336 = vmatprep.mubr.bf16.mxu0 %v1390
    %3337 = vmatmul.mubr.bf16.gmra.mrb[0].mxu0 %v1389
    %v3338 = vpop.f32.mrb[0].mxu0
    %v3339 = vadd.f32 %v3266, %v3338
    %v3340 = vpop.f32.mrb[0].mxu0
    %v3341 = vadd.f32 %v3268, %v3340
    %v3342 = vpop.f32.mrb[0].mxu0
    %v3343 = vadd.f32 %v3270, %v3342
    %v3344 = vpop.f32.mrb[0].mxu0
    %v3345 = vadd.f32 %v3272, %v3344
    %3346 = vmatprep.mubr.bf16.mxu0 %v1396
    %3347 = vmatmul.mubr.bf16.gmra.mrb[0].mxu0 %v1395
    %v3348 = vpop.f32.mrb[0].mxu0
    %v3349 = vadd.f32 %v3276, %v3348
    %v3350 = vpop.f32.mrb[0].mxu0
    %v3351 = vadd.f32 %v3278, %v3350
    %v3352 = vpop.f32.mrb[0].mxu0
    %v3353 = vadd.f32 %v3280, %v3352
    %v3354 = vpop.f32.mrb[0].mxu0
    %v3355 = vadd.f32 %v3282, %v3354
    %3356 = vmatprep.mubr.bf16.mxu0 %v1402
    %3357 = vmatmul.mubr.bf16.gmra.mrb[0].mxu0 %v1401
    %v3358 = vpop.f32.mrb[0].mxu0
    %v3359 = vadd.f32 %v3286, %v3358
    %v3360 = vpop.f32.mrb[0].mxu0
    %v3361 = vadd.f32 %v3288, %v3360
    %v3362 = vpop.f32.mrb[0].mxu0
    %v3363 = vadd.f32 %v3290, %v3362
    %v3364 = vpop.f32.mrb[0].mxu0
    %v3365 = vadd.f32 %v3292, %v3364
    %3366 = vdwg.mxu0
    %3367 = vmatprep.subr.bf16.mxu0 %v2601
    %3368 = vmatpush1.bf16.msra.mxu0 %v2600
    %3369 = vmatprep.subr.bf16.mxu0 %v2603
    %3370 = vmatpush1.bf16.msra.mxu0 %v2602
    %3371 = vmatprep.subr.bf16.mxu0 %v2605
    %3372 = vmatpush1.bf16.msra.mxu0 %v2604
    %3373 = vmatprep.subr.bf16.mxu0 %v2607
    %3374 = vmatpush1.bf16.msra.mxu0 %v2606
    %3375 = vmatprep.subr.bf16.mxu0 %v2609
    %3376 = vmatpush1.bf16.msra.mxu0 %v2608
    %3377 = vmatprep.subr.bf16.mxu0 %v2611
    %3378 = vmatpush1.bf16.msra.mxu0 %v2610
    %3379 = vmatprep.subr.bf16.mxu0 %v2613
    %3380 = vmatpush1.bf16.msra.mxu0 %v2612
    %3381 = vmatprep.subr.bf16.mxu0 %v2615
    %3382 = vmatpush1.bf16.msra.mxu0 %v2614
    %3383 = vmatprep.subr.bf16.mxu0 0
    %3384 = vmatpush1.bf16.msra.mxu0 0
    %3385 = vmatprep.subr.bf16.mxu0 0
    %3386 = vmatpush1.bf16.msra.mxu0 0
    %3387 = vmatprep.subr.bf16.mxu0 0
    %3388 = vmatpush1.bf16.msra.mxu0 0
    %3389 = vmatprep.subr.bf16.mxu0 0
    %3390 = vmatpush1.bf16.msra.mxu0 0
    %3391 = vmatprep.subr.bf16.mxu0 0
    %3392 = vmatpush1.bf16.msra.mxu0 0
    %3393 = vmatprep.subr.bf16.mxu0 0
    %3394 = vmatpush1.bf16.msra.mxu0 0
    %3395 = vmatprep.subr.bf16.mxu0 0
    %3396 = vmatpush1.bf16.msra.mxu0 0
    %3397 = vmatprep.subr.bf16.mxu0 0
    %3398 = vmatpush1.bf16.msra.mxu0 0
    %3399 = vmatprep.mubr.bf16.mxu0 0
    %3400 = vmatmul.mubr.bf16.gmra.mrb[0].mxu0 %v1385
    %v3401 = vpop.f32.mrb[0].mxu0
    %v3402 = vadd.f32 %v3329, %v3401
    %v3403 = vpop.f32.mrb[0].mxu0
    %v3404 = vadd.f32 %v3331, %v3403
    %v3405 = vpop.f32.mrb[0].mxu0
    %v3406 = vadd.f32 %v3333, %v3405
    %v3407 = vpop.f32.mrb[0].mxu0
    %v3408 = vadd.f32 %v3335, %v3407
    %3409 = vmatprep.mubr.bf16.mxu0 0
    %3410 = vmatmul.mubr.bf16.gmra.mrb[0].mxu0 %v1391
    %v3411 = vpop.f32.mrb[0].mxu0
    %v3412 = vadd.f32 %v3339, %v3411
    %v3413 = vpop.f32.mrb[0].mxu0
    %v3414 = vadd.f32 %v3341, %v3413
    %v3415 = vpop.f32.mrb[0].mxu0
    %v3416 = vadd.f32 %v3343, %v3415
    %v3417 = vpop.f32.mrb[0].mxu0
    %v3418 = vadd.f32 %v3345, %v3417
    %3419 = vmatprep.mubr.bf16.mxu0 0
    %3420 = vmatmul.mubr.bf16.gmra.mrb[0].mxu0 %v1397
    %v3421 = vpop.f32.mrb[0].mxu0
    %v3422 = vadd.f32 %v3349, %v3421
    %v3423 = vpop.f32.mrb[0].mxu0
    %v3424 = vadd.f32 %v3351, %v3423
    %v3425 = vpop.f32.mrb[0].mxu0
    %v3426 = vadd.f32 %v3353, %v3425
    %v3427 = vpop.f32.mrb[0].mxu0
    %v3428 = vadd.f32 %v3355, %v3427
    %3429 = vmatprep.mubr.bf16.mxu0 0
    %3430 = vmatmul.mubr.bf16.gmra.mrb[0].mxu0 %v1403
    %v3431 = vpop.f32.mrb[0].mxu0
    %v3432 = vadd.f32 %v3359, %v3431
    %v3433 = vpop.f32.mrb[0].mxu0
    %v3434 = vadd.f32 %v3361, %v3433
    %v3435 = vpop.f32.mrb[0].mxu0
    %v3436 = vadd.f32 %v3363, %v3435
    %v3437 = vpop.f32.mrb[0].mxu0
    %v3438 = vadd.f32 %v3365, %v3437
    %3439 = vdwg.mxu0
    %v3440 = vmax.f32 %v3402, 0.0
    %v3441 = vmax.f32 %v3404, 0.0
    %v3442 = vmax.f32 %v3406, 0.0
    %v3443 = vmax.f32 %v3408, 0.0
    %v3444 = vmax.f32 %v3412, 0.0
    %v3445 = vmax.f32 %v3414, 0.0
    %v3446 = vmax.f32 %v3416, 0.0
    %v3447 = vmax.f32 %v3418, 0.0
    %v3448 = vmax.f32 %v3422, 0.0
    %v3449 = vmax.f32 %v3424, 0.0
    %v3450 = vmax.f32 %v3426, 0.0
    %v3451 = vmax.f32 %v3428, 0.0
    %v3452 = vmax.f32 %v3432, 0.0
    %v3453 = vmax.f32 %v3434, 0.0
    %v3454 = vmax.f32 %v3436, 0.0
    %v3455 = vmax.f32 %v3438, 0.0
    %v3456 = vmax.f32 %v3440, %v3442
    %v3457 = vmax.f32 %v3441, %v3443
    %v3458 = vmax.f32 %v3444, %v3446
    %v3459 = vmax.f32 %v3445, %v3447
    %v3460 = vmax.f32 %v3448, %v3450
    %v3461 = vmax.f32 %v3449, %v3451
    %v3462 = vmax.f32 %v3452, %v3454
    %v3463 = vmax.f32 %v3453, %v3455
    %3472 = vrot.lane.b32.xlu0 %v3456, 96
    %v3473 = vpop.permute.xlu0 %3472
    %3474 = vrot.lane.b32.xlu0 %v3457, 96
    %v3475 = vpop.permute.xlu0 %3474
    %3476 = vrot.lane.b32.xlu0 %v3458, 96
    %v3477 = vpop.permute.xlu0 %3476
    %3478 = vrot.lane.b32.xlu0 %v3459, 96
    %v3479 = vpop.permute.xlu0 %3478
    %3480 = vrot.lane.b32.xlu0 %v3460, 96
    %v3481 = vpop.permute.xlu0 %3480
    %3482 = vrot.lane.b32.xlu0 %v3461, 96
    %v3483 = vpop.permute.xlu0 %3482
    %3484 = vrot.lane.b32.xlu0 %v3462, 96
    %v3485 = vpop.permute.xlu0 %3484
    %3486 = vrot.lane.b32.xlu0 %v3463, 96
    %v3487 = vpop.permute.xlu0 %3486
    %vm3488 = vcmask 785408
    %v3489 = vsel %vm3488, %v3473, %v3475
    %v3490 = vsel %vm3488, %v3477, %v3479
    %v3491 = vsel %vm3488, %v3481, %v3483
    %v3492 = vsel %vm3488, %v3485, %v3487
    %v3505 = vsel %vm3488, %v3475, %v3473
    %v3506 = vsel %vm3488, %v3479, %v3477
    %v3507 = vsel %vm3488, %v3483, %v3481
    %v3508 = vsel %vm3488, %v3487, %v3485
    %v3509 = vmax.f32 %v3456, %v3489
    %v3510 = vmax.f32 %v3457, %v3505
    %v3511 = vmax.f32 %v3458, %v3490
    %v3512 = vmax.f32 %v3459, %v3506
    %v3513 = vmax.f32 %v3460, %v3491
    %v3514 = vmax.f32 %v3461, %v3507
    %v3515 = vmax.f32 %v3462, %v3492
    %v3516 = vmax.f32 %v3463, %v3508
    %v3517 = vpack.c.bf16 %v3509, %v3509
    %v3518 = vpack.c.bf16 %v3510, %v3510
    %v3519 = vpack.c.bf16 %v3511, %v3511
    %v3520 = vpack.c.bf16 %v3512, %v3512
    %v3521 = vpack.c.bf16 %v3513, %v3513
    %v3522 = vpack.c.bf16 %v3514, %v3514
    %v3523 = vpack.c.bf16 %v3515, %v3515
    %v3524 = vpack.c.bf16 %v3516, %v3516
    %v3525 = vld [vmem:[#allocation6] sm:$0xf]
    %v3526 = vld [vmem:[#allocation6 + $0x4] sm:$0xf]
    %v3527 = vld [vmem:[#allocation6 + $0x8] sm:$0xf]
    %v3528 = vld [vmem:[#allocation6 + $0xc] sm:$0xf]
    %v3529 = vld [vmem:[#allocation6 + $0x10] sm:$0xf]
    %v3530 = vld [vmem:[#allocation6 + $0x14] sm:$0xf]
    %v3531 = vld [vmem:[#allocation6 + $0x18] sm:$0xf]
    %v3532 = vld [vmem:[#allocation6 + $0x1c] sm:$0xf]
    %v3533 = vld [vmem:[#allocation6 + $0x20] sm:$0xf]
    %v3534 = vld [vmem:[#allocation6 + $0x24] sm:$0xf]
    %v3535 = vld [vmem:[#allocation6 + $0x28] sm:$0xf]
    %v3536 = vld [vmem:[#allocation6 + $0x2c] sm:$0xf]
    %v3537 = vld [vmem:[#allocation6 + $0x30] sm:$0xf]
    %v3538 = vld [vmem:[#allocation6 + $0x34] sm:$0xf]
    %v3539 = vld [vmem:[#allocation6 + $0x38] sm:$0xf]
    %v3540 = vld [vmem:[#allocation6 + $0x3c] sm:$0xf]
    %v3541 = vld [vmem:[#allocation6 + $0x40] sm:$0xf]
    %v3542 = vld [vmem:[#allocation6 + $0x44] sm:$0xf]
    %v3543 = vld [vmem:[#allocation6 + $0x48] sm:$0xf]
    %v3544 = vld [vmem:[#allocation6 + $0x4c] sm:$0xf]
    %v3545 = vld [vmem:[#allocation6 + $0x50] sm:$0xf]
    %v3546 = vld [vmem:[#allocation6 + $0x54] sm:$0xf]
    %v3547 = vld [vmem:[#allocation6 + $0x58] sm:$0xf]
    %v3548 = vld [vmem:[#allocation6 + $0x5c] sm:$0xf]
    %v3549 = vld [vmem:[#allocation6 + $0x60] sm:$0xf]
    %v3550 = vld [vmem:[#allocation6 + $0x64] sm:$0xf]
    %v3551 = vld [vmem:[#allocation6 + $0x68] sm:$0xf]
    %v3552 = vld [vmem:[#allocation6 + $0x6c] sm:$0xf]
    %v3553 = vld [vmem:[#allocation6 + $0x70] sm:$0xf]
    %v3554 = vld [vmem:[#allocation6 + $0x74] sm:$0xf]
    %v3555 = vld [vmem:[#allocation6 + $0x78] sm:$0xf]
    %v3556 = vld [vmem:[#allocation6 + $0x7c] sm:$0xf]
    %v3557 = vld [vmem:[#allocation6 + $0x80] sm:$0xf]
    %v3558 = vld [vmem:[#allocation6 + $0x84] sm:$0xf]
    %v3559 = vld [vmem:[#allocation6 + $0x88] sm:$0xf]
    %v3560 = vld [vmem:[#allocation6 + $0x8c] sm:$0xf]
    %v3561 = vld [vmem:[#allocation6 + $0x90] sm:$0xf]
    %v3562 = vld [vmem:[#allocation6 + $0x94] sm:$0xf]
    %v3563 = vld [vmem:[#allocation6 + $0x98] sm:$0xf]
    %v3564 = vld [vmem:[#allocation6 + $0x9c] sm:$0xf]
    %v3565 = vld [vmem:[#allocation6 + $0xa0] sm:$0xf]
    %v3566 = vld [vmem:[#allocation6 + $0xa4] sm:$0xf]
    %v3567 = vld [vmem:[#allocation6 + $0xa8] sm:$0xf]
    %v3568 = vld [vmem:[#allocation6 + $0xac] sm:$0xf]
    %v3569 = vld [vmem:[#allocation6 + $0xb0] sm:$0xf]
    %v3570 = vld [vmem:[#allocation6 + $0xb4] sm:$0xf]
    %v3571 = vld [vmem:[#allocation6 + $0xb8] sm:$0xf]
    %v3572 = vld [vmem:[#allocation6 + $0xbc] sm:$0xf]
    %v3573 = vld [vmem:[#allocation6 + $0xc0] sm:$0xf]
    %v3574 = vld [vmem:[#allocation6 + $0xc4] sm:$0xf]
    %v3575 = vld [vmem:[#allocation6 + $0xc8] sm:$0xf]
    %v3576 = vld [vmem:[#allocation6 + $0xcc] sm:$0xf]
    %v3577 = vld [vmem:[#allocation6 + $0xd0] sm:$0xf]
    %v3578 = vld [vmem:[#allocation6 + $0xd4] sm:$0xf]
    %v3579 = vld [vmem:[#allocation6 + $0xd8] sm:$0xf]
    %v3580 = vld [vmem:[#allocation6 + $0xdc] sm:$0xf]
    %v3581 = vld [vmem:[#allocation6 + $0xe0] sm:$0xf]
    %v3582 = vld [vmem:[#allocation6 + $0xe4] sm:$0xf]
    %v3583 = vld [vmem:[#allocation6 + $0xe8] sm:$0xf]
    %v3584 = vld [vmem:[#allocation6 + $0xec] sm:$0xf]
    %v3585 = vld [vmem:[#allocation6 + $0xf0] sm:$0xf]
    %v3586 = vld [vmem:[#allocation6 + $0xf4] sm:$0xf]
    %v3587 = vld [vmem:[#allocation6 + $0xf8] sm:$0xf]
    %v3588 = vld [vmem:[#allocation6 + $0xfc] sm:$0xf]
    %v3589 = vld [vmem:[#allocation6 + $0x100] sm:$0xf]
    %v3590 = vld [vmem:[#allocation6 + $0x104] sm:$0xf]
    %v3591 = vld [vmem:[#allocation6 + $0x108] sm:$0xf]
    %v3592 = vld [vmem:[#allocation6 + $0x10c] sm:$0xf]
    %v3593 = vld [vmem:[#allocation6 + $0x110] sm:$0xf]
    %v3594 = vld [vmem:[#allocation6 + $0x114] sm:$0xf]
    %v3595 = vld [vmem:[#allocation6 + $0x118] sm:$0xf]
    %v3596 = vld [vmem:[#allocation6 + $0x11c] sm:$0xf]
    %v3597 = vld [vmem:[#allocation6 + $0x120] sm:$0xf]
    %v3598 = vld [vmem:[#allocation6 + $0x124] sm:$0xf]
    %v3599 = vld [vmem:[#allocation6 + $0x128] sm:$0xf]
    %v3600 = vld [vmem:[#allocation6 + $0x12c] sm:$0xf]
    %v3601 = vld [vmem:[#allocation6 + $0x130] sm:$0xf]
    %v3602 = vld [vmem:[#allocation6 + $0x134] sm:$0xf]
    %v3603 = vld [vmem:[#allocation6 + $0x138] sm:$0xf]
    %v3604 = vld [vmem:[#allocation6 + $0x13c] sm:$0xf]
    %v3605 = vld [vmem:[#allocation6 + $0x140] sm:$0xf]
    %v3606 = vld [vmem:[#allocation6 + $0x144] sm:$0xf]
    %v3607 = vld [vmem:[#allocation6 + $0x148] sm:$0xf]
    %v3608 = vld [vmem:[#allocation6 + $0x14c] sm:$0xf]
    %v3609 = vld [vmem:[#allocation6 + $0x150] sm:$0xf]
    %v3610 = vld [vmem:[#allocation6 + $0x154] sm:$0xf]
    %v3611 = vld [vmem:[#allocation6 + $0x158] sm:$0xf]
    %v3612 = vld [vmem:[#allocation6 + $0x15c] sm:$0xf]
    %v3613 = vld [vmem:[#allocation6 + $0x160] sm:$0xf]
    %v3614 = vld [vmem:[#allocation6 + $0x164] sm:$0xf]
    %v3615 = vld [vmem:[#allocation6 + $0x168] sm:$0xf]
    %v3616 = vld [vmem:[#allocation6 + $0x16c] sm:$0xf]
    %v3617 = vld [vmem:[#allocation6 + $0x170] sm:$0xf]
    %v3618 = vld [vmem:[#allocation6 + $0x174] sm:$0xf]
    %v3619 = vld [vmem:[#allocation6 + $0x178] sm:$0xf]
    %v3620 = vld [vmem:[#allocation6 + $0x17c] sm:$0xf]
    %v3621 = vld [vmem:[#allocation6 + $0x180] sm:$0xf]
    %v3622 = vld [vmem:[#allocation6 + $0x184] sm:$0xf]
    %v3623 = vld [vmem:[#allocation6 + $0x188] sm:$0xf]
    %v3624 = vld [vmem:[#allocation6 + $0x18c] sm:$0xf]
    %v3625 = vld [vmem:[#allocation6 + $0x190] sm:$0xf]
    %v3626 = vld [vmem:[#allocation6 + $0x194] sm:$0xf]
    %v3627 = vld [vmem:[#allocation6 + $0x198] sm:$0xf]
    %v3628 = vld [vmem:[#allocation6 + $0x19c] sm:$0xf]
    %v3629 = vld [vmem:[#allocation6 + $0x1a0] sm:$0xf]
    %v3630 = vld [vmem:[#allocation6 + $0x1a4] sm:$0xf]
    %v3631 = vld [vmem:[#allocation6 + $0x1a8] sm:$0xf]
    %v3632 = vld [vmem:[#allocation6 + $0x1ac] sm:$0xf]
    %v3633 = vld [vmem:[#allocation6 + $0x1b0] sm:$0xf]
    %v3634 = vld [vmem:[#allocation6 + $0x1b4] sm:$0xf]
    %v3635 = vld [vmem:[#allocation6 + $0x1b8] sm:$0xf]
    %v3636 = vld [vmem:[#allocation6 + $0x1bc] sm:$0xf]
    %v3637 = vld [vmem:[#allocation6 + $0x1c0] sm:$0xf]
    %v3638 = vld [vmem:[#allocation6 + $0x1c4] sm:$0xf]
    %v3639 = vld [vmem:[#allocation6 + $0x1c8] sm:$0xf]
    %v3640 = vld [vmem:[#allocation6 + $0x1cc] sm:$0xf]
    %v3641 = vld [vmem:[#allocation6 + $0x1d0] sm:$0xf]
    %v3642 = vld [vmem:[#allocation6 + $0x1d4] sm:$0xf]
    %v3643 = vld [vmem:[#allocation6 + $0x1d8] sm:$0xf]
    %v3644 = vld [vmem:[#allocation6 + $0x1dc] sm:$0xf]
    %v3645 = vld [vmem:[#allocation6 + $0x1e0] sm:$0xf]
    %v3646 = vld [vmem:[#allocation6 + $0x1e4] sm:$0xf]
    %v3647 = vld [vmem:[#allocation6 + $0x1e8] sm:$0xf]
    %v3648 = vld [vmem:[#allocation6 + $0x1ec] sm:$0xf]
    %v3649 = vld [vmem:[#allocation6 + $0x1f0] sm:$0xf]
    %v3650 = vld [vmem:[#allocation6 + $0x1f4] sm:$0xf]
    %v3651 = vld [vmem:[#allocation6 + $0x1f8] sm:$0xf]
    %v3652 = vld [vmem:[#allocation6 + $0x1fc] sm:$0xf]
    %v3653 = vld [vmem:[%s6] sm:$0x1]
    %v3655 = vlaneseq
    %v3656 = vshrl.u32 %v3655, 7
    %v3657 = vsub.s32 0, %v3656
    %v3658 = vrot.slane %v3653, %v3657
    %v3788 = vunpack.c.l.b16 %v3525
    %v3789 = vunpack.c.l.b16 %v3526
    %v3790 = vunpack.c.l.b16 %v3527
    %v3791 = vunpack.c.l.b16 %v3528
    %v3792 = vunpack.c.l.b16 %v3529
    %v3793 = vunpack.c.l.b16 %v3530
    %v3794 = vunpack.c.l.b16 %v3531
    %v3795 = vunpack.c.l.b16 %v3532
    %v3796 = vunpack.c.l.b16 %v3533
    %v3797 = vunpack.c.l.b16 %v3534
    %v3798 = vunpack.c.l.b16 %v3535
    %v3799 = vunpack.c.l.b16 %v3536
    %v3800 = vunpack.c.l.b16 %v3537
    %v3801 = vunpack.c.l.b16 %v3538
    %v3802 = vunpack.c.l.b16 %v3539
    %v3803 = vunpack.c.l.b16 %v3540
    %v3804 = vunpack.c.l.b16 %v3541
    %v3805 = vunpack.c.l.b16 %v3542
    %v3806 = vunpack.c.l.b16 %v3543
    %v3807 = vunpack.c.l.b16 %v3544
    %v3808 = vunpack.c.l.b16 %v3545
    %v3809 = vunpack.c.l.b16 %v3546
    %v3810 = vunpack.c.l.b16 %v3547
    %v3811 = vunpack.c.l.b16 %v3548
    %v3812 = vunpack.c.l.b16 %v3549
    %v3813 = vunpack.c.l.b16 %v3550
    %v3814 = vunpack.c.l.b16 %v3551
    %v3815 = vunpack.c.l.b16 %v3552
    %v3816 = vunpack.c.l.b16 %v3553
    %v3817 = vunpack.c.l.b16 %v3554
    %v3818 = vunpack.c.l.b16 %v3555
    %v3819 = vunpack.c.l.b16 %v3556
    %v3820 = vunpack.c.l.b16 %v3557
    %v3821 = vunpack.c.l.b16 %v3558
    %v3822 = vunpack.c.l.b16 %v3559
    %v3823 = vunpack.c.l.b16 %v3560
    %v3824 = vunpack.c.l.b16 %v3561
    %v3825 = vunpack.c.l.b16 %v3562
    %v3826 = vunpack.c.l.b16 %v3563
    %v3827 = vunpack.c.l.b16 %v3564
    %v3828 = vunpack.c.l.b16 %v3565
    %v3829 = vunpack.c.l.b16 %v3566
    %v3830 = vunpack.c.l.b16 %v3567
    %v3831 = vunpack.c.l.b16 %v3568
    %v3832 = vunpack.c.l.b16 %v3569
    %v3833 = vunpack.c.l.b16 %v3570
    %v3834 = vunpack.c.l.b16 %v3571
    %v3835 = vunpack.c.l.b16 %v3572
    %v3836 = vunpack.c.l.b16 %v3573
    %v3837 = vunpack.c.l.b16 %v3574
    %v3838 = vunpack.c.l.b16 %v3575
    %v3839 = vunpack.c.l.b16 %v3576
    %v3840 = vunpack.c.l.b16 %v3577
    %v3841 = vunpack.c.l.b16 %v3578
    %v3842 = vunpack.c.l.b16 %v3579
    %v3843 = vunpack.c.l.b16 %v3580
    %v3844 = vunpack.c.l.b16 %v3581
    %v3845 = vunpack.c.l.b16 %v3582
    %v3846 = vunpack.c.l.b16 %v3583
    %v3847 = vunpack.c.l.b16 %v3584
    %v3848 = vunpack.c.l.b16 %v3585
    %v3849 = vunpack.c.l.b16 %v3586
    %v3850 = vunpack.c.l.b16 %v3587
    %v3851 = vunpack.c.l.b16 %v3588
    %v3852 = vunpack.c.l.b16 %v3589
    %v3853 = vunpack.c.l.b16 %v3590
    %v3854 = vunpack.c.l.b16 %v3591
    %v3855 = vunpack.c.l.b16 %v3592
    %v3856 = vunpack.c.l.b16 %v3593
    %v3857 = vunpack.c.l.b16 %v3594
    %v3858 = vunpack.c.l.b16 %v3595
    %v3859 = vunpack.c.l.b16 %v3596
    %v3860 = vunpack.c.l.b16 %v3597
    %v3861 = vunpack.c.l.b16 %v3598
    %v3862 = vunpack.c.l.b16 %v3599
    %v3863 = vunpack.c.l.b16 %v3600
    %v3864 = vunpack.c.l.b16 %v3601
    %v3865 = vunpack.c.l.b16 %v3602
    %v3866 = vunpack.c.l.b16 %v3603
    %v3867 = vunpack.c.l.b16 %v3604
    %v3868 = vunpack.c.l.b16 %v3605
    %v3869 = vunpack.c.l.b16 %v3606
    %v3870 = vunpack.c.l.b16 %v3607
    %v3871 = vunpack.c.l.b16 %v3608
    %v3872 = vunpack.c.l.b16 %v3609
    %v3873 = vunpack.c.l.b16 %v3610
    %v3874 = vunpack.c.l.b16 %v3611
    %v3875 = vunpack.c.l.b16 %v3612
    %v3876 = vunpack.c.l.b16 %v3613
    %v3877 = vunpack.c.l.b16 %v3614
    %v3878 = vunpack.c.l.b16 %v3615
    %v3879 = vunpack.c.l.b16 %v3616
    %v3880 = vunpack.c.l.b16 %v3617
    %v3881 = vunpack.c.l.b16 %v3618
    %v3882 = vunpack.c.l.b16 %v3619
    %v3883 = vunpack.c.l.b16 %v3620
    %v3884 = vunpack.c.l.b16 %v3621
    %v3885 = vunpack.c.l.b16 %v3622
    %v3886 = vunpack.c.l.b16 %v3623
    %v3887 = vunpack.c.l.b16 %v3624
    %v3888 = vunpack.c.l.b16 %v3625
    %v3889 = vunpack.c.l.b16 %v3626
    %v3890 = vunpack.c.l.b16 %v3627
    %v3891 = vunpack.c.l.b16 %v3628
    %v3892 = vunpack.c.l.b16 %v3629
    %v3893 = vunpack.c.l.b16 %v3630
    %v3894 = vunpack.c.l.b16 %v3631
    %v3895 = vunpack.c.l.b16 %v3632
    %v3896 = vunpack.c.l.b16 %v3633
    %v3897 = vunpack.c.l.b16 %v3634
    %v3898 = vunpack.c.l.b16 %v3635
    %v3899 = vunpack.c.l.b16 %v3636
    %v3900 = vunpack.c.l.b16 %v3637
    %v3901 = vunpack.c.l.b16 %v3638
    %v3902 = vunpack.c.l.b16 %v3639
    %v3903 = vunpack.c.l.b16 %v3640
    %v3904 = vunpack.c.l.b16 %v3641
    %v3905 = vunpack.c.l.b16 %v3642
    %v3906 = vunpack.c.l.b16 %v3643
    %v3907 = vunpack.c.l.b16 %v3644
    %v3908 = vunpack.c.l.b16 %v3645
    %v3909 = vunpack.c.l.b16 %v3646
    %v3910 = vunpack.c.l.b16 %v3647
    %v3911 = vunpack.c.l.b16 %v3648
    %v3912 = vunpack.c.l.b16 %v3649
    %v3913 = vunpack.c.l.b16 %v3650
    %v3914 = vunpack.c.l.b16 %v3651
    %v3915 = vunpack.c.l.b16 %v3652
    %v3916 = vpack.c.b16 %v3789, %v3788
    %v3917 = vpack.c.b16 %v3791, %v3790
    %v3918 = vpack.c.b16 %v3793, %v3792
    %v3919 = vpack.c.b16 %v3795, %v3794
    %v3920 = vpack.c.b16 %v3797, %v3796
    %v3921 = vpack.c.b16 %v3799, %v3798
    %v3922 = vpack.c.b16 %v3801, %v3800
    %v3923 = vpack.c.b16 %v3803, %v3802
    %v3924 = vpack.c.b16 %v3805, %v3804
    %v3925 = vpack.c.b16 %v3807, %v3806
    %v3926 = vpack.c.b16 %v3809, %v3808
    %v3927 = vpack.c.b16 %v3811, %v3810
    %v3928 = vpack.c.b16 %v3813, %v3812
    %v3929 = vpack.c.b16 %v3815, %v3814
    %v3930 = vpack.c.b16 %v3817, %v3816
    %v3931 = vpack.c.b16 %v3819, %v3818
    %v3932 = vpack.c.b16 %v3821, %v3820
    %v3933 = vpack.c.b16 %v3823, %v3822
    %v3934 = vpack.c.b16 %v3825, %v3824
    %v3935 = vpack.c.b16 %v3827, %v3826
    %v3936 = vpack.c.b16 %v3829, %v3828
    %v3937 = vpack.c.b16 %v3831, %v3830
    %v3938 = vpack.c.b16 %v3833, %v3832
    %v3939 = vpack.c.b16 %v3835, %v3834
    %v3940 = vpack.c.b16 %v3837, %v3836
    %v3941 = vpack.c.b16 %v3839, %v3838
    %v3942 = vpack.c.b16 %v3841, %v3840
    %v3943 = vpack.c.b16 %v3843, %v3842
    %v3944 = vpack.c.b16 %v3845, %v3844
    %v3945 = vpack.c.b16 %v3847, %v3846
    %v3946 = vpack.c.b16 %v3849, %v3848
    %v3947 = vpack.c.b16 %v3851, %v3850
    %v3948 = vpack.c.b16 %v3853, %v3852
    %v3949 = vpack.c.b16 %v3855, %v3854
    %v3950 = vpack.c.b16 %v3857, %v3856
    %v3951 = vpack.c.b16 %v3859, %v3858
    %v3952 = vpack.c.b16 %v3861, %v3860
    %v3953 = vpack.c.b16 %v3863, %v3862
    %v3954 = vpack.c.b16 %v3865, %v3864
    %v3955 = vpack.c.b16 %v3867, %v3866
    %v3956 = vpack.c.b16 %v3869, %v3868
    %v3957 = vpack.c.b16 %v3871, %v3870
    %v3958 = vpack.c.b16 %v3873, %v3872
    %v3959 = vpack.c.b16 %v3875, %v3874
    %v3960 = vpack.c.b16 %v3877, %v3876
    %v3961 = vpack.c.b16 %v3879, %v3878
    %v3962 = vpack.c.b16 %v3881, %v3880
    %v3963 = vpack.c.b16 %v3883, %v3882
    %v3964 = vpack.c.b16 %v3885, %v3884
    %v3965 = vpack.c.b16 %v3887, %v3886
    %v3966 = vpack.c.b16 %v3889, %v3888
    %v3967 = vpack.c.b16 %v3891, %v3890
    %v3968 = vpack.c.b16 %v3893, %v3892
    %v3969 = vpack.c.b16 %v3895, %v3894
    %v3970 = vpack.c.b16 %v3897, %v3896
    %v3971 = vpack.c.b16 %v3899, %v3898
    %v3972 = vpack.c.b16 %v3901, %v3900
    %v3973 = vpack.c.b16 %v3903, %v3902
    %v3974 = vpack.c.b16 %v3905, %v3904
    %v3975 = vpack.c.b16 %v3907, %v3906
    %v3976 = vpack.c.b16 %v3909, %v3908
    %v3977 = vpack.c.b16 %v3911, %v3910
    %v3978 = vpack.c.b16 %v3913, %v3912
    %v3979 = vpack.c.b16 %v3915, %v3914
    %4044 = vmatprep.subr.bf16.mxu0 0
    %4045 = vmatpush1.bf16.msra.mxu0 %v3916
    %4046 = vmatprep.subr.bf16.mxu0 0
    %4047 = vmatpush1.bf16.msra.mxu0 %v3917
    %4048 = vmatprep.subr.bf16.mxu0 0
    %4049 = vmatpush1.bf16.msra.mxu0 %v3918
    %4050 = vmatprep.subr.bf16.mxu0 0
    %4051 = vmatpush1.bf16.msra.mxu0 %v3919
    %4052 = vmatprep.subr.bf16.mxu0 0
    %4053 = vmatpush1.bf16.msra.mxu0 %v3920
    %4054 = vmatprep.subr.bf16.mxu0 0
    %4055 = vmatpush1.bf16.msra.mxu0 %v3921
    %4056 = vmatprep.subr.bf16.mxu0 0
    %4057 = vmatpush1.bf16.msra.mxu0 %v3922
    %4058 = vmatprep.subr.bf16.mxu0 0
    %4059 = vmatpush1.bf16.msra.mxu0 %v3923
    %4060 = vmatprep.subr.bf16.mxu0 0
    %4061 = vmatpush1.bf16.msra.mxu0 %v3924
    %4062 = vmatprep.subr.bf16.mxu0 0
    %4063 = vmatpush1.bf16.msra.mxu0 %v3925
    %4064 = vmatprep.subr.bf16.mxu0 0
    %4065 = vmatpush1.bf16.msra.mxu0 %v3926
    %4066 = vmatprep.subr.bf16.mxu0 0
    %4067 = vmatpush1.bf16.msra.mxu0 %v3927
    %4068 = vmatprep.subr.bf16.mxu0 0
    %4069 = vmatpush1.bf16.msra.mxu0 %v3928
    %4070 = vmatprep.subr.bf16.mxu0 0
    %4071 = vmatpush1.bf16.msra.mxu0 %v3929
    %4072 = vmatprep.subr.bf16.mxu0 0
    %4073 = vmatpush1.bf16.msra.mxu0 %v3930
    %4074 = vmatprep.subr.bf16.mxu0 0
    %4075 = vmatpush1.bf16.msra.mxu0 %v3931
    %4076 = vmatprep.mubr.bf16.mxu0 %v3518
    %4077 = vmatmul.mubr.bf16.gmra.mrb[0].mxu0 %v3517
    %v4078 = vpop.f32.mrb[0].mxu0
    %v4079 = vadd.f32 %v3658, %v4078
    %v4080 = vpop.f32.mrb[0].mxu0
    %v4081 = vpop.f32.mrb[0].mxu0
    %v4082 = vpop.f32.mrb[0].mxu0
    %4083 = vdwg.mxu0
    %4084 = vmatprep.subr.bf16.mxu0 0
    %4085 = vmatpush1.bf16.msra.mxu0 %v3932
    %4086 = vmatprep.subr.bf16.mxu0 0
    %4087 = vmatpush1.bf16.msra.mxu0 %v3933
    %4088 = vmatprep.subr.bf16.mxu0 0
    %4089 = vmatpush1.bf16.msra.mxu0 %v3934
    %4090 = vmatprep.subr.bf16.mxu0 0
    %4091 = vmatpush1.bf16.msra.mxu0 %v3935
    %4092 = vmatprep.subr.bf16.mxu0 0
    %4093 = vmatpush1.bf16.msra.mxu0 %v3936
    %4094 = vmatprep.subr.bf16.mxu0 0
    %4095 = vmatpush1.bf16.msra.mxu0 %v3937
    %4096 = vmatprep.subr.bf16.mxu0 0
    %4097 = vmatpush1.bf16.msra.mxu0 %v3938
    %4098 = vmatprep.subr.bf16.mxu0 0
    %4099 = vmatpush1.bf16.msra.mxu0 %v3939
    %4100 = vmatprep.subr.bf16.mxu0 0
    %4101 = vmatpush1.bf16.msra.mxu0 %v3940
    %4102 = vmatprep.subr.bf16.mxu0 0
    %4103 = vmatpush1.bf16.msra.mxu0 %v3941
    %4104 = vmatprep.subr.bf16.mxu0 0
    %4105 = vmatpush1.bf16.msra.mxu0 %v3942
    %4106 = vmatprep.subr.bf16.mxu0 0
    %4107 = vmatpush1.bf16.msra.mxu0 %v3943
    %4108 = vmatprep.subr.bf16.mxu0 0
    %4109 = vmatpush1.bf16.msra.mxu0 %v3944
    %4110 = vmatprep.subr.bf16.mxu0 0
    %4111 = vmatpush1.bf16.msra.mxu0 %v3945
    %4112 = vmatprep.subr.bf16.mxu0 0
    %4113 = vmatpush1.bf16.msra.mxu0 %v3946
    %4114 = vmatprep.subr.bf16.mxu0 0
    %4115 = vmatpush1.bf16.msra.mxu0 %v3947
    %4116 = vmatprep.mubr.bf16.mxu0 %v3520
    %4117 = vmatmul.mubr.bf16.gmra.mrb[0].mxu0 %v3519
    %v4118 = vpop.f32.mrb[0].mxu0
    %v4119 = vadd.f32 %v4079, %v4118
    %v4120 = vpop.f32.mrb[0].mxu0
    %v4121 = vpop.f32.mrb[0].mxu0
    %v4122 = vpop.f32.mrb[0].mxu0
    %4123 = vdwg.mxu0
    %4124 = vmatprep.subr.bf16.mxu0 0
    %4125 = vmatpush1.bf16.msra.mxu0 %v3948
    %4126 = vmatprep.subr.bf16.mxu0 0
    %4127 = vmatpush1.bf16.msra.mxu0 %v3949
    %4128 = vmatprep.subr.bf16.mxu0 0
    %4129 = vmatpush1.bf16.msra.mxu0 %v3950
    %4130 = vmatprep.subr.bf16.mxu0 0
    %4131 = vmatpush1.bf16.msra.mxu0 %v3951
    %4132 = vmatprep.subr.bf16.mxu0 0
    %4133 = vmatpush1.bf16.msra.mxu0 %v3952
    %4134 = vmatprep.subr.bf16.mxu0 0
    %4135 = vmatpush1.bf16.msra.mxu0 %v3953
    %4136 = vmatprep.subr.bf16.mxu0 0
    %4137 = vmatpush1.bf16.msra.mxu0 %v3954
    %4138 = vmatprep.subr.bf16.mxu0 0
    %4139 = vmatpush1.bf16.msra.mxu0 %v3955
    %4140 = vmatprep.subr.bf16.mxu0 0
    %4141 = vmatpush1.bf16.msra.mxu0 %v3956
    %4142 = vmatprep.subr.bf16.mxu0 0
    %4143 = vmatpush1.bf16.msra.mxu0 %v3957
    %4144 = vmatprep.subr.bf16.mxu0 0
    %4145 = vmatpush1.bf16.msra.mxu0 %v3958
    %4146 = vmatprep.subr.bf16.mxu0 0
    %4147 = vmatpush1.bf16.msra.mxu0 %v3959
    %4148 = vmatprep.subr.bf16.mxu0 0
    %4149 = vmatpush1.bf16.msra.mxu0 %v3960
    %4150 = vmatprep.subr.bf16.mxu0 0
    %4151 = vmatpush1.bf16.msra.mxu0 %v3961
    %4152 = vmatprep.subr.bf16.mxu0 0
    %4153 = vmatpush1.bf16.msra.mxu0 %v3962
    %4154 = vmatprep.subr.bf16.mxu0 0
    %4155 = vmatpush1.bf16.msra.mxu0 %v3963
    %4156 = vmatprep.mubr.bf16.mxu0 %v3522
    %4157 = vmatmul.mubr.bf16.gmra.mrb[0].mxu0 %v3521
    %v4158 = vpop.f32.mrb[0].mxu0
    %v4159 = vadd.f32 %v4119, %v4158
    %v4160 = vpop.f32.mrb[0].mxu0
    %v4161 = vpop.f32.mrb[0].mxu0
    %v4162 = vpop.f32.mrb[0].mxu0
    %4163 = vdwg.mxu0
    %4164 = vmatprep.subr.bf16.mxu0 0
    %4165 = vmatpush1.bf16.msra.mxu0 %v3964
    %4166 = vmatprep.subr.bf16.mxu0 0
    %4167 = vmatpush1.bf16.msra.mxu0 %v3965
    %4168 = vmatprep.subr.bf16.mxu0 0
    %4169 = vmatpush1.bf16.msra.mxu0 %v3966
    %4170 = vmatprep.subr.bf16.mxu0 0
    %4171 = vmatpush1.bf16.msra.mxu0 %v3967
    %4172 = vmatprep.subr.bf16.mxu0 0
    %4173 = vmatpush1.bf16.msra.mxu0 %v3968
    %4174 = vmatprep.subr.bf16.mxu0 0
    %4175 = vmatpush1.bf16.msra.mxu0 %v3969
    %4176 = vmatprep.subr.bf16.mxu0 0
    %4177 = vmatpush1.bf16.msra.mxu0 %v3970
    %4178 = vmatprep.subr.bf16.mxu0 0
    %4179 = vmatpush1.bf16.msra.mxu0 %v3971
    %4180 = vmatprep.subr.bf16.mxu0 0
    %4181 = vmatpush1.bf16.msra.mxu0 %v3972
    %4182 = vmatprep.subr.bf16.mxu0 0
    %4183 = vmatpush1.bf16.msra.mxu0 %v3973
    %4184 = vmatprep.subr.bf16.mxu0 0
    %4185 = vmatpush1.bf16.msra.mxu0 %v3974
    %4186 = vmatprep.subr.bf16.mxu0 0
    %4187 = vmatpush1.bf16.msra.mxu0 %v3975
    %4188 = vmatprep.subr.bf16.mxu0 0
    %4189 = vmatpush1.bf16.msra.mxu0 %v3976
    %4190 = vmatprep.subr.bf16.mxu0 0
    %4191 = vmatpush1.bf16.msra.mxu0 %v3977
    %4192 = vmatprep.subr.bf16.mxu0 0
    %4193 = vmatpush1.bf16.msra.mxu0 %v3978
    %4194 = vmatprep.subr.bf16.mxu0 0
    %4195 = vmatpush1.bf16.msra.mxu0 %v3979
    %4196 = vmatprep.mubr.bf16.mxu0 %v3524
    %4197 = vmatmul.mubr.bf16.gmra.mrb[0].mxu0 %v3523
    %v4198 = vpop.f32.mrb[0].mxu0
    %v4199 = vadd.f32 %v4159, %v4198
    %v4200 = vpop.f32.mrb[0].mxu0
    %v4201 = vpop.f32.mrb[0].mxu0
    %v4202 = vpop.f32.mrb[0].mxu0
    %4203 = vdwg.mxu0
    %4204 = vst [vmem:[%s7] sm:$0xff] %v4199
    // Predicated region
    $region42: #{cnn_model_forward.1} parent=1 // pred_check
      _
    $region43: #{cnn_model_forward.1} parent=1 // pred_check_branch
      %4206 = sbr.rel (0) target = $region45
    $region44: #{cnn_model_forward.1} parent=1 // pred_region
      _
    $region45: #{cnn_model_forward.1} parent=1 // pred_fallthru
      _
    // Predicated region
    $region46: #{cnn_model_forward.1} parent=1 // pred_check
      _
    $region47: #{cnn_model_forward.1} parent=1 // pred_check_branch
      %4208 = sbr.rel (0) target = $region49
    $region48: #{cnn_model_forward.1} parent=1 // pred_region
      _
    $region49: #{cnn_model_forward.1} parent=1 // pred_fallthru
      _
    %4209 = vsyncpa [#allocation3], 1
    %4210 = vsyncpa [#allocation5], 1

</llo_original>
